<compile_context>
chip_gen: v7x
topology: tpu7x:2x2x1
jax: 0.10.0
libtpu: 0.0.40
codegen_flags: <defaults>
</compile_context>

<pallas_src>
import functools

import jax
import jax.numpy as jnp
import numpy as np
from jax.experimental import pallas as pl

BN_EPS = 1e-5

# Fixed geometry for the 3x32x32 input (ResNet18 stem):
#   conv1 7x7/s2/p3 : 32x32 -> 16x16, Cout=64
#   maxpool 3x3/s2/p1 : 16x16 -> 8x8
#   layer1 (2 BasicBlocks, 3x3/s1/p1, 64->64) : 8x8 -> 8x8
C1_K = 7 * 7 * 3                 # 147 im2col columns of conv1
C1_KPAD = 256                    # K zero-padded -> lane-dense 256
CONV1_HW = 16                    # conv1 output spatial size
CONV1_P = CONV1_HW * CONV1_HW    # 256 conv1 positions / image
POOL_HW = 8
POOL_P = POOL_HW * POOL_HW       # 64 pooled positions / image
TAPS = tuple((dh, dw) for dh in (-1, 0, 1) for dw in (-1, 0, 1))
N_TAPS = len(TAPS)               # 9


# ----------------------------------------------------------------------------
# Static host-side tables (numpy constants, built once at import time).
# ----------------------------------------------------------------------------
def _conv1_im2col_index():
    """(147, 256) int32: flat index into the zero-padded (38,38,3) image."""
    idx = np.empty((C1_K, CONV1_P), np.int32)
    for kh in range(7):
        for kw in range(7):
            for ci in range(3):
                k = kh * 21 + kw * 3 + ci
                for h in range(CONV1_HW):
                    for w in range(CONV1_HW):
                        idx[k, h * CONV1_HW + w] = (
                            (2 * h + kh) * 38 + (2 * w + kw)) * 3 + ci
    return idx


_IM2COL_IDX = _conv1_im2col_index()


def _downsample_matrix(n):
    """(n*256, n*64) 0/1 block-diagonal matrix: stride-2 lane selection."""
    d = np.zeros((n * CONV1_P, n * POOL_P), np.float32)
    for img in range(n):
        for ph in range(POOL_HW):
            for pw in range(POOL_HW):
                d[img * CONV1_P + 2 * ph * CONV1_HW + 2 * pw,
                  img * POOL_P + ph * POOL_HW + pw] = 1.0
    return d


# ----------------------------------------------------------------------------
# Fused Pallas kernel: conv1 -> BN -> ReLU -> maxpool -> layer1 (2 BasicBlocks)
# Activation layout: (64 channels [sublanes], N*positions [lanes]).
# ----------------------------------------------------------------------------
def _shifted(x, delta):
    # shifted[:, r] = x[:, r + delta] (circular roll along lanes; any element
    # that wrapped across a row/image boundary is zeroed by the caller's mask,
    # so the wrap never leaks).  Static roll -> cheap lane slice+concat.
    return x if delta == 0 else jnp.roll(x, -delta, axis=1)


def _conv3x3_64(x_f32, masks, w_ref, b_ref):
    """3x3 'same' 64->64 conv on an 8x8 map held as (64 ch, N*64 pos)."""
    x16 = x_f32.astype(jnp.bfloat16)
    pieces = []
    for t, (dh, dw) in enumerate(TAPS):
        xs = _shifted(x16, dh * POOL_HW + dw)
        pieces.append(jnp.where(masks[t], xs, 0.0))
    xcat = jnp.concatenate(pieces, axis=0)          # (9*64, N*64), tap-major K
    return jnp.dot(w_ref[...], xcat,
                   preferred_element_type=jnp.float32) + b_ref[...]


def _basic_block(x, masks, wa_ref, ba_ref, wb_ref, bb_ref):
    h = jnp.maximum(_conv3x3_64(x, masks, wa_ref, ba_ref), 0.0)
    h = _conv3x3_64(h, masks, wb_ref, bb_ref)
    return jnp.maximum(h + x, 0.0)                  # residual add, final ReLU


def _stem_layer1_kernel(a_ref, w1_ref, b1_ref, d_ref,
                        wa1_ref, ba1_ref, wb1_ref, bb1_ref,
                        wa2_ref, ba2_ref, wb2_ref, bb2_ref,
                        o_ref):
    lc = a_ref.shape[1]          # N*256 conv1 positions (lanes)
    lp = d_ref.shape[1]          # N*64 pooled positions (lanes)

    # conv1 (one K=256 matmul over the host im2col, K zero-padded) + BN + ReLU.
    y = jnp.dot(w1_ref[...], a_ref[...], preferred_element_type=jnp.float32)
    y = jnp.maximum(y + b1_ref[...], 0.0)           # (64, N*256)

    # 3x3/s2/p1 maxpool fused as lane rolls + iota masks.  Invalid taps are
    # replaced by 0: this is only correct because the values are post-ReLU
    # (>= 0) and the centre tap is always valid -- keep that invariant.
    rc = jax.lax.broadcasted_iota(jnp.int32, (1, lc), 1)
    hc = jnp.right_shift(jnp.bitwise_and(rc, CONV1_P - 1), 4)
    wc = jnp.bitwise_and(rc, CONV1_HW - 1)
    pooled = y                                      # centre tap
    for dh, dw in TAPS:
        if dh == 0 and dw == 0:
            continue
        valid = ((hc + dh >= 0) & (hc + dh < CONV1_HW) &
                 (wc + dw >= 0) & (wc + dw < CONV1_HW))
        pooled = jnp.maximum(
            pooled, jnp.where(valid, _shifted(y, dh * CONV1_HW + dw), 0.0))

    # Stride-2 spatial downsample: exact 0/1 lane-selection matmul (bf16-exact).
    x = jnp.dot(pooled.astype(jnp.bfloat16), d_ref[...],
                preferred_element_type=jnp.float32)          # (64, N*64)

    # layer1: two BasicBlocks, everything resident in VMEM / vregs.
    rp = jax.lax.broadcasted_iota(jnp.int32, (1, lp), 1)
    hp = jnp.right_shift(jnp.bitwise_and(rp, POOL_P - 1), 3)
    wp = jnp.bitwise_and(rp, POOL_HW - 1)
    masks = [((hp + dh >= 0) & (hp + dh < POOL_HW) &
              (wp + dw >= 0) & (wp + dw < POOL_HW)) for dh, dw in TAPS]
    x = _basic_block(x, masks, wa1_ref, ba1_ref, wb1_ref, bb1_ref)
    x = _basic_block(x, masks, wa2_ref, ba2_ref, wb2_ref, bb2_ref)
    o_ref[...] = x                                  # (64, N*64): lane-dense


def fused_forward(a_t, packed, d_mat, n_images):
    blk0, blk1 = packed["blocks"]
    # Single invocation, whole batch: no grid, full arrays live in VMEM
    # (total operand footprint < 1 MiB, far below every generation's limit).
    return pl.pallas_call(
        _stem_layer1_kernel,
        out_shape=jax.ShapeDtypeStruct((64, n_images * POOL_P), jnp.float32),
    )(a_t, packed["w1"], packed["b1"], d_mat,
      blk0["wa"], blk0["ba"], blk0["wb"], blk0["bb"],
      blk1["wa"], blk1["ba"], blk1["wb"], blk1["bb"])


# ----------------------------------------------------------------------------
# Host-side glue
# ----------------------------------------------------------------------------
def build_conv1_lhs_t(x_nchw):
    """bf16 (256, N*256) transposed conv1 im2col (single gather, K pad 147->256)."""
    n = x_nchw.shape[0]
    x = jnp.transpose(x_nchw, (0, 2, 3, 1)).astype(jnp.float32)    # NHWC
    xp = jnp.pad(x, ((0, 0), (3, 3), (3, 3), (0, 0)))              # (N,38,38,3)
    flat = xp.reshape(n, 38 * 38 * 3)
    cols = jnp.take(flat, jnp.asarray(_IM2COL_IDX.reshape(-1)), axis=1)
    cols = cols.reshape(n, C1_K, CONV1_P)                          # (N,147,256)
    a_t = jnp.transpose(cols, (1, 0, 2)).reshape(C1_K, n * CONV1_P)
    a_t = jnp.pad(a_t, ((0, C1_KPAD - C1_K), (0, 0)))              # K -> 256
    return a_t.astype(jnp.bfloat16)


def feature_generator_forward(x_nchw, packed):
    assert x_nchw.shape[1:] == (3, 32, 32), x_nchw.shape
    n = x_nchw.shape[0]
    a_t = build_conv1_lhs_t(x_nchw)
    d_mat = jnp.asarray(_downsample_matrix(n), jnp.bfloat16)
    out = fused_forward(a_t, packed, d_mat, n)       # (64, N*64)
    out = out.reshape(64, n, POOL_HW, POOL_HW)
    return jnp.transpose(out, (1, 0, 2, 3))          # -> NCHW (N, 64, 8, 8)


# ----------------------------------------------------------------------------
# Parameters (deterministic synthetic init; shapes from ResNet18 stem + layer1)
# ----------------------------------------------------------------------------
def _he_conv(key, shape):
    cout, cin, kh, kw = shape
    fan_in = cin * kh * kw
    return jax.random.normal(key, shape, jnp.float32) * np.sqrt(2.0 / fan_in)


def _bn_params(key, c):
    k1, k2, k3, k4 = jax.random.split(key, 4)
    return {
        "gamma": 1.0 + 0.1 * jax.random.normal(k1, (c,), jnp.float32),
        "beta": 0.1 * jax.random.normal(k2, (c,), jnp.float32),
        "mean": 0.1 * jax.random.normal(k3, (c,), jnp.float32),
        "var": 1.0 + 0.5 * jax.random.uniform(k4, (c,), jnp.float32),
    }


def fold_bn(bn):
    scale = bn["gamma"] * jax.lax.rsqrt(bn["var"] + BN_EPS)
    bias = bn["beta"] - bn["mean"] * scale
    return scale, bias


def init_params(key):
    keys = jax.random.split(key, 10)
    params = {"conv1_w": _he_conv(keys[0], (64, 3, 7, 7)),
              "bn1": _bn_params(keys[1], 64),
              "layer1": []}
    k = 2
    for _ in range(2):  # two BasicBlocks in resnet18.layer1
        params["layer1"].append({
            "conv1_w": _he_conv(keys[k], (64, 64, 3, 3)),
            "bn1": _bn_params(keys[k + 1], 64),
            "conv2_w": _he_conv(keys[k + 2], (64, 64, 3, 3)),
            "bn2": _bn_params(keys[k + 3], 64),
        })
        k += 4
    return params


def pack_params(params):
    """One-time packing: fold BN scale into bf16 weights in the kernel layout."""
    s1, b1 = fold_bn(params["bn1"])
    # conv1: (co, ci, kh, kw) -> (co, kh*21 + kw*3 + ci), K zero-padded to 256.
    w1 = jnp.transpose(params["conv1_w"], (0, 2, 3, 1)).reshape(64, C1_K)
    w1 = jnp.pad(w1 * s1[:, None], ((0, 0), (0, C1_KPAD - C1_K)))
    packed = {
        "w1": w1.astype(jnp.bfloat16),
        "b1": b1.reshape(64, 1).astype(jnp.float32),
        "blocks": [],
    }
    for blk in params["layer1"]:
        bp = {}
        for tag, wkey, bnkey in (("a", "conv1_w", "bn1"), ("b", "conv2_w", "bn2")):
            s, b = fold_bn(blk[bnkey])
            # (co, ci, kh, kw) -> (co, (kh*3+kw)*64 + ci): tap-major K = 576.
            w = jnp.transpose(blk[wkey], (0, 2, 3, 1)).reshape(64, N_TAPS * 64)
            bp["w" + tag] = (w * s[:, None]).astype(jnp.bfloat16)
            bp["b" + tag] = b.reshape(64, 1).astype(jnp.float32)
        packed["blocks"].append(bp)
    return packed


# ----------------------------------------------------------------------------
# Pure-JAX reference (operand_dtype=bf16 reproduces the kernel's quantization)
# ----------------------------------------------------------------------------
def _ref_conv(x_nhwc, w_oihw, scale, stride, pad, operand_dtype):
    w = w_oihw * scale[:, None, None, None]          # fold BN scale (as kernel)
    w_hwio = jnp.transpose(w, (2, 3, 1, 0)).astype(operand_dtype)
    return jax.lax.conv_general_dilated(
        x_nhwc.astype(operand_dtype), w_hwio, (stride, stride),
        ((pad, pad), (pad, pad)),
        dimension_numbers=("NHWC", "HWIO", "NHWC"),
        preferred_element_type=jnp.float32,
        precision=jax.lax.Precision.HIGHEST)


def _ref_maxpool(x_nhwc):
    xp = jnp.pad(x_nhwc, ((0, 0), (1, 1), (1, 1), (0, 0)),
                 constant_values=-jnp.inf)
    return jax.lax.reduce_window(xp, -jnp.inf, jax.lax.max,
                                 (1, 3, 3, 1), (1, 2, 2, 1), "VALID")


def reference_forward(x_nchw, params, operand_dtype=jnp.float32):
    x = jnp.transpose(x_nchw, (0, 2, 3, 1))
    s, b = fold_bn(params["bn1"])
    h = jnp.maximum(_ref_conv(x, params["conv1_w"], s, 2, 3, operand_dtype) + b,
                    0.0)
    h = _ref_maxpool(h)
    if operand_dtype != jnp.float32:
        # The kernel carries the pooled map through a bf16 0/1 selection matmul,
        # i.e. the pooled activations are rounded to bf16 exactly once here.
        h = h.astype(operand_dtype).astype(jnp.float32)
    for blk in params["layer1"]:
        identity = h
        s1, b1 = fold_bn(blk["bn1"])
        h1 = jnp.maximum(
            _ref_conv(h, blk["conv1_w"], s1, 1, 1, operand_dtype) + b1, 0.0)
        s2, b2 = fold_bn(blk["bn2"])
        h = jnp.maximum(
            _ref_conv(h1, blk["conv2_w"], s2, 1, 1, operand_dtype) + b2 + identity,
            0.0)
    return jnp.transpose(h, (0, 3, 1, 2))


# ----------------------------------------------------------------------------
if __name__ == "__main__":
    x = jax.random.normal(jax.random.PRNGKey(0), (2, 3, 32, 32), jnp.float32)
    params = init_params(jax.random.PRNGKey(42))

    packed = pack_params(params)                 # one-time weight packing
    fwd = jax.jit(feature_generator_forward)
    out = jax.block_until_ready(fwd(x, packed))
    assert out.shape == (2, 64, 8, 8), out.shape
    out_np = np.asarray(out)

    # Wiring check vs a reference that uses the same bf16 operand quantization.
    # Two independently rounded bf16 pipelines agree to ~1e-2 absolute (not to
    # machine precision); a wiring bug would produce O(1) errors.
    ref_match = np.asarray(jax.jit(functools.partial(
        reference_forward, operand_dtype=jnp.bfloat16))(x, params))
    np.testing.assert_allclose(out_np, ref_match, rtol=0.05, atol=0.05)

    # Fidelity check vs the full-f32 reference (bf16 MXU operands -> small drift).
    ref_f32 = np.asarray(jax.jit(reference_forward)(x, params))
    err = np.abs(out_np - ref_f32)
    assert float(err.max()) < 0.5 and float(err.mean()) < 0.05, (
        float(err.max()), float(err.mean()))

    print("KERNEL_OK")
</pallas_src>

<mosaic_0001>
module attributes {stable_mosaic.version = 11 : i64} {
  func.func @_stem_layer1_kernel(%arg0: memref<256x512xbf16, #tpu.memory_space<vmem>>, %arg1: memref<64x256xbf16, #tpu.memory_space<vmem>>, %arg2: memref<64x1xf32, #tpu.memory_space<vmem>>, %arg3: memref<512x128xbf16, #tpu.memory_space<vmem>>, %arg4: memref<64x576xbf16, #tpu.memory_space<vmem>>, %arg5: memref<64x1xf32, #tpu.memory_space<vmem>>, %arg6: memref<64x576xbf16, #tpu.memory_space<vmem>>, %arg7: memref<64x1xf32, #tpu.memory_space<vmem>>, %arg8: memref<64x576xbf16, #tpu.memory_space<vmem>>, %arg9: memref<64x1xf32, #tpu.memory_space<vmem>>, %arg10: memref<64x576xbf16, #tpu.memory_space<vmem>>, %arg11: memref<64x1xf32, #tpu.memory_space<vmem>>, %arg12: memref<64x128xf32, #tpu.memory_space<vmem>>) attributes {dimension_semantics = [], scalar_prefetch = 0 : i64, scratch_operands = 0 : i64, tpu.core_type = #tpu.core_type<tc>} {
    %c0 = arith.constant 0 : index
    %c0_0 = arith.constant 0 : index
    %0 = vector.load %arg1[%c0, %c0_0] : memref<64x256xbf16, #tpu.memory_space<vmem>>, vector<64x256xbf16>
    %c0_1 = arith.constant 0 : index
    %c0_2 = arith.constant 0 : index
    %1 = vector.load %arg0[%c0_1, %c0_2] : memref<256x512xbf16, #tpu.memory_space<vmem>>, vector<256x512xbf16>
    %cst = arith.constant dense<0.000000e+00> : vector<64x512xf32>
    %2 = tpu.matmul %0, %1, %cst {dimension_numbers = #tpu.dot_dimension_numbers<[1], [0], [0], [1], [0, 0, 1, 1], [], []>} : vector<64x256xbf16>, vector<256x512xbf16>, vector<64x512xf32> -> vector<64x512xf32>
    %c0_3 = arith.constant 0 : index
    %c0_4 = arith.constant 0 : index
    %3 = vector.load %arg2[%c0_3, %c0_4] : memref<64x1xf32, #tpu.memory_space<vmem>>, vector<64x1xf32>
    %4 = vector.broadcast %3 : vector<64x1xf32> to vector<64x512xf32>
    %5 = arith.addf %2, %4 : vector<64x512xf32>
    %cst_5 = arith.constant 0.000000e+00 : f32
    %6 = vector.broadcast %cst_5 : f32 to vector<64x512xf32>
    %7 = arith.maximumf %5, %6 : vector<64x512xf32>
    %8 = tpu.iota {dimensions = array<i32: 1>} : vector<1x512xi32>
    %c255_i32 = arith.constant 255 : i32
    %9 = vector.broadcast %c255_i32 : i32 to vector<1x512xi32>
    %10 = arith.andi %8, %9 : vector<1x512xi32>
    %c4_i32 = arith.constant 4 : i32
    %11 = vector.broadcast %c4_i32 : i32 to vector<1x512xi32>
    %12 = arith.shrsi %10, %11 : vector<1x512xi32>
    %c15_i32 = arith.constant 15 : i32
    %13 = vector.broadcast %c15_i32 : i32 to vector<1x512xi32>
    %14 = arith.andi %8, %13 : vector<1x512xi32>
    %c-1_i32 = arith.constant -1 : i32
    %15 = vector.broadcast %c-1_i32 : i32 to vector<1x512xi32>
    %16 = arith.addi %12, %15 : vector<1x512xi32>
    %c0_i32 = arith.constant 0 : i32
    %17 = vector.broadcast %c0_i32 : i32 to vector<1x512xi32>
    %18 = arith.cmpi sge, %16, %17 : vector<1x512xi32>
    %c-1_i32_6 = arith.constant -1 : i32
    %19 = vector.broadcast %c-1_i32_6 : i32 to vector<1x512xi32>
    %20 = arith.addi %12, %19 : vector<1x512xi32>
    %c16_i32 = arith.constant 16 : i32
    %21 = vector.broadcast %c16_i32 : i32 to vector<1x512xi32>
    %22 = arith.cmpi slt, %20, %21 : vector<1x512xi32>
    %23 = arith.andi %18, %22 : vector<1x512xi1>
    %c-1_i32_7 = arith.constant -1 : i32
    %24 = vector.broadcast %c-1_i32_7 : i32 to vector<1x512xi32>
    %25 = arith.addi %14, %24 : vector<1x512xi32>
    %c0_i32_8 = arith.constant 0 : i32
    %26 = vector.broadcast %c0_i32_8 : i32 to vector<1x512xi32>
    %27 = arith.cmpi sge, %25, %26 : vector<1x512xi32>
    %28 = arith.andi %23, %27 : vector<1x512xi1>
    %c-1_i32_9 = arith.constant -1 : i32
    %29 = vector.broadcast %c-1_i32_9 : i32 to vector<1x512xi32>
    %30 = arith.addi %14, %29 : vector<1x512xi32>
    %c16_i32_10 = arith.constant 16 : i32
    %31 = vector.broadcast %c16_i32_10 : i32 to vector<1x512xi32>
    %32 = arith.cmpi slt, %30, %31 : vector<1x512xi32>
    %33 = arith.andi %28, %32 : vector<1x512xi1>
    %34 = vector.extract_strided_slice %7 {offsets = [0, 495], sizes = [64, 17], strides = [1, 1]} : vector<64x512xf32> to vector<64x17xf32>
    %35 = vector.extract_strided_slice %7 {offsets = [0, 0], sizes = [64, 495], strides = [1, 1]} : vector<64x512xf32> to vector<64x495xf32>
    %36 = tpu.concatenate %34, %35 in 1 : vector<64x17xf32>, vector<64x495xf32> -> vector<64x512xf32>
    %cst_11 = arith.constant 0.000000e+00 : f32
    %37 = vector.shape_cast %33 : vector<1x512xi1> to vector<1x512xi1>
    %38 = vector.broadcast %37 : vector<1x512xi1> to vector<64x512xi1>
    %39 = vector.broadcast %cst_11 : f32 to vector<64x512xf32>
    %40 = arith.select %38, %36, %39 : vector<64x512xi1>, vector<64x512xf32>
    %41 = arith.maximumf %7, %40 : vector<64x512xf32>
    %c-1_i32_12 = arith.constant -1 : i32
    %42 = vector.broadcast %c-1_i32_12 : i32 to vector<1x512xi32>
    %43 = arith.addi %12, %42 : vector<1x512xi32>
    %c0_i32_13 = arith.constant 0 : i32
    %44 = vector.broadcast %c0_i32_13 : i32 to vector<1x512xi32>
    %45 = arith.cmpi sge, %43, %44 : vector<1x512xi32>
    %c-1_i32_14 = arith.constant -1 : i32
    %46 = vector.broadcast %c-1_i32_14 : i32 to vector<1x512xi32>
    %47 = arith.addi %12, %46 : vector<1x512xi32>
    %c16_i32_15 = arith.constant 16 : i32
    %48 = vector.broadcast %c16_i32_15 : i32 to vector<1x512xi32>
    %49 = arith.cmpi slt, %47, %48 : vector<1x512xi32>
    %50 = arith.andi %45, %49 : vector<1x512xi1>
    %c0_i32_16 = arith.constant 0 : i32
    %51 = vector.broadcast %c0_i32_16 : i32 to vector<1x512xi32>
    %52 = arith.addi %14, %51 : vector<1x512xi32>
    %c0_i32_17 = arith.constant 0 : i32
    %53 = vector.broadcast %c0_i32_17 : i32 to vector<1x512xi32>
    %54 = arith.cmpi sge, %52, %53 : vector<1x512xi32>
    %55 = arith.andi %50, %54 : vector<1x512xi1>
    %c0_i32_18 = arith.constant 0 : i32
    %56 = vector.broadcast %c0_i32_18 : i32 to vector<1x512xi32>
    %57 = arith.addi %14, %56 : vector<1x512xi32>
    %c16_i32_19 = arith.constant 16 : i32
    %58 = vector.broadcast %c16_i32_19 : i32 to vector<1x512xi32>
    %59 = arith.cmpi slt, %57, %58 : vector<1x512xi32>
    %60 = arith.andi %55, %59 : vector<1x512xi1>
    %61 = vector.extract_strided_slice %7 {offsets = [0, 496], sizes = [64, 16], strides = [1, 1]} : vector<64x512xf32> to vector<64x16xf32>
    %62 = vector.extract_strided_slice %7 {offsets = [0, 0], sizes = [64, 496], strides = [1, 1]} : vector<64x512xf32> to vector<64x496xf32>
    %63 = tpu.concatenate %61, %62 in 1 : vector<64x16xf32>, vector<64x496xf32> -> vector<64x512xf32>
    %cst_20 = arith.constant 0.000000e+00 : f32
    %64 = vector.shape_cast %60 : vector<1x512xi1> to vector<1x512xi1>
    %65 = vector.broadcast %64 : vector<1x512xi1> to vector<64x512xi1>
    %66 = vector.broadcast %cst_20 : f32 to vector<64x512xf32>
    %67 = arith.select %65, %63, %66 : vector<64x512xi1>, vector<64x512xf32>
    %68 = arith.maximumf %41, %67 : vector<64x512xf32>
    %c-1_i32_21 = arith.constant -1 : i32
    %69 = vector.broadcast %c-1_i32_21 : i32 to vector<1x512xi32>
    %70 = arith.addi %12, %69 : vector<1x512xi32>
    %c0_i32_22 = arith.constant 0 : i32
    %71 = vector.broadcast %c0_i32_22 : i32 to vector<1x512xi32>
    %72 = arith.cmpi sge, %70, %71 : vector<1x512xi32>
    %c-1_i32_23 = arith.constant -1 : i32
    %73 = vector.broadcast %c-1_i32_23 : i32 to vector<1x512xi32>
    %74 = arith.addi %12, %73 : vector<1x512xi32>
    %c16_i32_24 = arith.constant 16 : i32
    %75 = vector.broadcast %c16_i32_24 : i32 to vector<1x512xi32>
    %76 = arith.cmpi slt, %74, %75 : vector<1x512xi32>
    %77 = arith.andi %72, %76 : vector<1x512xi1>
    %c1_i32 = arith.constant 1 : i32
    %78 = vector.broadcast %c1_i32 : i32 to vector<1x512xi32>
    %79 = arith.addi %14, %78 : vector<1x512xi32>
    %c0_i32_25 = arith.constant 0 : i32
    %80 = vector.broadcast %c0_i32_25 : i32 to vector<1x512xi32>
    %81 = arith.cmpi sge, %79, %80 : vector<1x512xi32>
    %82 = arith.andi %77, %81 : vector<1x512xi1>
    %c1_i32_26 = arith.constant 1 : i32
    %83 = vector.broadcast %c1_i32_26 : i32 to vector<1x512xi32>
    %84 = arith.addi %14, %83 : vector<1x512xi32>
    %c16_i32_27 = arith.constant 16 : i32
    %85 = vector.broadcast %c16_i32_27 : i32 to vector<1x512xi32>
    %86 = arith.cmpi slt, %84, %85 : vector<1x512xi32>
    %87 = arith.andi %82, %86 : vector<1x512xi1>
    %88 = vector.extract_strided_slice %7 {offsets = [0, 497], sizes = [64, 15], strides = [1, 1]} : vector<64x512xf32> to vector<64x15xf32>
    %89 = vector.extract_strided_slice %7 {offsets = [0, 0], sizes = [64, 497], strides = [1, 1]} : vector<64x512xf32> to vector<64x497xf32>
    %90 = tpu.concatenate %88, %89 in 1 : vector<64x15xf32>, vector<64x497xf32> -> vector<64x512xf32>
    %cst_28 = arith.constant 0.000000e+00 : f32
    %91 = vector.shape_cast %87 : vector<1x512xi1> to vector<1x512xi1>
    %92 = vector.broadcast %91 : vector<1x512xi1> to vector<64x512xi1>
    %93 = vector.broadcast %cst_28 : f32 to vector<64x512xf32>
    %94 = arith.select %92, %90, %93 : vector<64x512xi1>, vector<64x512xf32>
    %95 = arith.maximumf %68, %94 : vector<64x512xf32>
    %c0_i32_29 = arith.constant 0 : i32
    %96 = vector.broadcast %c0_i32_29 : i32 to vector<1x512xi32>
    %97 = arith.addi %12, %96 : vector<1x512xi32>
    %c0_i32_30 = arith.constant 0 : i32
    %98 = vector.broadcast %c0_i32_30 : i32 to vector<1x512xi32>
    %99 = arith.cmpi sge, %97, %98 : vector<1x512xi32>
    %c0_i32_31 = arith.constant 0 : i32
    %100 = vector.broadcast %c0_i32_31 : i32 to vector<1x512xi32>
    %101 = arith.addi %12, %100 : vector<1x512xi32>
    %c16_i32_32 = arith.constant 16 : i32
    %102 = vector.broadcast %c16_i32_32 : i32 to vector<1x512xi32>
    %103 = arith.cmpi slt, %101, %102 : vector<1x512xi32>
    %104 = arith.andi %99, %103 : vector<1x512xi1>
    %c-1_i32_33 = arith.constant -1 : i32
    %105 = vector.broadcast %c-1_i32_33 : i32 to vector<1x512xi32>
    %106 = arith.addi %14, %105 : vector<1x512xi32>
    %c0_i32_34 = arith.constant 0 : i32
    %107 = vector.broadcast %c0_i32_34 : i32 to vector<1x512xi32>
    %108 = arith.cmpi sge, %106, %107 : vector<1x512xi32>
    %109 = arith.andi %104, %108 : vector<1x512xi1>
    %c-1_i32_35 = arith.constant -1 : i32
    %110 = vector.broadcast %c-1_i32_35 : i32 to vector<1x512xi32>
    %111 = arith.addi %14, %110 : vector<1x512xi32>
    %c16_i32_36 = arith.constant 16 : i32
    %112 = vector.broadcast %c16_i32_36 : i32 to vector<1x512xi32>
    %113 = arith.cmpi slt, %111, %112 : vector<1x512xi32>
    %114 = arith.andi %109, %113 : vector<1x512xi1>
    %115 = vector.extract_strided_slice %7 {offsets = [0, 511], sizes = [64, 1], strides = [1, 1]} : vector<64x512xf32> to vector<64x1xf32>
    %116 = vector.extract_strided_slice %7 {offsets = [0, 0], sizes = [64, 511], strides = [1, 1]} : vector<64x512xf32> to vector<64x511xf32>
    %117 = tpu.concatenate %115, %116 in 1 : vector<64x1xf32>, vector<64x511xf32> -> vector<64x512xf32>
    %cst_37 = arith.constant 0.000000e+00 : f32
    %118 = vector.shape_cast %114 : vector<1x512xi1> to vector<1x512xi1>
    %119 = vector.broadcast %118 : vector<1x512xi1> to vector<64x512xi1>
    %120 = vector.broadcast %cst_37 : f32 to vector<64x512xf32>
    %121 = arith.select %119, %117, %120 : vector<64x512xi1>, vector<64x512xf32>
    %122 = arith.maximumf %95, %121 : vector<64x512xf32>
    %c0_i32_38 = arith.constant 0 : i32
    %123 = vector.broadcast %c0_i32_38 : i32 to vector<1x512xi32>
    %124 = arith.addi %12, %123 : vector<1x512xi32>
    %c0_i32_39 = arith.constant 0 : i32
    %125 = vector.broadcast %c0_i32_39 : i32 to vector<1x512xi32>
    %126 = arith.cmpi sge, %124, %125 : vector<1x512xi32>
    %c0_i32_40 = arith.constant 0 : i32
    %127 = vector.broadcast %c0_i32_40 : i32 to vector<1x512xi32>
    %128 = arith.addi %12, %127 : vector<1x512xi32>
    %c16_i32_41 = arith.constant 16 : i32
    %129 = vector.broadcast %c16_i32_41 : i32 to vector<1x512xi32>
    %130 = arith.cmpi slt, %128, %129 : vector<1x512xi32>
    %131 = arith.andi %126, %130 : vector<1x512xi1>
    %c1_i32_42 = arith.constant 1 : i32
    %132 = vector.broadcast %c1_i32_42 : i32 to vector<1x512xi32>
    %133 = arith.addi %14, %132 : vector<1x512xi32>
    %c0_i32_43 = arith.constant 0 : i32
    %134 = vector.broadcast %c0_i32_43 : i32 to vector<1x512xi32>
    %135 = arith.cmpi sge, %133, %134 : vector<1x512xi32>
    %136 = arith.andi %131, %135 : vector<1x512xi1>
    %c1_i32_44 = arith.constant 1 : i32
    %137 = vector.broadcast %c1_i32_44 : i32 to vector<1x512xi32>
    %138 = arith.addi %14, %137 : vector<1x512xi32>
    %c16_i32_45 = arith.constant 16 : i32
    %139 = vector.broadcast %c16_i32_45 : i32 to vector<1x512xi32>
    %140 = arith.cmpi slt, %138, %139 : vector<1x512xi32>
    %141 = arith.andi %136, %140 : vector<1x512xi1>
    %142 = vector.extract_strided_slice %7 {offsets = [0, 1], sizes = [64, 511], strides = [1, 1]} : vector<64x512xf32> to vector<64x511xf32>
    %143 = vector.extract_strided_slice %7 {offsets = [0, 0], sizes = [64, 1], strides = [1, 1]} : vector<64x512xf32> to vector<64x1xf32>
    %144 = tpu.concatenate %142, %143 in 1 : vector<64x511xf32>, vector<64x1xf32> -> vector<64x512xf32>
    %cst_46 = arith.constant 0.000000e+00 : f32
    %145 = vector.shape_cast %141 : vector<1x512xi1> to vector<1x512xi1>
    %146 = vector.broadcast %145 : vector<1x512xi1> to vector<64x512xi1>
    %147 = vector.broadcast %cst_46 : f32 to vector<64x512xf32>
    %148 = arith.select %146, %144, %147 : vector<64x512xi1>, vector<64x512xf32>
    %149 = arith.maximumf %122, %148 : vector<64x512xf32>
    %c1_i32_47 = arith.constant 1 : i32
    %150 = vector.broadcast %c1_i32_47 : i32 to vector<1x512xi32>
    %151 = arith.addi %12, %150 : vector<1x512xi32>
    %c0_i32_48 = arith.constant 0 : i32
    %152 = vector.broadcast %c0_i32_48 : i32 to vector<1x512xi32>
    %153 = arith.cmpi sge, %151, %152 : vector<1x512xi32>
    %c1_i32_49 = arith.constant 1 : i32
    %154 = vector.broadcast %c1_i32_49 : i32 to vector<1x512xi32>
    %155 = arith.addi %12, %154 : vector<1x512xi32>
    %c16_i32_50 = arith.constant 16 : i32
    %156 = vector.broadcast %c16_i32_50 : i32 to vector<1x512xi32>
    %157 = arith.cmpi slt, %155, %156 : vector<1x512xi32>
    %158 = arith.andi %153, %157 : vector<1x512xi1>
    %c-1_i32_51 = arith.constant -1 : i32
    %159 = vector.broadcast %c-1_i32_51 : i32 to vector<1x512xi32>
    %160 = arith.addi %14, %159 : vector<1x512xi32>
    %c0_i32_52 = arith.constant 0 : i32
    %161 = vector.broadcast %c0_i32_52 : i32 to vector<1x512xi32>
    %162 = arith.cmpi sge, %160, %161 : vector<1x512xi32>
    %163 = arith.andi %158, %162 : vector<1x512xi1>
    %c-1_i32_53 = arith.constant -1 : i32
    %164 = vector.broadcast %c-1_i32_53 : i32 to vector<1x512xi32>
    %165 = arith.addi %14, %164 : vector<1x512xi32>
    %c16_i32_54 = arith.constant 16 : i32
    %166 = vector.broadcast %c16_i32_54 : i32 to vector<1x512xi32>
    %167 = arith.cmpi slt, %165, %166 : vector<1x512xi32>
    %168 = arith.andi %163, %167 : vector<1x512xi1>
    %169 = vector.extract_strided_slice %7 {offsets = [0, 15], sizes = [64, 497], strides = [1, 1]} : vector<64x512xf32> to vector<64x497xf32>
    %170 = vector.extract_strided_slice %7 {offsets = [0, 0], sizes = [64, 15], strides = [1, 1]} : vector<64x512xf32> to vector<64x15xf32>
    %171 = tpu.concatenate %169, %170 in 1 : vector<64x497xf32>, vector<64x15xf32> -> vector<64x512xf32>
    %cst_55 = arith.constant 0.000000e+00 : f32
    %172 = vector.shape_cast %168 : vector<1x512xi1> to vector<1x512xi1>
    %173 = vector.broadcast %172 : vector<1x512xi1> to vector<64x512xi1>
    %174 = vector.broadcast %cst_55 : f32 to vector<64x512xf32>
    %175 = arith.select %173, %171, %174 : vector<64x512xi1>, vector<64x512xf32>
    %176 = arith.maximumf %149, %175 : vector<64x512xf32>
    %c1_i32_56 = arith.constant 1 : i32
    %177 = vector.broadcast %c1_i32_56 : i32 to vector<1x512xi32>
    %178 = arith.addi %12, %177 : vector<1x512xi32>
    %c0_i32_57 = arith.constant 0 : i32
    %179 = vector.broadcast %c0_i32_57 : i32 to vector<1x512xi32>
    %180 = arith.cmpi sge, %178, %179 : vector<1x512xi32>
    %c1_i32_58 = arith.constant 1 : i32
    %181 = vector.broadcast %c1_i32_58 : i32 to vector<1x512xi32>
    %182 = arith.addi %12, %181 : vector<1x512xi32>
    %c16_i32_59 = arith.constant 16 : i32
    %183 = vector.broadcast %c16_i32_59 : i32 to vector<1x512xi32>
    %184 = arith.cmpi slt, %182, %183 : vector<1x512xi32>
    %185 = arith.andi %180, %184 : vector<1x512xi1>
    %c0_i32_60 = arith.constant 0 : i32
    %186 = vector.broadcast %c0_i32_60 : i32 to vector<1x512xi32>
    %187 = arith.addi %14, %186 : vector<1x512xi32>
    %c0_i32_61 = arith.constant 0 : i32
    %188 = vector.broadcast %c0_i32_61 : i32 to vector<1x512xi32>
    %189 = arith.cmpi sge, %187, %188 : vector<1x512xi32>
    %190 = arith.andi %185, %189 : vector<1x512xi1>
    %c0_i32_62 = arith.constant 0 : i32
    %191 = vector.broadcast %c0_i32_62 : i32 to vector<1x512xi32>
    %192 = arith.addi %14, %191 : vector<1x512xi32>
    %c16_i32_63 = arith.constant 16 : i32
    %193 = vector.broadcast %c16_i32_63 : i32 to vector<1x512xi32>
    %194 = arith.cmpi slt, %192, %193 : vector<1x512xi32>
    %195 = arith.andi %190, %194 : vector<1x512xi1>
    %196 = vector.extract_strided_slice %7 {offsets = [0, 16], sizes = [64, 496], strides = [1, 1]} : vector<64x512xf32> to vector<64x496xf32>
    %197 = vector.extract_strided_slice %7 {offsets = [0, 0], sizes = [64, 16], strides = [1, 1]} : vector<64x512xf32> to vector<64x16xf32>
    %198 = tpu.concatenate %196, %197 in 1 : vector<64x496xf32>, vector<64x16xf32> -> vector<64x512xf32>
    %cst_64 = arith.constant 0.000000e+00 : f32
    %199 = vector.shape_cast %195 : vector<1x512xi1> to vector<1x512xi1>
    %200 = vector.broadcast %199 : vector<1x512xi1> to vector<64x512xi1>
    %201 = vector.broadcast %cst_64 : f32 to vector<64x512xf32>
    %202 = arith.select %200, %198, %201 : vector<64x512xi1>, vector<64x512xf32>
    %203 = arith.maximumf %176, %202 : vector<64x512xf32>
    %c1_i32_65 = arith.constant 1 : i32
    %204 = vector.broadcast %c1_i32_65 : i32 to vector<1x512xi32>
    %205 = arith.addi %12, %204 : vector<1x512xi32>
    %c0_i32_66 = arith.constant 0 : i32
    %206 = vector.broadcast %c0_i32_66 : i32 to vector<1x512xi32>
    %207 = arith.cmpi sge, %205, %206 : vector<1x512xi32>
    %c1_i32_67 = arith.constant 1 : i32
    %208 = vector.broadcast %c1_i32_67 : i32 to vector<1x512xi32>
    %209 = arith.addi %12, %208 : vector<1x512xi32>
    %c16_i32_68 = arith.constant 16 : i32
    %210 = vector.broadcast %c16_i32_68 : i32 to vector<1x512xi32>
    %211 = arith.cmpi slt, %209, %210 : vector<1x512xi32>
    %212 = arith.andi %207, %211 : vector<1x512xi1>
    %c1_i32_69 = arith.constant 1 : i32
    %213 = vector.broadcast %c1_i32_69 : i32 to vector<1x512xi32>
    %214 = arith.addi %14, %213 : vector<1x512xi32>
    %c0_i32_70 = arith.constant 0 : i32
    %215 = vector.broadcast %c0_i32_70 : i32 to vector<1x512xi32>
    %216 = arith.cmpi sge, %214, %215 : vector<1x512xi32>
    %217 = arith.andi %212, %216 : vector<1x512xi1>
    %c1_i32_71 = arith.constant 1 : i32
    %218 = vector.broadcast %c1_i32_71 : i32 to vector<1x512xi32>
    %219 = arith.addi %14, %218 : vector<1x512xi32>
    %c16_i32_72 = arith.constant 16 : i32
    %220 = vector.broadcast %c16_i32_72 : i32 to vector<1x512xi32>
    %221 = arith.cmpi slt, %219, %220 : vector<1x512xi32>
    %222 = arith.andi %217, %221 : vector<1x512xi1>
    %223 = vector.extract_strided_slice %7 {offsets = [0, 17], sizes = [64, 495], strides = [1, 1]} : vector<64x512xf32> to vector<64x495xf32>
    %224 = vector.extract_strided_slice %7 {offsets = [0, 0], sizes = [64, 17], strides = [1, 1]} : vector<64x512xf32> to vector<64x17xf32>
    %225 = tpu.concatenate %223, %224 in 1 : vector<64x495xf32>, vector<64x17xf32> -> vector<64x512xf32>
    %cst_73 = arith.constant 0.000000e+00 : f32
    %226 = vector.shape_cast %222 : vector<1x512xi1> to vector<1x512xi1>
    %227 = vector.broadcast %226 : vector<1x512xi1> to vector<64x512xi1>
    %228 = vector.broadcast %cst_73 : f32 to vector<64x512xf32>
    %229 = arith.select %227, %225, %228 : vector<64x512xi1>, vector<64x512xf32>
    %230 = arith.maximumf %203, %229 : vector<64x512xf32>
    %231 = arith.truncf %230 : vector<64x512xf32> to vector<64x512xbf16>
    %c0_74 = arith.constant 0 : index
    %c0_75 = arith.constant 0 : index
    %232 = vector.load %arg3[%c0_74, %c0_75] : memref<512x128xbf16, #tpu.memory_space<vmem>>, vector<512x128xbf16>
    %cst_76 = arith.constant dense<0.000000e+00> : vector<64x128xf32>
    %233 = tpu.matmul %231, %232, %cst_76 {dimension_numbers = #tpu.dot_dimension_numbers<[1], [0], [0], [1], [0, 0, 1, 1], [], []>} : vector<64x512xbf16>, vector<512x128xbf16>, vector<64x128xf32> -> vector<64x128xf32>
    %234 = tpu.iota {dimensions = array<i32: 1>} : vector<1x128xi32>
    %c63_i32 = arith.constant 63 : i32
    %235 = vector.broadcast %c63_i32 : i32 to vector<1x128xi32>
    %236 = arith.andi %234, %235 : vector<1x128xi32>
    %c3_i32 = arith.constant 3 : i32
    %237 = vector.broadcast %c3_i32 : i32 to vector<1x128xi32>
    %238 = arith.shrsi %236, %237 : vector<1x128xi32>
    %c7_i32 = arith.constant 7 : i32
    %239 = vector.broadcast %c7_i32 : i32 to vector<1x128xi32>
    %240 = arith.andi %234, %239 : vector<1x128xi32>
    %c-1_i32_77 = arith.constant -1 : i32
    %241 = vector.broadcast %c-1_i32_77 : i32 to vector<1x128xi32>
    %242 = arith.addi %238, %241 : vector<1x128xi32>
    %c0_i32_78 = arith.constant 0 : i32
    %243 = vector.broadcast %c0_i32_78 : i32 to vector<1x128xi32>
    %244 = arith.cmpi sge, %242, %243 : vector<1x128xi32>
    %c-1_i32_79 = arith.constant -1 : i32
    %245 = vector.broadcast %c-1_i32_79 : i32 to vector<1x128xi32>
    %246 = arith.addi %238, %245 : vector<1x128xi32>
    %c8_i32 = arith.constant 8 : i32
    %247 = vector.broadcast %c8_i32 : i32 to vector<1x128xi32>
    %248 = arith.cmpi slt, %246, %247 : vector<1x128xi32>
    %249 = arith.andi %244, %248 : vector<1x128xi1>
    %c-1_i32_80 = arith.constant -1 : i32
    %250 = vector.broadcast %c-1_i32_80 : i32 to vector<1x128xi32>
    %251 = arith.addi %240, %250 : vector<1x128xi32>
    %c0_i32_81 = arith.constant 0 : i32
    %252 = vector.broadcast %c0_i32_81 : i32 to vector<1x128xi32>
    %253 = arith.cmpi sge, %251, %252 : vector<1x128xi32>
    %254 = arith.andi %249, %253 : vector<1x128xi1>
    %c-1_i32_82 = arith.constant -1 : i32
    %255 = vector.broadcast %c-1_i32_82 : i32 to vector<1x128xi32>
    %256 = arith.addi %240, %255 : vector<1x128xi32>
    %c8_i32_83 = arith.constant 8 : i32
    %257 = vector.broadcast %c8_i32_83 : i32 to vector<1x128xi32>
    %258 = arith.cmpi slt, %256, %257 : vector<1x128xi32>
    %259 = arith.andi %254, %258 : vector<1x128xi1>
    %c-1_i32_84 = arith.constant -1 : i32
    %260 = vector.broadcast %c-1_i32_84 : i32 to vector<1x128xi32>
    %261 = arith.addi %238, %260 : vector<1x128xi32>
    %c0_i32_85 = arith.constant 0 : i32
    %262 = vector.broadcast %c0_i32_85 : i32 to vector<1x128xi32>
    %263 = arith.cmpi sge, %261, %262 : vector<1x128xi32>
    %c-1_i32_86 = arith.constant -1 : i32
    %264 = vector.broadcast %c-1_i32_86 : i32 to vector<1x128xi32>
    %265 = arith.addi %238, %264 : vector<1x128xi32>
    %c8_i32_87 = arith.constant 8 : i32
    %266 = vector.broadcast %c8_i32_87 : i32 to vector<1x128xi32>
    %267 = arith.cmpi slt, %265, %266 : vector<1x128xi32>
    %268 = arith.andi %263, %267 : vector<1x128xi1>
    %c0_i32_88 = arith.constant 0 : i32
    %269 = vector.broadcast %c0_i32_88 : i32 to vector<1x128xi32>
    %270 = arith.addi %240, %269 : vector<1x128xi32>
    %c0_i32_89 = arith.constant 0 : i32
    %271 = vector.broadcast %c0_i32_89 : i32 to vector<1x128xi32>
    %272 = arith.cmpi sge, %270, %271 : vector<1x128xi32>
    %273 = arith.andi %268, %272 : vector<1x128xi1>
    %c0_i32_90 = arith.constant 0 : i32
    %274 = vector.broadcast %c0_i32_90 : i32 to vector<1x128xi32>
    %275 = arith.addi %240, %274 : vector<1x128xi32>
    %c8_i32_91 = arith.constant 8 : i32
    %276 = vector.broadcast %c8_i32_91 : i32 to vector<1x128xi32>
    %277 = arith.cmpi slt, %275, %276 : vector<1x128xi32>
    %278 = arith.andi %273, %277 : vector<1x128xi1>
    %c-1_i32_92 = arith.constant -1 : i32
    %279 = vector.broadcast %c-1_i32_92 : i32 to vector<1x128xi32>
    %280 = arith.addi %238, %279 : vector<1x128xi32>
    %c0_i32_93 = arith.constant 0 : i32
    %281 = vector.broadcast %c0_i32_93 : i32 to vector<1x128xi32>
    %282 = arith.cmpi sge, %280, %281 : vector<1x128xi32>
    %c-1_i32_94 = arith.constant -1 : i32
    %283 = vector.broadcast %c-1_i32_94 : i32 to vector<1x128xi32>
    %284 = arith.addi %238, %283 : vector<1x128xi32>
    %c8_i32_95 = arith.constant 8 : i32
    %285 = vector.broadcast %c8_i32_95 : i32 to vector<1x128xi32>
    %286 = arith.cmpi slt, %284, %285 : vector<1x128xi32>
    %287 = arith.andi %282, %286 : vector<1x128xi1>
    %c1_i32_96 = arith.constant 1 : i32
    %288 = vector.broadcast %c1_i32_96 : i32 to vector<1x128xi32>
    %289 = arith.addi %240, %288 : vector<1x128xi32>
    %c0_i32_97 = arith.constant 0 : i32
    %290 = vector.broadcast %c0_i32_97 : i32 to vector<1x128xi32>
    %291 = arith.cmpi sge, %289, %290 : vector<1x128xi32>
    %292 = arith.andi %287, %291 : vector<1x128xi1>
    %c1_i32_98 = arith.constant 1 : i32
    %293 = vector.broadcast %c1_i32_98 : i32 to vector<1x128xi32>
    %294 = arith.addi %240, %293 : vector<1x128xi32>
    %c8_i32_99 = arith.constant 8 : i32
    %295 = vector.broadcast %c8_i32_99 : i32 to vector<1x128xi32>
    %296 = arith.cmpi slt, %294, %295 : vector<1x128xi32>
    %297 = arith.andi %292, %296 : vector<1x128xi1>
    %c0_i32_100 = arith.constant 0 : i32
    %298 = vector.broadcast %c0_i32_100 : i32 to vector<1x128xi32>
    %299 = arith.addi %238, %298 : vector<1x128xi32>
    %c0_i32_101 = arith.constant 0 : i32
    %300 = vector.broadcast %c0_i32_101 : i32 to vector<1x128xi32>
    %301 = arith.cmpi sge, %299, %300 : vector<1x128xi32>
    %c0_i32_102 = arith.constant 0 : i32
    %302 = vector.broadcast %c0_i32_102 : i32 to vector<1x128xi32>
    %303 = arith.addi %238, %302 : vector<1x128xi32>
    %c8_i32_103 = arith.constant 8 : i32
    %304 = vector.broadcast %c8_i32_103 : i32 to vector<1x128xi32>
    %305 = arith.cmpi slt, %303, %304 : vector<1x128xi32>
    %306 = arith.andi %301, %305 : vector<1x128xi1>
    %c-1_i32_104 = arith.constant -1 : i32
    %307 = vector.broadcast %c-1_i32_104 : i32 to vector<1x128xi32>
    %308 = arith.addi %240, %307 : vector<1x128xi32>
    %c0_i32_105 = arith.constant 0 : i32
    %309 = vector.broadcast %c0_i32_105 : i32 to vector<1x128xi32>
    %310 = arith.cmpi sge, %308, %309 : vector<1x128xi32>
    %311 = arith.andi %306, %310 : vector<1x128xi1>
    %c-1_i32_106 = arith.constant -1 : i32
    %312 = vector.broadcast %c-1_i32_106 : i32 to vector<1x128xi32>
    %313 = arith.addi %240, %312 : vector<1x128xi32>
    %c8_i32_107 = arith.constant 8 : i32
    %314 = vector.broadcast %c8_i32_107 : i32 to vector<1x128xi32>
    %315 = arith.cmpi slt, %313, %314 : vector<1x128xi32>
    %316 = arith.andi %311, %315 : vector<1x128xi1>
    %c0_i32_108 = arith.constant 0 : i32
    %317 = vector.broadcast %c0_i32_108 : i32 to vector<1x128xi32>
    %318 = arith.addi %238, %317 : vector<1x128xi32>
    %c0_i32_109 = arith.constant 0 : i32
    %319 = vector.broadcast %c0_i32_109 : i32 to vector<1x128xi32>
    %320 = arith.cmpi sge, %318, %319 : vector<1x128xi32>
    %c0_i32_110 = arith.constant 0 : i32
    %321 = vector.broadcast %c0_i32_110 : i32 to vector<1x128xi32>
    %322 = arith.addi %238, %321 : vector<1x128xi32>
    %c8_i32_111 = arith.constant 8 : i32
    %323 = vector.broadcast %c8_i32_111 : i32 to vector<1x128xi32>
    %324 = arith.cmpi slt, %322, %323 : vector<1x128xi32>
    %325 = arith.andi %320, %324 : vector<1x128xi1>
    %c0_i32_112 = arith.constant 0 : i32
    %326 = vector.broadcast %c0_i32_112 : i32 to vector<1x128xi32>
    %327 = arith.addi %240, %326 : vector<1x128xi32>
    %c0_i32_113 = arith.constant 0 : i32
    %328 = vector.broadcast %c0_i32_113 : i32 to vector<1x128xi32>
    %329 = arith.cmpi sge, %327, %328 : vector<1x128xi32>
    %330 = arith.andi %325, %329 : vector<1x128xi1>
    %c0_i32_114 = arith.constant 0 : i32
    %331 = vector.broadcast %c0_i32_114 : i32 to vector<1x128xi32>
    %332 = arith.addi %240, %331 : vector<1x128xi32>
    %c8_i32_115 = arith.constant 8 : i32
    %333 = vector.broadcast %c8_i32_115 : i32 to vector<1x128xi32>
    %334 = arith.cmpi slt, %332, %333 : vector<1x128xi32>
    %335 = arith.andi %330, %334 : vector<1x128xi1>
    %c0_i32_116 = arith.constant 0 : i32
    %336 = vector.broadcast %c0_i32_116 : i32 to vector<1x128xi32>
    %337 = arith.addi %238, %336 : vector<1x128xi32>
    %c0_i32_117 = arith.constant 0 : i32
    %338 = vector.broadcast %c0_i32_117 : i32 to vector<1x128xi32>
    %339 = arith.cmpi sge, %337, %338 : vector<1x128xi32>
    %c0_i32_118 = arith.constant 0 : i32
    %340 = vector.broadcast %c0_i32_118 : i32 to vector<1x128xi32>
    %341 = arith.addi %238, %340 : vector<1x128xi32>
    %c8_i32_119 = arith.constant 8 : i32
    %342 = vector.broadcast %c8_i32_119 : i32 to vector<1x128xi32>
    %343 = arith.cmpi slt, %341, %342 : vector<1x128xi32>
    %344 = arith.andi %339, %343 : vector<1x128xi1>
    %c1_i32_120 = arith.constant 1 : i32
    %345 = vector.broadcast %c1_i32_120 : i32 to vector<1x128xi32>
    %346 = arith.addi %240, %345 : vector<1x128xi32>
    %c0_i32_121 = arith.constant 0 : i32
    %347 = vector.broadcast %c0_i32_121 : i32 to vector<1x128xi32>
    %348 = arith.cmpi sge, %346, %347 : vector<1x128xi32>
    %349 = arith.andi %344, %348 : vector<1x128xi1>
    %c1_i32_122 = arith.constant 1 : i32
    %350 = vector.broadcast %c1_i32_122 : i32 to vector<1x128xi32>
    %351 = arith.addi %240, %350 : vector<1x128xi32>
    %c8_i32_123 = arith.constant 8 : i32
    %352 = vector.broadcast %c8_i32_123 : i32 to vector<1x128xi32>
    %353 = arith.cmpi slt, %351, %352 : vector<1x128xi32>
    %354 = arith.andi %349, %353 : vector<1x128xi1>
    %c1_i32_124 = arith.constant 1 : i32
    %355 = vector.broadcast %c1_i32_124 : i32 to vector<1x128xi32>
    %356 = arith.addi %238, %355 : vector<1x128xi32>
    %c0_i32_125 = arith.constant 0 : i32
    %357 = vector.broadcast %c0_i32_125 : i32 to vector<1x128xi32>
    %358 = arith.cmpi sge, %356, %357 : vector<1x128xi32>
    %c1_i32_126 = arith.constant 1 : i32
    %359 = vector.broadcast %c1_i32_126 : i32 to vector<1x128xi32>
    %360 = arith.addi %238, %359 : vector<1x128xi32>
    %c8_i32_127 = arith.constant 8 : i32
    %361 = vector.broadcast %c8_i32_127 : i32 to vector<1x128xi32>
    %362 = arith.cmpi slt, %360, %361 : vector<1x128xi32>
    %363 = arith.andi %358, %362 : vector<1x128xi1>
    %c-1_i32_128 = arith.constant -1 : i32
    %364 = vector.broadcast %c-1_i32_128 : i32 to vector<1x128xi32>
    %365 = arith.addi %240, %364 : vector<1x128xi32>
    %c0_i32_129 = arith.constant 0 : i32
    %366 = vector.broadcast %c0_i32_129 : i32 to vector<1x128xi32>
    %367 = arith.cmpi sge, %365, %366 : vector<1x128xi32>
    %368 = arith.andi %363, %367 : vector<1x128xi1>
    %c-1_i32_130 = arith.constant -1 : i32
    %369 = vector.broadcast %c-1_i32_130 : i32 to vector<1x128xi32>
    %370 = arith.addi %240, %369 : vector<1x128xi32>
    %c8_i32_131 = arith.constant 8 : i32
    %371 = vector.broadcast %c8_i32_131 : i32 to vector<1x128xi32>
    %372 = arith.cmpi slt, %370, %371 : vector<1x128xi32>
    %373 = arith.andi %368, %372 : vector<1x128xi1>
    %c1_i32_132 = arith.constant 1 : i32
    %374 = vector.broadcast %c1_i32_132 : i32 to vector<1x128xi32>
    %375 = arith.addi %238, %374 : vector<1x128xi32>
    %c0_i32_133 = arith.constant 0 : i32
    %376 = vector.broadcast %c0_i32_133 : i32 to vector<1x128xi32>
    %377 = arith.cmpi sge, %375, %376 : vector<1x128xi32>
    %c1_i32_134 = arith.constant 1 : i32
    %378 = vector.broadcast %c1_i32_134 : i32 to vector<1x128xi32>
    %379 = arith.addi %238, %378 : vector<1x128xi32>
    %c8_i32_135 = arith.constant 8 : i32
    %380 = vector.broadcast %c8_i32_135 : i32 to vector<1x128xi32>
    %381 = arith.cmpi slt, %379, %380 : vector<1x128xi32>
    %382 = arith.andi %377, %381 : vector<1x128xi1>
    %c0_i32_136 = arith.constant 0 : i32
    %383 = vector.broadcast %c0_i32_136 : i32 to vector<1x128xi32>
    %384 = arith.addi %240, %383 : vector<1x128xi32>
    %c0_i32_137 = arith.constant 0 : i32
    %385 = vector.broadcast %c0_i32_137 : i32 to vector<1x128xi32>
    %386 = arith.cmpi sge, %384, %385 : vector<1x128xi32>
    %387 = arith.andi %382, %386 : vector<1x128xi1>
    %c0_i32_138 = arith.constant 0 : i32
    %388 = vector.broadcast %c0_i32_138 : i32 to vector<1x128xi32>
    %389 = arith.addi %240, %388 : vector<1x128xi32>
    %c8_i32_139 = arith.constant 8 : i32
    %390 = vector.broadcast %c8_i32_139 : i32 to vector<1x128xi32>
    %391 = arith.cmpi slt, %389, %390 : vector<1x128xi32>
    %392 = arith.andi %387, %391 : vector<1x128xi1>
    %c1_i32_140 = arith.constant 1 : i32
    %393 = vector.broadcast %c1_i32_140 : i32 to vector<1x128xi32>
    %394 = arith.addi %238, %393 : vector<1x128xi32>
    %c0_i32_141 = arith.constant 0 : i32
    %395 = vector.broadcast %c0_i32_141 : i32 to vector<1x128xi32>
    %396 = arith.cmpi sge, %394, %395 : vector<1x128xi32>
    %c1_i32_142 = arith.constant 1 : i32
    %397 = vector.broadcast %c1_i32_142 : i32 to vector<1x128xi32>
    %398 = arith.addi %238, %397 : vector<1x128xi32>
    %c8_i32_143 = arith.constant 8 : i32
    %399 = vector.broadcast %c8_i32_143 : i32 to vector<1x128xi32>
    %400 = arith.cmpi slt, %398, %399 : vector<1x128xi32>
    %401 = arith.andi %396, %400 : vector<1x128xi1>
    %c1_i32_144 = arith.constant 1 : i32
    %402 = vector.broadcast %c1_i32_144 : i32 to vector<1x128xi32>
    %403 = arith.addi %240, %402 : vector<1x128xi32>
    %c0_i32_145 = arith.constant 0 : i32
    %404 = vector.broadcast %c0_i32_145 : i32 to vector<1x128xi32>
    %405 = arith.cmpi sge, %403, %404 : vector<1x128xi32>
    %406 = arith.andi %401, %405 : vector<1x128xi1>
    %c1_i32_146 = arith.constant 1 : i32
    %407 = vector.broadcast %c1_i32_146 : i32 to vector<1x128xi32>
    %408 = arith.addi %240, %407 : vector<1x128xi32>
    %c8_i32_147 = arith.constant 8 : i32
    %409 = vector.broadcast %c8_i32_147 : i32 to vector<1x128xi32>
    %410 = arith.cmpi slt, %408, %409 : vector<1x128xi32>
    %411 = arith.andi %406, %410 : vector<1x128xi1>
    %412 = arith.truncf %233 : vector<64x128xf32> to vector<64x128xbf16>
    %413 = vector.extract_strided_slice %412 {offsets = [0, 119], sizes = [64, 9], strides = [1, 1]} : vector<64x128xbf16> to vector<64x9xbf16>
    %414 = vector.extract_strided_slice %412 {offsets = [0, 0], sizes = [64, 119], strides = [1, 1]} : vector<64x128xbf16> to vector<64x119xbf16>
    %415 = tpu.concatenate %413, %414 in 1 : vector<64x9xbf16>, vector<64x119xbf16> -> vector<64x128xbf16>
    %cst_148 = arith.constant 0.000000e+00 : f32
    %416 = arith.truncf %cst_148 : f32 to bf16
    %417 = vector.shape_cast %259 : vector<1x128xi1> to vector<1x128xi1>
    %418 = vector.broadcast %417 : vector<1x128xi1> to vector<64x128xi1>
    %419 = vector.broadcast %416 : bf16 to vector<64x128xbf16>
    %420 = arith.select %418, %415, %419 : vector<64x128xi1>, vector<64x128xbf16>
    %421 = vector.extract_strided_slice %412 {offsets = [0, 120], sizes = [64, 8], strides = [1, 1]} : vector<64x128xbf16> to vector<64x8xbf16>
    %422 = vector.extract_strided_slice %412 {offsets = [0, 0], sizes = [64, 120], strides = [1, 1]} : vector<64x128xbf16> to vector<64x120xbf16>
    %423 = tpu.concatenate %421, %422 in 1 : vector<64x8xbf16>, vector<64x120xbf16> -> vector<64x128xbf16>
    %cst_149 = arith.constant 0.000000e+00 : f32
    %424 = arith.truncf %cst_149 : f32 to bf16
    %425 = vector.shape_cast %278 : vector<1x128xi1> to vector<1x128xi1>
    %426 = vector.broadcast %425 : vector<1x128xi1> to vector<64x128xi1>
    %427 = vector.broadcast %424 : bf16 to vector<64x128xbf16>
    %428 = arith.select %426, %423, %427 : vector<64x128xi1>, vector<64x128xbf16>
    %429 = vector.extract_strided_slice %412 {offsets = [0, 121], sizes = [64, 7], strides = [1, 1]} : vector<64x128xbf16> to vector<64x7xbf16>
    %430 = vector.extract_strided_slice %412 {offsets = [0, 0], sizes = [64, 121], strides = [1, 1]} : vector<64x128xbf16> to vector<64x121xbf16>
    %431 = tpu.concatenate %429, %430 in 1 : vector<64x7xbf16>, vector<64x121xbf16> -> vector<64x128xbf16>
    %cst_150 = arith.constant 0.000000e+00 : f32
    %432 = arith.truncf %cst_150 : f32 to bf16
    %433 = vector.shape_cast %297 : vector<1x128xi1> to vector<1x128xi1>
    %434 = vector.broadcast %433 : vector<1x128xi1> to vector<64x128xi1>
    %435 = vector.broadcast %432 : bf16 to vector<64x128xbf16>
    %436 = arith.select %434, %431, %435 : vector<64x128xi1>, vector<64x128xbf16>
    %437 = vector.extract_strided_slice %412 {offsets = [0, 127], sizes = [64, 1], strides = [1, 1]} : vector<64x128xbf16> to vector<64x1xbf16>
    %438 = vector.extract_strided_slice %412 {offsets = [0, 0], sizes = [64, 127], strides = [1, 1]} : vector<64x128xbf16> to vector<64x127xbf16>
    %439 = tpu.concatenate %437, %438 in 1 : vector<64x1xbf16>, vector<64x127xbf16> -> vector<64x128xbf16>
    %cst_151 = arith.constant 0.000000e+00 : f32
    %440 = arith.truncf %cst_151 : f32 to bf16
    %441 = vector.shape_cast %316 : vector<1x128xi1> to vector<1x128xi1>
    %442 = vector.broadcast %441 : vector<1x128xi1> to vector<64x128xi1>
    %443 = vector.broadcast %440 : bf16 to vector<64x128xbf16>
    %444 = arith.select %442, %439, %443 : vector<64x128xi1>, vector<64x128xbf16>
    %cst_152 = arith.constant 0.000000e+00 : f32
    %445 = arith.truncf %cst_152 : f32 to bf16
    %446 = vector.shape_cast %335 : vector<1x128xi1> to vector<1x128xi1>
    %447 = vector.broadcast %446 : vector<1x128xi1> to vector<64x128xi1>
    %448 = vector.broadcast %445 : bf16 to vector<64x128xbf16>
    %449 = arith.select %447, %412, %448 : vector<64x128xi1>, vector<64x128xbf16>
    %450 = vector.extract_strided_slice %412 {offsets = [0, 1], sizes = [64, 127], strides = [1, 1]} : vector<64x128xbf16> to vector<64x127xbf16>
    %451 = vector.extract_strided_slice %412 {offsets = [0, 0], sizes = [64, 1], strides = [1, 1]} : vector<64x128xbf16> to vector<64x1xbf16>
    %452 = tpu.concatenate %450, %451 in 1 : vector<64x127xbf16>, vector<64x1xbf16> -> vector<64x128xbf16>
    %cst_153 = arith.constant 0.000000e+00 : f32
    %453 = arith.truncf %cst_153 : f32 to bf16
    %454 = vector.shape_cast %354 : vector<1x128xi1> to vector<1x128xi1>
    %455 = vector.broadcast %454 : vector<1x128xi1> to vector<64x128xi1>
    %456 = vector.broadcast %453 : bf16 to vector<64x128xbf16>
    %457 = arith.select %455, %452, %456 : vector<64x128xi1>, vector<64x128xbf16>
    %458 = vector.extract_strided_slice %412 {offsets = [0, 7], sizes = [64, 121], strides = [1, 1]} : vector<64x128xbf16> to vector<64x121xbf16>
    %459 = vector.extract_strided_slice %412 {offsets = [0, 0], sizes = [64, 7], strides = [1, 1]} : vector<64x128xbf16> to vector<64x7xbf16>
    %460 = tpu.concatenate %458, %459 in 1 : vector<64x121xbf16>, vector<64x7xbf16> -> vector<64x128xbf16>
    %cst_154 = arith.constant 0.000000e+00 : f32
    %461 = arith.truncf %cst_154 : f32 to bf16
    %462 = vector.shape_cast %373 : vector<1x128xi1> to vector<1x128xi1>
    %463 = vector.broadcast %462 : vector<1x128xi1> to vector<64x128xi1>
    %464 = vector.broadcast %461 : bf16 to vector<64x128xbf16>
    %465 = arith.select %463, %460, %464 : vector<64x128xi1>, vector<64x128xbf16>
    %466 = vector.extract_strided_slice %412 {offsets = [0, 8], sizes = [64, 120], strides = [1, 1]} : vector<64x128xbf16> to vector<64x120xbf16>
    %467 = vector.extract_strided_slice %412 {offsets = [0, 0], sizes = [64, 8], strides = [1, 1]} : vector<64x128xbf16> to vector<64x8xbf16>
    %468 = tpu.concatenate %466, %467 in 1 : vector<64x120xbf16>, vector<64x8xbf16> -> vector<64x128xbf16>
    %cst_155 = arith.constant 0.000000e+00 : f32
    %469 = arith.truncf %cst_155 : f32 to bf16
    %470 = vector.shape_cast %392 : vector<1x128xi1> to vector<1x128xi1>
    %471 = vector.broadcast %470 : vector<1x128xi1> to vector<64x128xi1>
    %472 = vector.broadcast %469 : bf16 to vector<64x128xbf16>
    %473 = arith.select %471, %468, %472 : vector<64x128xi1>, vector<64x128xbf16>
    %474 = vector.extract_strided_slice %412 {offsets = [0, 9], sizes = [64, 119], strides = [1, 1]} : vector<64x128xbf16> to vector<64x119xbf16>
    %475 = vector.extract_strided_slice %412 {offsets = [0, 0], sizes = [64, 9], strides = [1, 1]} : vector<64x128xbf16> to vector<64x9xbf16>
    %476 = tpu.concatenate %474, %475 in 1 : vector<64x119xbf16>, vector<64x9xbf16> -> vector<64x128xbf16>
    %cst_156 = arith.constant 0.000000e+00 : f32
    %477 = arith.truncf %cst_156 : f32 to bf16
    %478 = vector.shape_cast %411 : vector<1x128xi1> to vector<1x128xi1>
    %479 = vector.broadcast %478 : vector<1x128xi1> to vector<64x128xi1>
    %480 = vector.broadcast %477 : bf16 to vector<64x128xbf16>
    %481 = arith.select %479, %476, %480 : vector<64x128xi1>, vector<64x128xbf16>
    %482 = tpu.concatenate %420, %428, %436, %444, %449, %457, %465, %473, %481 in 0 : vector<64x128xbf16>, vector<64x128xbf16>, vector<64x128xbf16>, vector<64x128xbf16>, vector<64x128xbf16>, vector<64x128xbf16>, vector<64x128xbf16>, vector<64x128xbf16>, vector<64x128xbf16> -> vector<576x128xbf16>
    %c0_157 = arith.constant 0 : index
    %c0_158 = arith.constant 0 : index
    %483 = vector.load %arg4[%c0_157, %c0_158] : memref<64x576xbf16, #tpu.memory_space<vmem>>, vector<64x576xbf16>
    %cst_159 = arith.constant dense<0.000000e+00> : vector<64x128xf32>
    %484 = tpu.matmul %483, %482, %cst_159 {dimension_numbers = #tpu.dot_dimension_numbers<[1], [0], [0], [1], [0, 0, 1, 1], [], []>} : vector<64x576xbf16>, vector<576x128xbf16>, vector<64x128xf32> -> vector<64x128xf32>
    %c0_160 = arith.constant 0 : index
    %c0_161 = arith.constant 0 : index
    %485 = vector.load %arg5[%c0_160, %c0_161] : memref<64x1xf32, #tpu.memory_space<vmem>>, vector<64x1xf32>
    %486 = vector.broadcast %485 : vector<64x1xf32> to vector<64x128xf32>
    %487 = arith.addf %484, %486 : vector<64x128xf32>
    %cst_162 = arith.constant 0.000000e+00 : f32
    %488 = vector.broadcast %cst_162 : f32 to vector<64x128xf32>
    %489 = arith.maximumf %487, %488 : vector<64x128xf32>
    %490 = arith.truncf %489 : vector<64x128xf32> to vector<64x128xbf16>
    %491 = vector.extract_strided_slice %490 {offsets = [0, 119], sizes = [64, 9], strides = [1, 1]} : vector<64x128xbf16> to vector<64x9xbf16>
    %492 = vector.extract_strided_slice %490 {offsets = [0, 0], sizes = [64, 119], strides = [1, 1]} : vector<64x128xbf16> to vector<64x119xbf16>
    %493 = tpu.concatenate %491, %492 in 1 : vector<64x9xbf16>, vector<64x119xbf16> -> vector<64x128xbf16>
    %cst_163 = arith.constant 0.000000e+00 : f32
    %494 = arith.truncf %cst_163 : f32 to bf16
    %495 = vector.shape_cast %259 : vector<1x128xi1> to vector<1x128xi1>
    %496 = vector.broadcast %495 : vector<1x128xi1> to vector<64x128xi1>
    %497 = vector.broadcast %494 : bf16 to vector<64x128xbf16>
    %498 = arith.select %496, %493, %497 : vector<64x128xi1>, vector<64x128xbf16>
    %499 = vector.extract_strided_slice %490 {offsets = [0, 120], sizes = [64, 8], strides = [1, 1]} : vector<64x128xbf16> to vector<64x8xbf16>
    %500 = vector.extract_strided_slice %490 {offsets = [0, 0], sizes = [64, 120], strides = [1, 1]} : vector<64x128xbf16> to vector<64x120xbf16>
    %501 = tpu.concatenate %499, %500 in 1 : vector<64x8xbf16>, vector<64x120xbf16> -> vector<64x128xbf16>
    %cst_164 = arith.constant 0.000000e+00 : f32
    %502 = arith.truncf %cst_164 : f32 to bf16
    %503 = vector.shape_cast %278 : vector<1x128xi1> to vector<1x128xi1>
    %504 = vector.broadcast %503 : vector<1x128xi1> to vector<64x128xi1>
    %505 = vector.broadcast %502 : bf16 to vector<64x128xbf16>
    %506 = arith.select %504, %501, %505 : vector<64x128xi1>, vector<64x128xbf16>
    %507 = vector.extract_strided_slice %490 {offsets = [0, 121], sizes = [64, 7], strides = [1, 1]} : vector<64x128xbf16> to vector<64x7xbf16>
    %508 = vector.extract_strided_slice %490 {offsets = [0, 0], sizes = [64, 121], strides = [1, 1]} : vector<64x128xbf16> to vector<64x121xbf16>
    %509 = tpu.concatenate %507, %508 in 1 : vector<64x7xbf16>, vector<64x121xbf16> -> vector<64x128xbf16>
    %cst_165 = arith.constant 0.000000e+00 : f32
    %510 = arith.truncf %cst_165 : f32 to bf16
    %511 = vector.shape_cast %297 : vector<1x128xi1> to vector<1x128xi1>
    %512 = vector.broadcast %511 : vector<1x128xi1> to vector<64x128xi1>
    %513 = vector.broadcast %510 : bf16 to vector<64x128xbf16>
    %514 = arith.select %512, %509, %513 : vector<64x128xi1>, vector<64x128xbf16>
    %515 = vector.extract_strided_slice %490 {offsets = [0, 127], sizes = [64, 1], strides = [1, 1]} : vector<64x128xbf16> to vector<64x1xbf16>
    %516 = vector.extract_strided_slice %490 {offsets = [0, 0], sizes = [64, 127], strides = [1, 1]} : vector<64x128xbf16> to vector<64x127xbf16>
    %517 = tpu.concatenate %515, %516 in 1 : vector<64x1xbf16>, vector<64x127xbf16> -> vector<64x128xbf16>
    %cst_166 = arith.constant 0.000000e+00 : f32
    %518 = arith.truncf %cst_166 : f32 to bf16
    %519 = vector.shape_cast %316 : vector<1x128xi1> to vector<1x128xi1>
    %520 = vector.broadcast %519 : vector<1x128xi1> to vector<64x128xi1>
    %521 = vector.broadcast %518 : bf16 to vector<64x128xbf16>
    %522 = arith.select %520, %517, %521 : vector<64x128xi1>, vector<64x128xbf16>
    %cst_167 = arith.constant 0.000000e+00 : f32
    %523 = arith.truncf %cst_167 : f32 to bf16
    %524 = vector.shape_cast %335 : vector<1x128xi1> to vector<1x128xi1>
    %525 = vector.broadcast %524 : vector<1x128xi1> to vector<64x128xi1>
    %526 = vector.broadcast %523 : bf16 to vector<64x128xbf16>
    %527 = arith.select %525, %490, %526 : vector<64x128xi1>, vector<64x128xbf16>
    %528 = vector.extract_strided_slice %490 {offsets = [0, 1], sizes = [64, 127], strides = [1, 1]} : vector<64x128xbf16> to vector<64x127xbf16>
    %529 = vector.extract_strided_slice %490 {offsets = [0, 0], sizes = [64, 1], strides = [1, 1]} : vector<64x128xbf16> to vector<64x1xbf16>
    %530 = tpu.concatenate %528, %529 in 1 : vector<64x127xbf16>, vector<64x1xbf16> -> vector<64x128xbf16>
    %cst_168 = arith.constant 0.000000e+00 : f32
    %531 = arith.truncf %cst_168 : f32 to bf16
    %532 = vector.shape_cast %354 : vector<1x128xi1> to vector<1x128xi1>
    %533 = vector.broadcast %532 : vector<1x128xi1> to vector<64x128xi1>
    %534 = vector.broadcast %531 : bf16 to vector<64x128xbf16>
    %535 = arith.select %533, %530, %534 : vector<64x128xi1>, vector<64x128xbf16>
    %536 = vector.extract_strided_slice %490 {offsets = [0, 7], sizes = [64, 121], strides = [1, 1]} : vector<64x128xbf16> to vector<64x121xbf16>
    %537 = vector.extract_strided_slice %490 {offsets = [0, 0], sizes = [64, 7], strides = [1, 1]} : vector<64x128xbf16> to vector<64x7xbf16>
    %538 = tpu.concatenate %536, %537 in 1 : vector<64x121xbf16>, vector<64x7xbf16> -> vector<64x128xbf16>
    %cst_169 = arith.constant 0.000000e+00 : f32
    %539 = arith.truncf %cst_169 : f32 to bf16
    %540 = vector.shape_cast %373 : vector<1x128xi1> to vector<1x128xi1>
    %541 = vector.broadcast %540 : vector<1x128xi1> to vector<64x128xi1>
    %542 = vector.broadcast %539 : bf16 to vector<64x128xbf16>
    %543 = arith.select %541, %538, %542 : vector<64x128xi1>, vector<64x128xbf16>
    %544 = vector.extract_strided_slice %490 {offsets = [0, 8], sizes = [64, 120], strides = [1, 1]} : vector<64x128xbf16> to vector<64x120xbf16>
    %545 = vector.extract_strided_slice %490 {offsets = [0, 0], sizes = [64, 8], strides = [1, 1]} : vector<64x128xbf16> to vector<64x8xbf16>
    %546 = tpu.concatenate %544, %545 in 1 : vector<64x120xbf16>, vector<64x8xbf16> -> vector<64x128xbf16>
    %cst_170 = arith.constant 0.000000e+00 : f32
    %547 = arith.truncf %cst_170 : f32 to bf16
    %548 = vector.shape_cast %392 : vector<1x128xi1> to vector<1x128xi1>
    %549 = vector.broadcast %548 : vector<1x128xi1> to vector<64x128xi1>
    %550 = vector.broadcast %547 : bf16 to vector<64x128xbf16>
    %551 = arith.select %549, %546, %550 : vector<64x128xi1>, vector<64x128xbf16>
    %552 = vector.extract_strided_slice %490 {offsets = [0, 9], sizes = [64, 119], strides = [1, 1]} : vector<64x128xbf16> to vector<64x119xbf16>
    %553 = vector.extract_strided_slice %490 {offsets = [0, 0], sizes = [64, 9], strides = [1, 1]} : vector<64x128xbf16> to vector<64x9xbf16>
    %554 = tpu.concatenate %552, %553 in 1 : vector<64x119xbf16>, vector<64x9xbf16> -> vector<64x128xbf16>
    %cst_171 = arith.constant 0.000000e+00 : f32
    %555 = arith.truncf %cst_171 : f32 to bf16
    %556 = vector.shape_cast %411 : vector<1x128xi1> to vector<1x128xi1>
    %557 = vector.broadcast %556 : vector<1x128xi1> to vector<64x128xi1>
    %558 = vector.broadcast %555 : bf16 to vector<64x128xbf16>
    %559 = arith.select %557, %554, %558 : vector<64x128xi1>, vector<64x128xbf16>
    %560 = tpu.concatenate %498, %506, %514, %522, %527, %535, %543, %551, %559 in 0 : vector<64x128xbf16>, vector<64x128xbf16>, vector<64x128xbf16>, vector<64x128xbf16>, vector<64x128xbf16>, vector<64x128xbf16>, vector<64x128xbf16>, vector<64x128xbf16>, vector<64x128xbf16> -> vector<576x128xbf16>
    %c0_172 = arith.constant 0 : index
    %c0_173 = arith.constant 0 : index
    %561 = vector.load %arg6[%c0_172, %c0_173] : memref<64x576xbf16, #tpu.memory_space<vmem>>, vector<64x576xbf16>
    %cst_174 = arith.constant dense<0.000000e+00> : vector<64x128xf32>
    %562 = tpu.matmul %561, %560, %cst_174 {dimension_numbers = #tpu.dot_dimension_numbers<[1], [0], [0], [1], [0, 0, 1, 1], [], []>} : vector<64x576xbf16>, vector<576x128xbf16>, vector<64x128xf32> -> vector<64x128xf32>
    %c0_175 = arith.constant 0 : index
    %c0_176 = arith.constant 0 : index
    %563 = vector.load %arg7[%c0_175, %c0_176] : memref<64x1xf32, #tpu.memory_space<vmem>>, vector<64x1xf32>
    %564 = vector.broadcast %563 : vector<64x1xf32> to vector<64x128xf32>
    %565 = arith.addf %562, %564 : vector<64x128xf32>
    %566 = arith.addf %565, %233 : vector<64x128xf32>
    %cst_177 = arith.constant 0.000000e+00 : f32
    %567 = vector.broadcast %cst_177 : f32 to vector<64x128xf32>
    %568 = arith.maximumf %566, %567 : vector<64x128xf32>
    %569 = arith.truncf %568 : vector<64x128xf32> to vector<64x128xbf16>
    %570 = vector.extract_strided_slice %569 {offsets = [0, 119], sizes = [64, 9], strides = [1, 1]} : vector<64x128xbf16> to vector<64x9xbf16>
    %571 = vector.extract_strided_slice %569 {offsets = [0, 0], sizes = [64, 119], strides = [1, 1]} : vector<64x128xbf16> to vector<64x119xbf16>
    %572 = tpu.concatenate %570, %571 in 1 : vector<64x9xbf16>, vector<64x119xbf16> -> vector<64x128xbf16>
    %cst_178 = arith.constant 0.000000e+00 : f32
    %573 = arith.truncf %cst_178 : f32 to bf16
    %574 = vector.shape_cast %259 : vector<1x128xi1> to vector<1x128xi1>
    %575 = vector.broadcast %574 : vector<1x128xi1> to vector<64x128xi1>
    %576 = vector.broadcast %573 : bf16 to vector<64x128xbf16>
    %577 = arith.select %575, %572, %576 : vector<64x128xi1>, vector<64x128xbf16>
    %578 = vector.extract_strided_slice %569 {offsets = [0, 120], sizes = [64, 8], strides = [1, 1]} : vector<64x128xbf16> to vector<64x8xbf16>
    %579 = vector.extract_strided_slice %569 {offsets = [0, 0], sizes = [64, 120], strides = [1, 1]} : vector<64x128xbf16> to vector<64x120xbf16>
    %580 = tpu.concatenate %578, %579 in 1 : vector<64x8xbf16>, vector<64x120xbf16> -> vector<64x128xbf16>
    %cst_179 = arith.constant 0.000000e+00 : f32
    %581 = arith.truncf %cst_179 : f32 to bf16
    %582 = vector.shape_cast %278 : vector<1x128xi1> to vector<1x128xi1>
    %583 = vector.broadcast %582 : vector<1x128xi1> to vector<64x128xi1>
    %584 = vector.broadcast %581 : bf16 to vector<64x128xbf16>
    %585 = arith.select %583, %580, %584 : vector<64x128xi1>, vector<64x128xbf16>
    %586 = vector.extract_strided_slice %569 {offsets = [0, 121], sizes = [64, 7], strides = [1, 1]} : vector<64x128xbf16> to vector<64x7xbf16>
    %587 = vector.extract_strided_slice %569 {offsets = [0, 0], sizes = [64, 121], strides = [1, 1]} : vector<64x128xbf16> to vector<64x121xbf16>
    %588 = tpu.concatenate %586, %587 in 1 : vector<64x7xbf16>, vector<64x121xbf16> -> vector<64x128xbf16>
    %cst_180 = arith.constant 0.000000e+00 : f32
    %589 = arith.truncf %cst_180 : f32 to bf16
    %590 = vector.shape_cast %297 : vector<1x128xi1> to vector<1x128xi1>
    %591 = vector.broadcast %590 : vector<1x128xi1> to vector<64x128xi1>
    %592 = vector.broadcast %589 : bf16 to vector<64x128xbf16>
    %593 = arith.select %591, %588, %592 : vector<64x128xi1>, vector<64x128xbf16>
    %594 = vector.extract_strided_slice %569 {offsets = [0, 127], sizes = [64, 1], strides = [1, 1]} : vector<64x128xbf16> to vector<64x1xbf16>
    %595 = vector.extract_strided_slice %569 {offsets = [0, 0], sizes = [64, 127], strides = [1, 1]} : vector<64x128xbf16> to vector<64x127xbf16>
    %596 = tpu.concatenate %594, %595 in 1 : vector<64x1xbf16>, vector<64x127xbf16> -> vector<64x128xbf16>
    %cst_181 = arith.constant 0.000000e+00 : f32
    %597 = arith.truncf %cst_181 : f32 to bf16
    %598 = vector.shape_cast %316 : vector<1x128xi1> to vector<1x128xi1>
    %599 = vector.broadcast %598 : vector<1x128xi1> to vector<64x128xi1>
    %600 = vector.broadcast %597 : bf16 to vector<64x128xbf16>
    %601 = arith.select %599, %596, %600 : vector<64x128xi1>, vector<64x128xbf16>
    %cst_182 = arith.constant 0.000000e+00 : f32
    %602 = arith.truncf %cst_182 : f32 to bf16
    %603 = vector.shape_cast %335 : vector<1x128xi1> to vector<1x128xi1>
    %604 = vector.broadcast %603 : vector<1x128xi1> to vector<64x128xi1>
    %605 = vector.broadcast %602 : bf16 to vector<64x128xbf16>
    %606 = arith.select %604, %569, %605 : vector<64x128xi1>, vector<64x128xbf16>
    %607 = vector.extract_strided_slice %569 {offsets = [0, 1], sizes = [64, 127], strides = [1, 1]} : vector<64x128xbf16> to vector<64x127xbf16>
    %608 = vector.extract_strided_slice %569 {offsets = [0, 0], sizes = [64, 1], strides = [1, 1]} : vector<64x128xbf16> to vector<64x1xbf16>
    %609 = tpu.concatenate %607, %608 in 1 : vector<64x127xbf16>, vector<64x1xbf16> -> vector<64x128xbf16>
    %cst_183 = arith.constant 0.000000e+00 : f32
    %610 = arith.truncf %cst_183 : f32 to bf16
    %611 = vector.shape_cast %354 : vector<1x128xi1> to vector<1x128xi1>
    %612 = vector.broadcast %611 : vector<1x128xi1> to vector<64x128xi1>
    %613 = vector.broadcast %610 : bf16 to vector<64x128xbf16>
    %614 = arith.select %612, %609, %613 : vector<64x128xi1>, vector<64x128xbf16>
    %615 = vector.extract_strided_slice %569 {offsets = [0, 7], sizes = [64, 121], strides = [1, 1]} : vector<64x128xbf16> to vector<64x121xbf16>
    %616 = vector.extract_strided_slice %569 {offsets = [0, 0], sizes = [64, 7], strides = [1, 1]} : vector<64x128xbf16> to vector<64x7xbf16>
    %617 = tpu.concatenate %615, %616 in 1 : vector<64x121xbf16>, vector<64x7xbf16> -> vector<64x128xbf16>
    %cst_184 = arith.constant 0.000000e+00 : f32
    %618 = arith.truncf %cst_184 : f32 to bf16
    %619 = vector.shape_cast %373 : vector<1x128xi1> to vector<1x128xi1>
    %620 = vector.broadcast %619 : vector<1x128xi1> to vector<64x128xi1>
    %621 = vector.broadcast %618 : bf16 to vector<64x128xbf16>
    %622 = arith.select %620, %617, %621 : vector<64x128xi1>, vector<64x128xbf16>
    %623 = vector.extract_strided_slice %569 {offsets = [0, 8], sizes = [64, 120], strides = [1, 1]} : vector<64x128xbf16> to vector<64x120xbf16>
    %624 = vector.extract_strided_slice %569 {offsets = [0, 0], sizes = [64, 8], strides = [1, 1]} : vector<64x128xbf16> to vector<64x8xbf16>
    %625 = tpu.concatenate %623, %624 in 1 : vector<64x120xbf16>, vector<64x8xbf16> -> vector<64x128xbf16>
    %cst_185 = arith.constant 0.000000e+00 : f32
    %626 = arith.truncf %cst_185 : f32 to bf16
    %627 = vector.shape_cast %392 : vector<1x128xi1> to vector<1x128xi1>
    %628 = vector.broadcast %627 : vector<1x128xi1> to vector<64x128xi1>
    %629 = vector.broadcast %626 : bf16 to vector<64x128xbf16>
    %630 = arith.select %628, %625, %629 : vector<64x128xi1>, vector<64x128xbf16>
    %631 = vector.extract_strided_slice %569 {offsets = [0, 9], sizes = [64, 119], strides = [1, 1]} : vector<64x128xbf16> to vector<64x119xbf16>
    %632 = vector.extract_strided_slice %569 {offsets = [0, 0], sizes = [64, 9], strides = [1, 1]} : vector<64x128xbf16> to vector<64x9xbf16>
    %633 = tpu.concatenate %631, %632 in 1 : vector<64x119xbf16>, vector<64x9xbf16> -> vector<64x128xbf16>
    %cst_186 = arith.constant 0.000000e+00 : f32
    %634 = arith.truncf %cst_186 : f32 to bf16
    %635 = vector.shape_cast %411 : vector<1x128xi1> to vector<1x128xi1>
    %636 = vector.broadcast %635 : vector<1x128xi1> to vector<64x128xi1>
    %637 = vector.broadcast %634 : bf16 to vector<64x128xbf16>
    %638 = arith.select %636, %633, %637 : vector<64x128xi1>, vector<64x128xbf16>
    %639 = tpu.concatenate %577, %585, %593, %601, %606, %614, %622, %630, %638 in 0 : vector<64x128xbf16>, vector<64x128xbf16>, vector<64x128xbf16>, vector<64x128xbf16>, vector<64x128xbf16>, vector<64x128xbf16>, vector<64x128xbf16>, vector<64x128xbf16>, vector<64x128xbf16> -> vector<576x128xbf16>
    %c0_187 = arith.constant 0 : index
    %c0_188 = arith.constant 0 : index
    %640 = vector.load %arg8[%c0_187, %c0_188] : memref<64x576xbf16, #tpu.memory_space<vmem>>, vector<64x576xbf16>
    %cst_189 = arith.constant dense<0.000000e+00> : vector<64x128xf32>
    %641 = tpu.matmul %640, %639, %cst_189 {dimension_numbers = #tpu.dot_dimension_numbers<[1], [0], [0], [1], [0, 0, 1, 1], [], []>} : vector<64x576xbf16>, vector<576x128xbf16>, vector<64x128xf32> -> vector<64x128xf32>
    %c0_190 = arith.constant 0 : index
    %c0_191 = arith.constant 0 : index
    %642 = vector.load %arg9[%c0_190, %c0_191] : memref<64x1xf32, #tpu.memory_space<vmem>>, vector<64x1xf32>
    %643 = vector.broadcast %642 : vector<64x1xf32> to vector<64x128xf32>
    %644 = arith.addf %641, %643 : vector<64x128xf32>
    %cst_192 = arith.constant 0.000000e+00 : f32
    %645 = vector.broadcast %cst_192 : f32 to vector<64x128xf32>
    %646 = arith.maximumf %644, %645 : vector<64x128xf32>
    %647 = arith.truncf %646 : vector<64x128xf32> to vector<64x128xbf16>
    %648 = vector.extract_strided_slice %647 {offsets = [0, 119], sizes = [64, 9], strides = [1, 1]} : vector<64x128xbf16> to vector<64x9xbf16>
    %649 = vector.extract_strided_slice %647 {offsets = [0, 0], sizes = [64, 119], strides = [1, 1]} : vector<64x128xbf16> to vector<64x119xbf16>
    %650 = tpu.concatenate %648, %649 in 1 : vector<64x9xbf16>, vector<64x119xbf16> -> vector<64x128xbf16>
    %cst_193 = arith.constant 0.000000e+00 : f32
    %651 = arith.truncf %cst_193 : f32 to bf16
    %652 = vector.shape_cast %259 : vector<1x128xi1> to vector<1x128xi1>
    %653 = vector.broadcast %652 : vector<1x128xi1> to vector<64x128xi1>
    %654 = vector.broadcast %651 : bf16 to vector<64x128xbf16>
    %655 = arith.select %653, %650, %654 : vector<64x128xi1>, vector<64x128xbf16>
    %656 = vector.extract_strided_slice %647 {offsets = [0, 120], sizes = [64, 8], strides = [1, 1]} : vector<64x128xbf16> to vector<64x8xbf16>
    %657 = vector.extract_strided_slice %647 {offsets = [0, 0], sizes = [64, 120], strides = [1, 1]} : vector<64x128xbf16> to vector<64x120xbf16>
    %658 = tpu.concatenate %656, %657 in 1 : vector<64x8xbf16>, vector<64x120xbf16> -> vector<64x128xbf16>
    %cst_194 = arith.constant 0.000000e+00 : f32
    %659 = arith.truncf %cst_194 : f32 to bf16
    %660 = vector.shape_cast %278 : vector<1x128xi1> to vector<1x128xi1>
    %661 = vector.broadcast %660 : vector<1x128xi1> to vector<64x128xi1>
    %662 = vector.broadcast %659 : bf16 to vector<64x128xbf16>
    %663 = arith.select %661, %658, %662 : vector<64x128xi1>, vector<64x128xbf16>
    %664 = vector.extract_strided_slice %647 {offsets = [0, 121], sizes = [64, 7], strides = [1, 1]} : vector<64x128xbf16> to vector<64x7xbf16>
    %665 = vector.extract_strided_slice %647 {offsets = [0, 0], sizes = [64, 121], strides = [1, 1]} : vector<64x128xbf16> to vector<64x121xbf16>
    %666 = tpu.concatenate %664, %665 in 1 : vector<64x7xbf16>, vector<64x121xbf16> -> vector<64x128xbf16>
    %cst_195 = arith.constant 0.000000e+00 : f32
    %667 = arith.truncf %cst_195 : f32 to bf16
    %668 = vector.shape_cast %297 : vector<1x128xi1> to vector<1x128xi1>
    %669 = vector.broadcast %668 : vector<1x128xi1> to vector<64x128xi1>
    %670 = vector.broadcast %667 : bf16 to vector<64x128xbf16>
    %671 = arith.select %669, %666, %670 : vector<64x128xi1>, vector<64x128xbf16>
    %672 = vector.extract_strided_slice %647 {offsets = [0, 127], sizes = [64, 1], strides = [1, 1]} : vector<64x128xbf16> to vector<64x1xbf16>
    %673 = vector.extract_strided_slice %647 {offsets = [0, 0], sizes = [64, 127], strides = [1, 1]} : vector<64x128xbf16> to vector<64x127xbf16>
    %674 = tpu.concatenate %672, %673 in 1 : vector<64x1xbf16>, vector<64x127xbf16> -> vector<64x128xbf16>
    %cst_196 = arith.constant 0.000000e+00 : f32
    %675 = arith.truncf %cst_196 : f32 to bf16
    %676 = vector.shape_cast %316 : vector<1x128xi1> to vector<1x128xi1>
    %677 = vector.broadcast %676 : vector<1x128xi1> to vector<64x128xi1>
    %678 = vector.broadcast %675 : bf16 to vector<64x128xbf16>
    %679 = arith.select %677, %674, %678 : vector<64x128xi1>, vector<64x128xbf16>
    %cst_197 = arith.constant 0.000000e+00 : f32
    %680 = arith.truncf %cst_197 : f32 to bf16
    %681 = vector.shape_cast %335 : vector<1x128xi1> to vector<1x128xi1>
    %682 = vector.broadcast %681 : vector<1x128xi1> to vector<64x128xi1>
    %683 = vector.broadcast %680 : bf16 to vector<64x128xbf16>
    %684 = arith.select %682, %647, %683 : vector<64x128xi1>, vector<64x128xbf16>
    %685 = vector.extract_strided_slice %647 {offsets = [0, 1], sizes = [64, 127], strides = [1, 1]} : vector<64x128xbf16> to vector<64x127xbf16>
    %686 = vector.extract_strided_slice %647 {offsets = [0, 0], sizes = [64, 1], strides = [1, 1]} : vector<64x128xbf16> to vector<64x1xbf16>
    %687 = tpu.concatenate %685, %686 in 1 : vector<64x127xbf16>, vector<64x1xbf16> -> vector<64x128xbf16>
    %cst_198 = arith.constant 0.000000e+00 : f32
    %688 = arith.truncf %cst_198 : f32 to bf16
    %689 = vector.shape_cast %354 : vector<1x128xi1> to vector<1x128xi1>
    %690 = vector.broadcast %689 : vector<1x128xi1> to vector<64x128xi1>
    %691 = vector.broadcast %688 : bf16 to vector<64x128xbf16>
    %692 = arith.select %690, %687, %691 : vector<64x128xi1>, vector<64x128xbf16>
    %693 = vector.extract_strided_slice %647 {offsets = [0, 7], sizes = [64, 121], strides = [1, 1]} : vector<64x128xbf16> to vector<64x121xbf16>
    %694 = vector.extract_strided_slice %647 {offsets = [0, 0], sizes = [64, 7], strides = [1, 1]} : vector<64x128xbf16> to vector<64x7xbf16>
    %695 = tpu.concatenate %693, %694 in 1 : vector<64x121xbf16>, vector<64x7xbf16> -> vector<64x128xbf16>
    %cst_199 = arith.constant 0.000000e+00 : f32
    %696 = arith.truncf %cst_199 : f32 to bf16
    %697 = vector.shape_cast %373 : vector<1x128xi1> to vector<1x128xi1>
    %698 = vector.broadcast %697 : vector<1x128xi1> to vector<64x128xi1>
    %699 = vector.broadcast %696 : bf16 to vector<64x128xbf16>
    %700 = arith.select %698, %695, %699 : vector<64x128xi1>, vector<64x128xbf16>
    %701 = vector.extract_strided_slice %647 {offsets = [0, 8], sizes = [64, 120], strides = [1, 1]} : vector<64x128xbf16> to vector<64x120xbf16>
    %702 = vector.extract_strided_slice %647 {offsets = [0, 0], sizes = [64, 8], strides = [1, 1]} : vector<64x128xbf16> to vector<64x8xbf16>
    %703 = tpu.concatenate %701, %702 in 1 : vector<64x120xbf16>, vector<64x8xbf16> -> vector<64x128xbf16>
    %cst_200 = arith.constant 0.000000e+00 : f32
    %704 = arith.truncf %cst_200 : f32 to bf16
    %705 = vector.shape_cast %392 : vector<1x128xi1> to vector<1x128xi1>
    %706 = vector.broadcast %705 : vector<1x128xi1> to vector<64x128xi1>
    %707 = vector.broadcast %704 : bf16 to vector<64x128xbf16>
    %708 = arith.select %706, %703, %707 : vector<64x128xi1>, vector<64x128xbf16>
    %709 = vector.extract_strided_slice %647 {offsets = [0, 9], sizes = [64, 119], strides = [1, 1]} : vector<64x128xbf16> to vector<64x119xbf16>
    %710 = vector.extract_strided_slice %647 {offsets = [0, 0], sizes = [64, 9], strides = [1, 1]} : vector<64x128xbf16> to vector<64x9xbf16>
    %711 = tpu.concatenate %709, %710 in 1 : vector<64x119xbf16>, vector<64x9xbf16> -> vector<64x128xbf16>
    %cst_201 = arith.constant 0.000000e+00 : f32
    %712 = arith.truncf %cst_201 : f32 to bf16
    %713 = vector.shape_cast %411 : vector<1x128xi1> to vector<1x128xi1>
    %714 = vector.broadcast %713 : vector<1x128xi1> to vector<64x128xi1>
    %715 = vector.broadcast %712 : bf16 to vector<64x128xbf16>
    %716 = arith.select %714, %711, %715 : vector<64x128xi1>, vector<64x128xbf16>
    %717 = tpu.concatenate %655, %663, %671, %679, %684, %692, %700, %708, %716 in 0 : vector<64x128xbf16>, vector<64x128xbf16>, vector<64x128xbf16>, vector<64x128xbf16>, vector<64x128xbf16>, vector<64x128xbf16>, vector<64x128xbf16>, vector<64x128xbf16>, vector<64x128xbf16> -> vector<576x128xbf16>
    %c0_202 = arith.constant 0 : index
    %c0_203 = arith.constant 0 : index
    %718 = vector.load %arg10[%c0_202, %c0_203] : memref<64x576xbf16, #tpu.memory_space<vmem>>, vector<64x576xbf16>
    %cst_204 = arith.constant dense<0.000000e+00> : vector<64x128xf32>
    %719 = tpu.matmul %718, %717, %cst_204 {dimension_numbers = #tpu.dot_dimension_numbers<[1], [0], [0], [1], [0, 0, 1, 1], [], []>} : vector<64x576xbf16>, vector<576x128xbf16>, vector<64x128xf32> -> vector<64x128xf32>
    %c0_205 = arith.constant 0 : index
    %c0_206 = arith.constant 0 : index
    %720 = vector.load %arg11[%c0_205, %c0_206] : memref<64x1xf32, #tpu.memory_space<vmem>>, vector<64x1xf32>
    %721 = vector.broadcast %720 : vector<64x1xf32> to vector<64x128xf32>
    %722 = arith.addf %719, %721 : vector<64x128xf32>
    %723 = arith.addf %722, %568 : vector<64x128xf32>
    %cst_207 = arith.constant 0.000000e+00 : f32
    %724 = vector.broadcast %cst_207 : f32 to vector<64x128xf32>
    %725 = arith.maximumf %723, %724 : vector<64x128xf32>
    %c0_208 = arith.constant 0 : index
    %c0_209 = arith.constant 0 : index
    %726 = vector.load %arg12[%c0_208, %c0_209] : memref<64x128xf32, #tpu.memory_space<vmem>>, vector<64x128xf32>
    tpu.vector_store %arg12[%c0_208, %c0_209], %725 {strides = array<i32>} : memref<64x128xf32, #tpu.memory_space<vmem>>, vector<64x128xf32>,
    return
  }
}

</mosaic_0001>

<llo_original>
// kernel: feature_generator_forward.1
$region0: #{feature_generator_forward.1}
  #allocation0 [shape = 'u32[]', space=smem, size = 0x4, offset = 0x4, fixed_abs, tag = 'smem constant byte address 0x4 - core index']
  #allocation1 [shape = 'u32[144,128]{1,0:T(1,128)}', space=vmem, size = 0x12000, scoped, tag = 'internal scratch']
  %s0 = inlined_call_operand.vmem [shape: bf16[256,512], index: 0, kind: input, shape index: {}]
  %s1 = inlined_call_operand.vmem [shape: bf16[64,256], index: 1, kind: input, shape index: {}]
  %s2 = inlined_call_operand.vmem [shape: f32[64,1], index: 2, kind: input, shape index: {}]
  %s3 = inlined_call_operand.vmem [shape: bf16[512,128], index: 3, kind: input, shape index: {}]
  %s4 = inlined_call_operand.vmem [shape: bf16[64,576], index: 4, kind: input, shape index: {}]
  %s5 = inlined_call_operand.vmem [shape: f32[64,1], index: 5, kind: input, shape index: {}]
  %s6 = inlined_call_operand.vmem [shape: bf16[64,576], index: 6, kind: input, shape index: {}]
  %s7 = inlined_call_operand.vmem [shape: f32[64,1], index: 7, kind: input, shape index: {}]
  %s8 = inlined_call_operand.vmem [shape: bf16[64,576], index: 8, kind: input, shape index: {}]
  %s9 = inlined_call_operand.vmem [shape: f32[64,1], index: 9, kind: input, shape index: {}]
  %s10 = inlined_call_operand.vmem [shape: bf16[64,576], index: 10, kind: input, shape index: {}]
  %s11 = inlined_call_operand.vmem [shape: f32[64,1], index: 11, kind: input, shape index: {}]
  %s12 = inlined_call_operand.vmem [shape: f32[64,128], index: 12, kind: output, shape index: {}]
  %s13 = sld [smem:[#allocation0]]
  $region58: #{feature_generator_forward.1} parent=0
    _
  %s15 = ssub.s32 1, %s13
  %s16 = scalar_select 0, %s15, %s13
  // Predicated region
  $region2: #{feature_generator_forward.1} parent=0 // pred_check
    _
  $region3: #{feature_generator_forward.1} parent=0 // pred_check_branch
    %18 = sbr.rel (0) target = $region5
  $region4: #{feature_generator_forward.1} parent=0 // pred_region
    _
  $region5: #{feature_generator_forward.1} parent=0 // pred_fallthru
    _
  // Predicated region
  $region6: #{feature_generator_forward.1} parent=0 // pred_check
    _
  $region7: #{feature_generator_forward.1} parent=0 // pred_check_branch
    %20 = sbr.rel (0) target = $region9
  $region8: #{feature_generator_forward.1} parent=0 // pred_region
    _
  $region9: #{feature_generator_forward.1} parent=0 // pred_fallthru
    _
  // Predicated region
  $region10: #{feature_generator_forward.1} parent=0 // pred_check
    _
  $region11: #{feature_generator_forward.1} parent=0 // pred_check_branch
    %22 = sbr.rel (0) target = $region13
  $region12: #{feature_generator_forward.1} parent=0 // pred_region
    _
  $region13: #{feature_generator_forward.1} parent=0 // pred_fallthru
    _
  // Predicated region
  $region14: #{feature_generator_forward.1} parent=0 // pred_check
    _
  $region15: #{feature_generator_forward.1} parent=0 // pred_check_branch
    %24 = sbr.rel (0) target = $region17
  $region16: #{feature_generator_forward.1} parent=0 // pred_region
    _
  $region17: #{feature_generator_forward.1} parent=0 // pred_fallthru
    _
  // Predicated region
  $region18: #{feature_generator_forward.1} parent=0 // pred_check
    _
  $region19: #{feature_generator_forward.1} parent=0 // pred_check_branch
    %26 = sbr.rel (0) target = $region21
  $region20: #{feature_generator_forward.1} parent=0 // pred_region
    _
  $region21: #{feature_generator_forward.1} parent=0 // pred_fallthru
    _
  // Predicated region
  $region22: #{feature_generator_forward.1} parent=0 // pred_check
    _
  $region23: #{feature_generator_forward.1} parent=0 // pred_check_branch
    %28 = sbr.rel (0) target = $region25
  $region24: #{feature_generator_forward.1} parent=0 // pred_region
    _
  $region25: #{feature_generator_forward.1} parent=0 // pred_fallthru
    _
  // Predicated region
  $region26: #{feature_generator_forward.1} parent=0 // pred_check
    _
  $region27: #{feature_generator_forward.1} parent=0 // pred_check_branch
    %30 = sbr.rel (0) target = $region29
  $region28: #{feature_generator_forward.1} parent=0 // pred_region
    _
  $region29: #{feature_generator_forward.1} parent=0 // pred_fallthru
    _
  // Predicated region
  $region30: #{feature_generator_forward.1} parent=0 // pred_check
    _
  $region31: #{feature_generator_forward.1} parent=0 // pred_check_branch
    %32 = sbr.rel (0) target = $region33
  $region32: #{feature_generator_forward.1} parent=0 // pred_region
    _
  $region33: #{feature_generator_forward.1} parent=0 // pred_fallthru
    _
  // Predicated region
  $region34: #{feature_generator_forward.1} parent=0 // pred_check
    _
  $region35: #{feature_generator_forward.1} parent=0 // pred_check_branch
    %34 = sbr.rel (0) target = $region37
  $region36: #{feature_generator_forward.1} parent=0 // pred_region
    _
  $region37: #{feature_generator_forward.1} parent=0 // pred_fallthru
    _
  // Predicated region
  $region38: #{feature_generator_forward.1} parent=0 // pred_check
    _
  $region39: #{feature_generator_forward.1} parent=0 // pred_check_branch
    %36 = sbr.rel (0) target = $region41
  $region40: #{feature_generator_forward.1} parent=0 // pred_region
    _
  $region41: #{feature_generator_forward.1} parent=0 // pred_fallthru
    _
  // Predicated region
  $region42: #{feature_generator_forward.1} parent=0 // pred_check
    _
  $region43: #{feature_generator_forward.1} parent=0 // pred_check_branch
    %38 = sbr.rel (0) target = $region45
  $region44: #{feature_generator_forward.1} parent=0 // pred_region
    _
  $region45: #{feature_generator_forward.1} parent=0 // pred_fallthru
    _
  // Predicated region
  $region46: #{feature_generator_forward.1} parent=0 // pred_check
    _
  $region47: #{feature_generator_forward.1} parent=0 // pred_check_branch
    %40 = sbr.rel (0) target = $region49
  $region48: #{feature_generator_forward.1} parent=0 // pred_region
    _
  $region49: #{feature_generator_forward.1} parent=0 // pred_fallthru
    _
  %v44 = vld [vmem:[%s1] sm:$0xff]
  %v45 = vld [vmem:[%s1 + $0x8] sm:$0xff]
  %v46 = vld [vmem:[%s1 + $0x10] sm:$0xff]
  %v47 = vld [vmem:[%s1 + $0x18] sm:$0xff]
  %v48 = vld [vmem:[%s1 + $0x20] sm:$0xff]
  %v49 = vld [vmem:[%s1 + $0x28] sm:$0xff]
  %v50 = vld [vmem:[%s1 + $0x30] sm:$0xff]
  %v51 = vld [vmem:[%s1 + $0x38] sm:$0xff]
  %v52 = vld [vmem:[%s0] sm:$0xff]
  %v53 = vld [vmem:[%s0 + $0x8] sm:$0xff]
  %v54 = vld [vmem:[%s0 + $0x10] sm:$0xff]
  %v55 = vld [vmem:[%s0 + $0x18] sm:$0xff]
  %v56 = vld [vmem:[%s0 + $0x20] sm:$0xff]
  %v57 = vld [vmem:[%s0 + $0x28] sm:$0xff]
  %v58 = vld [vmem:[%s0 + $0x30] sm:$0xff]
  %v59 = vld [vmem:[%s0 + $0x38] sm:$0xff]
  %v60 = vld [vmem:[%s0 + $0x40] sm:$0xff]
  %v61 = vld [vmem:[%s0 + $0x48] sm:$0xff]
  %v62 = vld [vmem:[%s0 + $0x50] sm:$0xff]
  %v63 = vld [vmem:[%s0 + $0x58] sm:$0xff]
  %v64 = vld [vmem:[%s0 + $0x60] sm:$0xff]
  %v65 = vld [vmem:[%s0 + $0x68] sm:$0xff]
  %v66 = vld [vmem:[%s0 + $0x70] sm:$0xff]
  %v67 = vld [vmem:[%s0 + $0x78] sm:$0xff]
  %v68 = vld [vmem:[%s0 + $0x80] sm:$0xff]
  %v69 = vld [vmem:[%s0 + $0x88] sm:$0xff]
  %v70 = vld [vmem:[%s0 + $0x90] sm:$0xff]
  %v71 = vld [vmem:[%s0 + $0x98] sm:$0xff]
  %v72 = vld [vmem:[%s0 + $0xa0] sm:$0xff]
  %v73 = vld [vmem:[%s0 + $0xa8] sm:$0xff]
  %v74 = vld [vmem:[%s0 + $0xb0] sm:$0xff]
  %v75 = vld [vmem:[%s0 + $0xb8] sm:$0xff]
  %v76 = vld [vmem:[%s0 + $0xc0] sm:$0xff]
  %v77 = vld [vmem:[%s0 + $0xc8] sm:$0xff]
  %v78 = vld [vmem:[%s0 + $0xd0] sm:$0xff]
  %v79 = vld [vmem:[%s0 + $0xd8] sm:$0xff]
  %v80 = vld [vmem:[%s0 + $0xe0] sm:$0xff]
  %v81 = vld [vmem:[%s0 + $0xe8] sm:$0xff]
  %v82 = vld [vmem:[%s0 + $0xf0] sm:$0xff]
  %v83 = vld [vmem:[%s0 + $0xf8] sm:$0xff]
  %v84 = vld [vmem:[%s0 + $0x100] sm:$0xff]
  %v85 = vld [vmem:[%s0 + $0x108] sm:$0xff]
  %v86 = vld [vmem:[%s0 + $0x110] sm:$0xff]
  %v87 = vld [vmem:[%s0 + $0x118] sm:$0xff]
  %v88 = vld [vmem:[%s0 + $0x120] sm:$0xff]
  %v89 = vld [vmem:[%s0 + $0x128] sm:$0xff]
  %v90 = vld [vmem:[%s0 + $0x130] sm:$0xff]
  %v91 = vld [vmem:[%s0 + $0x138] sm:$0xff]
  %v92 = vld [vmem:[%s0 + $0x140] sm:$0xff]
  %v93 = vld [vmem:[%s0 + $0x148] sm:$0xff]
  %v94 = vld [vmem:[%s0 + $0x150] sm:$0xff]
  %v95 = vld [vmem:[%s0 + $0x158] sm:$0xff]
  %v96 = vld [vmem:[%s0 + $0x160] sm:$0xff]
  %v97 = vld [vmem:[%s0 + $0x168] sm:$0xff]
  %v98 = vld [vmem:[%s0 + $0x170] sm:$0xff]
  %v99 = vld [vmem:[%s0 + $0x178] sm:$0xff]
  %v100 = vld [vmem:[%s0 + $0x180] sm:$0xff]
  %v101 = vld [vmem:[%s0 + $0x188] sm:$0xff]
  %v102 = vld [vmem:[%s0 + $0x190] sm:$0xff]
  %v103 = vld [vmem:[%s0 + $0x198] sm:$0xff]
  %v104 = vld [vmem:[%s0 + $0x1a0] sm:$0xff]
  %v105 = vld [vmem:[%s0 + $0x1a8] sm:$0xff]
  %v106 = vld [vmem:[%s0 + $0x1b0] sm:$0xff]
  %v107 = vld [vmem:[%s0 + $0x1b8] sm:$0xff]
  %v108 = vld [vmem:[%s0 + $0x1c0] sm:$0xff]
  %v109 = vld [vmem:[%s0 + $0x1c8] sm:$0xff]
  %v110 = vld [vmem:[%s0 + $0x1d0] sm:$0xff]
  %v111 = vld [vmem:[%s0 + $0x1d8] sm:$0xff]
  %v112 = vld [vmem:[%s0 + $0x1e0] sm:$0xff]
  %v113 = vld [vmem:[%s0 + $0x1e8] sm:$0xff]
  %v114 = vld [vmem:[%s0 + $0x1f0] sm:$0xff]
  %v115 = vld [vmem:[%s0 + $0x1f8] sm:$0xff]
  %v116 = vld [vmem:[%s2] sm:$0xff]
  %v117 = vld [vmem:[%s2 + $0x8] sm:$0xff]
  %v118 = vld [vmem:[%s2 + $0x10] sm:$0xff]
  %v119 = vld [vmem:[%s2 + $0x18] sm:$0xff]
  %v120 = vld [vmem:[%s2 + $0x20] sm:$0xff]
  %v121 = vld [vmem:[%s2 + $0x28] sm:$0xff]
  %v122 = vld [vmem:[%s2 + $0x30] sm:$0xff]
  %v123 = vld [vmem:[%s2 + $0x38] sm:$0xff]
  %125 = vset.pattern.permute.xlu0 0
  %126 = vperm.xlu0 %125, %v116
  %v127 = vpop.permute.xlu0 %126
  %130 = vset.pattern.permute.xlu0 0
  %131 = vperm.xlu0 %130, %v117
  %v132 = vpop.permute.xlu0 %131
  %135 = vset.pattern.permute.xlu0 0
  %136 = vperm.xlu0 %135, %v118
  %v137 = vpop.permute.xlu0 %136
  %140 = vset.pattern.permute.xlu0 0
  %141 = vperm.xlu0 %140, %v119
  %v142 = vpop.permute.xlu0 %141
  %145 = vset.pattern.permute.xlu0 0
  %146 = vperm.xlu0 %145, %v120
  %v147 = vpop.permute.xlu0 %146
  %150 = vset.pattern.permute.xlu0 0
  %151 = vperm.xlu0 %150, %v121
  %v152 = vpop.permute.xlu0 %151
  %155 = vset.pattern.permute.xlu0 0
  %156 = vperm.xlu0 %155, %v122
  %v157 = vpop.permute.xlu0 %156
  %160 = vset.pattern.permute.xlu0 0
  %161 = vperm.xlu0 %160, %v123
  %v162 = vpop.permute.xlu0 %161
  %v172 = vunpack.c.l.b16 %v44
  %v173 = vunpack.c.h.b16 %v44
  %v174 = vunpack.c.l.b16 %v45
  %v175 = vunpack.c.h.b16 %v45
  %v176 = vunpack.c.l.b16 %v46
  %v177 = vunpack.c.h.b16 %v46
  %v178 = vunpack.c.l.b16 %v47
  %v179 = vunpack.c.h.b16 %v47
  %v180 = vunpack.c.l.b16 %v48
  %v181 = vunpack.c.h.b16 %v48
  %v182 = vunpack.c.l.b16 %v49
  %v183 = vunpack.c.h.b16 %v49
  %v184 = vunpack.c.l.b16 %v50
  %v185 = vunpack.c.h.b16 %v50
  %v186 = vunpack.c.l.b16 %v51
  %v187 = vunpack.c.h.b16 %v51
  %v188 = vpack.c.b16 %v174, %v172
  %v189 = vpack.c.b16 %v175, %v173
  %v190 = vpack.c.b16 %v178, %v176
  %v191 = vpack.c.b16 %v179, %v177
  %v192 = vpack.c.b16 %v182, %v180
  %v193 = vpack.c.b16 %v183, %v181
  %v194 = vpack.c.b16 %v186, %v184
  %v195 = vpack.c.b16 %v187, %v185
  %v268 = vunpack.c.l.b16 %v52
  %v269 = vunpack.c.h.b16 %v52
  %v270 = vunpack.c.l.b16 %v53
  %v271 = vunpack.c.h.b16 %v53
  %v272 = vunpack.c.l.b16 %v54
  %v273 = vunpack.c.h.b16 %v54
  %v274 = vunpack.c.l.b16 %v55
  %v275 = vunpack.c.h.b16 %v55
  %v276 = vunpack.c.l.b16 %v56
  %v277 = vunpack.c.h.b16 %v56
  %v278 = vunpack.c.l.b16 %v57
  %v279 = vunpack.c.h.b16 %v57
  %v280 = vunpack.c.l.b16 %v58
  %v281 = vunpack.c.h.b16 %v58
  %v282 = vunpack.c.l.b16 %v59
  %v283 = vunpack.c.h.b16 %v59
  %v284 = vunpack.c.l.b16 %v60
  %v285 = vunpack.c.h.b16 %v60
  %v286 = vunpack.c.l.b16 %v61
  %v287 = vunpack.c.h.b16 %v61
  %v288 = vunpack.c.l.b16 %v62
  %v289 = vunpack.c.h.b16 %v62
  %v290 = vunpack.c.l.b16 %v63
  %v291 = vunpack.c.h.b16 %v63
  %v292 = vunpack.c.l.b16 %v64
  %v293 = vunpack.c.h.b16 %v64
  %v294 = vunpack.c.l.b16 %v65
  %v295 = vunpack.c.h.b16 %v65
  %v296 = vunpack.c.l.b16 %v66
  %v297 = vunpack.c.h.b16 %v66
  %v298 = vunpack.c.l.b16 %v67
  %v299 = vunpack.c.h.b16 %v67
  %v300 = vunpack.c.l.b16 %v68
  %v301 = vunpack.c.h.b16 %v68
  %v302 = vunpack.c.l.b16 %v69
  %v303 = vunpack.c.h.b16 %v69
  %v304 = vunpack.c.l.b16 %v70
  %v305 = vunpack.c.h.b16 %v70
  %v306 = vunpack.c.l.b16 %v71
  %v307 = vunpack.c.h.b16 %v71
  %v308 = vunpack.c.l.b16 %v72
  %v309 = vunpack.c.h.b16 %v72
  %v310 = vunpack.c.l.b16 %v73
  %v311 = vunpack.c.h.b16 %v73
  %v312 = vunpack.c.l.b16 %v74
  %v313 = vunpack.c.h.b16 %v74
  %v314 = vunpack.c.l.b16 %v75
  %v315 = vunpack.c.h.b16 %v75
  %v316 = vunpack.c.l.b16 %v76
  %v317 = vunpack.c.h.b16 %v76
  %v318 = vunpack.c.l.b16 %v77
  %v319 = vunpack.c.h.b16 %v77
  %v320 = vunpack.c.l.b16 %v78
  %v321 = vunpack.c.h.b16 %v78
  %v322 = vunpack.c.l.b16 %v79
  %v323 = vunpack.c.h.b16 %v79
  %v324 = vunpack.c.l.b16 %v80
  %v325 = vunpack.c.h.b16 %v80
  %v326 = vunpack.c.l.b16 %v81
  %v327 = vunpack.c.h.b16 %v81
  %v328 = vunpack.c.l.b16 %v82
  %v329 = vunpack.c.h.b16 %v82
  %v330 = vunpack.c.l.b16 %v83
  %v331 = vunpack.c.h.b16 %v83
  %v332 = vunpack.c.l.b16 %v84
  %v333 = vunpack.c.h.b16 %v84
  %v334 = vunpack.c.l.b16 %v85
  %v335 = vunpack.c.h.b16 %v85
  %v336 = vunpack.c.l.b16 %v86
  %v337 = vunpack.c.h.b16 %v86
  %v338 = vunpack.c.l.b16 %v87
  %v339 = vunpack.c.h.b16 %v87
  %v340 = vunpack.c.l.b16 %v88
  %v341 = vunpack.c.h.b16 %v88
  %v342 = vunpack.c.l.b16 %v89
  %v343 = vunpack.c.h.b16 %v89
  %v344 = vunpack.c.l.b16 %v90
  %v345 = vunpack.c.h.b16 %v90
  %v346 = vunpack.c.l.b16 %v91
  %v347 = vunpack.c.h.b16 %v91
  %v348 = vunpack.c.l.b16 %v92
  %v349 = vunpack.c.h.b16 %v92
  %v350 = vunpack.c.l.b16 %v93
  %v351 = vunpack.c.h.b16 %v93
  %v352 = vunpack.c.l.b16 %v94
  %v353 = vunpack.c.h.b16 %v94
  %v354 = vunpack.c.l.b16 %v95
  %v355 = vunpack.c.h.b16 %v95
  %v356 = vunpack.c.l.b16 %v96
  %v357 = vunpack.c.h.b16 %v96
  %v358 = vunpack.c.l.b16 %v97
  %v359 = vunpack.c.h.b16 %v97
  %v360 = vunpack.c.l.b16 %v98
  %v361 = vunpack.c.h.b16 %v98
  %v362 = vunpack.c.l.b16 %v99
  %v363 = vunpack.c.h.b16 %v99
  %v364 = vunpack.c.l.b16 %v100
  %v365 = vunpack.c.h.b16 %v100
  %v366 = vunpack.c.l.b16 %v101
  %v367 = vunpack.c.h.b16 %v101
  %v368 = vunpack.c.l.b16 %v102
  %v369 = vunpack.c.h.b16 %v102
  %v370 = vunpack.c.l.b16 %v103
  %v371 = vunpack.c.h.b16 %v103
  %v372 = vunpack.c.l.b16 %v104
  %v373 = vunpack.c.h.b16 %v104
  %v374 = vunpack.c.l.b16 %v105
  %v375 = vunpack.c.h.b16 %v105
  %v376 = vunpack.c.l.b16 %v106
  %v377 = vunpack.c.h.b16 %v106
  %v378 = vunpack.c.l.b16 %v107
  %v379 = vunpack.c.h.b16 %v107
  %v380 = vunpack.c.l.b16 %v108
  %v381 = vunpack.c.h.b16 %v108
  %v382 = vunpack.c.l.b16 %v109
  %v383 = vunpack.c.h.b16 %v109
  %v384 = vunpack.c.l.b16 %v110
  %v385 = vunpack.c.h.b16 %v110
  %v386 = vunpack.c.l.b16 %v111
  %v387 = vunpack.c.h.b16 %v111
  %v388 = vunpack.c.l.b16 %v112
  %v389 = vunpack.c.h.b16 %v112
  %v390 = vunpack.c.l.b16 %v113
  %v391 = vunpack.c.h.b16 %v113
  %v392 = vunpack.c.l.b16 %v114
  %v393 = vunpack.c.h.b16 %v114
  %v394 = vunpack.c.l.b16 %v115
  %v395 = vunpack.c.h.b16 %v115
  %v396 = vpack.c.b16 %v272, %v268
  %v397 = vpack.c.b16 %v273, %v269
  %v398 = vpack.c.b16 %v274, %v270
  %v399 = vpack.c.b16 %v275, %v271
  %v400 = vpack.c.b16 %v280, %v276
  %v401 = vpack.c.b16 %v281, %v277
  %v402 = vpack.c.b16 %v282, %v278
  %v403 = vpack.c.b16 %v283, %v279
  %v404 = vpack.c.b16 %v288, %v284
  %v405 = vpack.c.b16 %v289, %v285
  %v406 = vpack.c.b16 %v290, %v286
  %v407 = vpack.c.b16 %v291, %v287
  %v408 = vpack.c.b16 %v296, %v292
  %v409 = vpack.c.b16 %v297, %v293
  %v410 = vpack.c.b16 %v298, %v294
  %v411 = vpack.c.b16 %v299, %v295
  %v412 = vpack.c.b16 %v304, %v300
  %v413 = vpack.c.b16 %v305, %v301
  %v414 = vpack.c.b16 %v306, %v302
  %v415 = vpack.c.b16 %v307, %v303
  %v416 = vpack.c.b16 %v312, %v308
  %v417 = vpack.c.b16 %v313, %v309
  %v418 = vpack.c.b16 %v314, %v310
  %v419 = vpack.c.b16 %v315, %v311
  %v420 = vpack.c.b16 %v320, %v316
  %v421 = vpack.c.b16 %v321, %v317
  %v422 = vpack.c.b16 %v322, %v318
  %v423 = vpack.c.b16 %v323, %v319
  %v424 = vpack.c.b16 %v328, %v324
  %v425 = vpack.c.b16 %v329, %v325
  %v426 = vpack.c.b16 %v330, %v326
  %v427 = vpack.c.b16 %v331, %v327
  %v428 = vpack.c.b16 %v336, %v332
  %v429 = vpack.c.b16 %v337, %v333
  %v430 = vpack.c.b16 %v338, %v334
  %v431 = vpack.c.b16 %v339, %v335
  %v432 = vpack.c.b16 %v344, %v340
  %v433 = vpack.c.b16 %v345, %v341
  %v434 = vpack.c.b16 %v346, %v342
  %v435 = vpack.c.b16 %v347, %v343
  %v436 = vpack.c.b16 %v352, %v348
  %v437 = vpack.c.b16 %v353, %v349
  %v438 = vpack.c.b16 %v354, %v350
  %v439 = vpack.c.b16 %v355, %v351
  %v440 = vpack.c.b16 %v360, %v356
  %v441 = vpack.c.b16 %v361, %v357
  %v442 = vpack.c.b16 %v362, %v358
  %v443 = vpack.c.b16 %v363, %v359
  %v444 = vpack.c.b16 %v368, %v364
  %v445 = vpack.c.b16 %v369, %v365
  %v446 = vpack.c.b16 %v370, %v366
  %v447 = vpack.c.b16 %v371, %v367
  %v448 = vpack.c.b16 %v376, %v372
  %v449 = vpack.c.b16 %v377, %v373
  %v450 = vpack.c.b16 %v378, %v374
  %v451 = vpack.c.b16 %v379, %v375
  %v452 = vpack.c.b16 %v384, %v380
  %v453 = vpack.c.b16 %v385, %v381
  %v454 = vpack.c.b16 %v386, %v382
  %v455 = vpack.c.b16 %v387, %v383
  %v456 = vpack.c.b16 %v392, %v388
  %v457 = vpack.c.b16 %v393, %v389
  %v458 = vpack.c.b16 %v394, %v390
  %v459 = vpack.c.b16 %v395, %v391
  %524 = vmatprep.subr.bf16.mxu0 %v397
  %525 = vmatpush1.bf16.msra.mxu0 %v396
  %526 = vmatprep.subr.bf16.mxu0 %v401
  %527 = vmatpush1.bf16.msra.mxu0 %v400
  %528 = vmatprep.subr.bf16.mxu0 %v405
  %529 = vmatpush1.bf16.msra.mxu0 %v404
  %530 = vmatprep.subr.bf16.mxu0 %v409
  %531 = vmatpush1.bf16.msra.mxu0 %v408
  %532 = vmatprep.subr.bf16.mxu0 %v413
  %533 = vmatpush1.bf16.msra.mxu0 %v412
  %534 = vmatprep.subr.bf16.mxu0 %v417
  %535 = vmatpush1.bf16.msra.mxu0 %v416
  %536 = vmatprep.subr.bf16.mxu0 %v421
  %537 = vmatpush1.bf16.msra.mxu0 %v420
  %538 = vmatprep.subr.bf16.mxu0 %v425
  %539 = vmatpush1.bf16.msra.mxu0 %v424
  %540 = vmatprep.subr.bf16.mxu0 %v429
  %541 = vmatpush1.bf16.msra.mxu0 %v428
  %542 = vmatprep.subr.bf16.mxu0 %v433
  %543 = vmatpush1.bf16.msra.mxu0 %v432
  %544 = vmatprep.subr.bf16.mxu0 %v437
  %545 = vmatpush1.bf16.msra.mxu0 %v436
  %546 = vmatprep.subr.bf16.mxu0 %v441
  %547 = vmatpush1.bf16.msra.mxu0 %v440
  %548 = vmatprep.subr.bf16.mxu0 %v445
  %549 = vmatpush1.bf16.msra.mxu0 %v444
  %550 = vmatprep.subr.bf16.mxu0 %v449
  %551 = vmatpush1.bf16.msra.mxu0 %v448
  %552 = vmatprep.subr.bf16.mxu0 %v453
  %553 = vmatpush1.bf16.msra.mxu0 %v452
  %554 = vmatprep.subr.bf16.mxu0 %v457
  %555 = vmatpush1.bf16.msra.mxu0 %v456
  %556 = vmatprep.mubr.bf16.mxu0 %v189
  %557 = vmatmul.mubr.bf16.gmra.mrb[0].mxu0 %v188
  %v558 = vpop.f32.mrb[0].mxu0
  %v559 = vadd.f32 %v127, %v558
  %v560 = vpop.f32.mrb[0].mxu0
  %v561 = vadd.f32 %v127, %v560
  %v562 = vpop.f32.mrb[0].mxu0
  %v563 = vadd.f32 %v132, %v562
  %v564 = vpop.f32.mrb[0].mxu0
  %v565 = vadd.f32 %v132, %v564
  %566 = vmatprep.mubr.bf16.mxu0 %v191
  %567 = vmatmul.mubr.bf16.gmra.mrb[0].mxu0 %v190
  %v568 = vpop.f32.mrb[0].mxu0
  %v569 = vadd.f32 %v137, %v568
  %v570 = vpop.f32.mrb[0].mxu0
  %v571 = vadd.f32 %v137, %v570
  %v572 = vpop.f32.mrb[0].mxu0
  %v573 = vadd.f32 %v142, %v572
  %v574 = vpop.f32.mrb[0].mxu0
  %v575 = vadd.f32 %v142, %v574
  %576 = vmatprep.mubr.bf16.mxu0 %v193
  %577 = vmatmul.mubr.bf16.gmra.mrb[0].mxu0 %v192
  %v578 = vpop.f32.mrb[0].mxu0
  %v579 = vadd.f32 %v147, %v578
  %v580 = vpop.f32.mrb[0].mxu0
  %v581 = vadd.f32 %v147, %v580
  %v582 = vpop.f32.mrb[0].mxu0
  %v583 = vadd.f32 %v152, %v582
  %v584 = vpop.f32.mrb[0].mxu0
  %v585 = vadd.f32 %v152, %v584
  %586 = vmatprep.mubr.bf16.mxu0 %v195
  %587 = vmatmul.mubr.bf16.gmra.mrb[0].mxu0 %v194
  %v588 = vpop.f32.mrb[0].mxu0
  %v589 = vadd.f32 %v157, %v588
  %v590 = vpop.f32.mrb[0].mxu0
  %v591 = vadd.f32 %v157, %v590
  %v592 = vpop.f32.mrb[0].mxu0
  %v593 = vadd.f32 %v162, %v592
  %v594 = vpop.f32.mrb[0].mxu0
  %v595 = vadd.f32 %v162, %v594
  %596 = vdwg.mxu0
  %597 = vmatprep.subr.bf16.mxu0 %v399
  %598 = vmatpush1.bf16.msra.mxu0 %v398
  %599 = vmatprep.subr.bf16.mxu0 %v403
  %600 = vmatpush1.bf16.msra.mxu0 %v402
  %601 = vmatprep.subr.bf16.mxu0 %v407
  %602 = vmatpush1.bf16.msra.mxu0 %v406
  %603 = vmatprep.subr.bf16.mxu0 %v411
  %604 = vmatpush1.bf16.msra.mxu0 %v410
  %605 = vmatprep.subr.bf16.mxu0 %v415
  %606 = vmatpush1.bf16.msra.mxu0 %v414
  %607 = vmatprep.subr.bf16.mxu0 %v419
  %608 = vmatpush1.bf16.msra.mxu0 %v418
  %609 = vmatprep.subr.bf16.mxu0 %v423
  %610 = vmatpush1.bf16.msra.mxu0 %v422
  %611 = vmatprep.subr.bf16.mxu0 %v427
  %612 = vmatpush1.bf16.msra.mxu0 %v426
  %613 = vmatprep.subr.bf16.mxu0 %v431
  %614 = vmatpush1.bf16.msra.mxu0 %v430
  %615 = vmatprep.subr.bf16.mxu0 %v435
  %616 = vmatpush1.bf16.msra.mxu0 %v434
  %617 = vmatprep.subr.bf16.mxu0 %v439
  %618 = vmatpush1.bf16.msra.mxu0 %v438
  %619 = vmatprep.subr.bf16.mxu0 %v443
  %620 = vmatpush1.bf16.msra.mxu0 %v442
  %621 = vmatprep.subr.bf16.mxu0 %v447
  %622 = vmatpush1.bf16.msra.mxu0 %v446
  %623 = vmatprep.subr.bf16.mxu0 %v451
  %624 = vmatpush1.bf16.msra.mxu0 %v450
  %625 = vmatprep.subr.bf16.mxu0 %v455
  %626 = vmatpush1.bf16.msra.mxu0 %v454
  %627 = vmatprep.subr.bf16.mxu0 %v459
  %628 = vmatpush1.bf16.msra.mxu0 %v458
  %629 = vmatprep.mubr.bf16.mxu0 %v189
  %630 = vmatmul.mubr.bf16.gmra.mrb[0].mxu0 %v188
  %v631 = vpop.f32.mrb[0].mxu0
  %v632 = vadd.f32 %v127, %v631
  %v633 = vpop.f32.mrb[0].mxu0
  %v634 = vadd.f32 %v127, %v633
  %v635 = vpop.f32.mrb[0].mxu0
  %v636 = vadd.f32 %v132, %v635
  %v637 = vpop.f32.mrb[0].mxu0
  %v638 = vadd.f32 %v132, %v637
  %639 = vmatprep.mubr.bf16.mxu0 %v191
  %640 = vmatmul.mubr.bf16.gmra.mrb[0].mxu0 %v190
  %v641 = vpop.f32.mrb[0].mxu0
  %v642 = vadd.f32 %v137, %v641
  %v643 = vpop.f32.mrb[0].mxu0
  %v644 = vadd.f32 %v137, %v643
  %v645 = vpop.f32.mrb[0].mxu0
  %v646 = vadd.f32 %v142, %v645
  %v647 = vpop.f32.mrb[0].mxu0
  %v648 = vadd.f32 %v142, %v647
  %649 = vmatprep.mubr.bf16.mxu0 %v193
  %650 = vmatmul.mubr.bf16.gmra.mrb[0].mxu0 %v192
  %v651 = vpop.f32.mrb[0].mxu0
  %v652 = vadd.f32 %v147, %v651
  %v653 = vpop.f32.mrb[0].mxu0
  %v654 = vadd.f32 %v147, %v653
  %v655 = vpop.f32.mrb[0].mxu0
  %v656 = vadd.f32 %v152, %v655
  %v657 = vpop.f32.mrb[0].mxu0
  %v658 = vadd.f32 %v152, %v657
  %659 = vmatprep.mubr.bf16.mxu0 %v195
  %660 = vmatmul.mubr.bf16.gmra.mrb[0].mxu0 %v194
  %v661 = vpop.f32.mrb[0].mxu0
  %v662 = vadd.f32 %v157, %v661
  %v663 = vpop.f32.mrb[0].mxu0
  %v664 = vadd.f32 %v157, %v663
  %v665 = vpop.f32.mrb[0].mxu0
  %v666 = vadd.f32 %v162, %v665
  %v667 = vpop.f32.mrb[0].mxu0
  %v668 = vadd.f32 %v162, %v667
  %669 = vdwg.mxu0
  %v670 = vmax.f32 %v559, 0.0
  %v671 = vmax.f32 %v561, 0.0
  %v672 = vmax.f32 %v632, 0.0
  %v673 = vmax.f32 %v634, 0.0
  %v674 = vmax.f32 %v563, 0.0
  %v675 = vmax.f32 %v565, 0.0
  %v676 = vmax.f32 %v636, 0.0
  %v677 = vmax.f32 %v638, 0.0
  %v678 = vmax.f32 %v569, 0.0
  %v679 = vmax.f32 %v571, 0.0
  %v680 = vmax.f32 %v642, 0.0
  %v681 = vmax.f32 %v644, 0.0
  %v682 = vmax.f32 %v573, 0.0
  %v683 = vmax.f32 %v575, 0.0
  %v684 = vmax.f32 %v646, 0.0
  %v685 = vmax.f32 %v648, 0.0
  %v686 = vmax.f32 %v579, 0.0
  %v687 = vmax.f32 %v581, 0.0
  %v688 = vmax.f32 %v652, 0.0
  %v689 = vmax.f32 %v654, 0.0
  %v690 = vmax.f32 %v583, 0.0
  %v691 = vmax.f32 %v585, 0.0
  %v692 = vmax.f32 %v656, 0.0
  %v693 = vmax.f32 %v658, 0.0
  %v694 = vmax.f32 %v589, 0.0
  %v695 = vmax.f32 %v591, 0.0
  %v696 = vmax.f32 %v662, 0.0
  %v697 = vmax.f32 %v664, 0.0
  %v698 = vmax.f32 %v593, 0.0
  %v699 = vmax.f32 %v595, 0.0
  %v700 = vmax.f32 %v666, 0.0
  %v701 = vmax.f32 %v668, 0.0
  %v702 = vlaneseq
  %v703 = vand.u32 %v702, 127
  %v704 = vadd.s32 %v703, 128
  %v705 = vadd.s32 %v703, 256
  %v706 = vadd.s32 %v703, 384
  %v707 = vand.u32 %v703, 255
  %v708 = vand.u32 %v704, 255
  %v709 = vand.u32 %v705, 255
  %v710 = vand.u32 %v706, 255
  %v711 = vshra.s32 %v707, 4
  %v712 = vshra.s32 %v708, 4
  %v713 = vshra.s32 %v709, 4
  %v714 = vshra.s32 %v710, 4
  %v715 = vand.u32 %v703, 15
  %v716 = vand.u32 %v704, 15
  %v717 = vand.u32 %v705, 15
  %v718 = vand.u32 %v706, 15
  %v719 = vadd.s32 %v711, 4294967295
  %v720 = vadd.s32 %v712, 4294967295
  %v721 = vadd.s32 %v713, 4294967295
  %v722 = vadd.s32 %v714, 4294967295
  %vm723 = vcmp.ge.s32.totalorder %v719, 0
  %vm724 = vcmp.ge.s32.totalorder %v720, 0
  %vm725 = vcmp.ge.s32.totalorder %v721, 0
  %vm726 = vcmp.ge.s32.totalorder %v722, 0
  %vm727 = vcmp.lt.s32.totalorder %v719, 16
  %vm728 = vcmp.lt.s32.totalorder %v720, 16
  %vm729 = vcmp.lt.s32.totalorder %v721, 16
  %vm730 = vcmp.lt.s32.totalorder %v722, 16
  %vm731 = vmand %vm723, %vm727
  %vm732 = vmand %vm724, %vm728
  %vm733 = vmand %vm725, %vm729
  %vm734 = vmand %vm726, %vm730
  %v735 = vadd.s32 %v715, 4294967295
  %v736 = vadd.s32 %v716, 4294967295
  %v737 = vadd.s32 %v717, 4294967295
  %v738 = vadd.s32 %v718, 4294967295
  %vm739 = vcmp.ge.s32.totalorder %v735, 0
  %vm740 = vcmp.ge.s32.totalorder %v736, 0
  %vm741 = vcmp.ge.s32.totalorder %v737, 0
  %vm742 = vcmp.ge.s32.totalorder %v738, 0
  %vm743 = vmand %vm731, %vm739
  %vm744 = vmand %vm732, %vm740
  %vm745 = vmand %vm733, %vm741
  %vm746 = vmand %vm734, %vm742
  %vm747 = vcmp.lt.s32.totalorder %v735, 16
  %vm748 = vcmp.lt.s32.totalorder %v736, 16
  %vm749 = vcmp.lt.s32.totalorder %v737, 16
  %vm750 = vcmp.lt.s32.totalorder %v738, 16
  %vm751 = vmand %vm743, %vm747
  %vm752 = vmand %vm744, %vm748
  %vm753 = vmand %vm745, %vm749
  %vm754 = vmand %vm746, %vm750
  %763 = vrot.lane.b32.xlu0 %v673, 17
  %v764 = vpop.permute.xlu0 %763
  %765 = vrot.lane.b32.xlu0 %v677, 17
  %v766 = vpop.permute.xlu0 %765
  %767 = vrot.lane.b32.xlu0 %v681, 17
  %v768 = vpop.permute.xlu0 %767
  %769 = vrot.lane.b32.xlu0 %v685, 17
  %v770 = vpop.permute.xlu0 %769
  %771 = vrot.lane.b32.xlu0 %v689, 17
  %v772 = vpop.permute.xlu0 %771
  %773 = vrot.lane.b32.xlu0 %v693, 17
  %v774 = vpop.permute.xlu0 %773
  %775 = vrot.lane.b32.xlu0 %v697, 17
  %v776 = vpop.permute.xlu0 %775
  %777 = vrot.lane.b32.xlu0 %v701, 17
  %v778 = vpop.permute.xlu0 %777
  %811 = vrot.lane.b32.xlu0 %v670, 17
  %v812 = vpop.permute.xlu0 %811
  %813 = vrot.lane.b32.xlu0 %v671, 17
  %v814 = vpop.permute.xlu0 %813
  %815 = vrot.lane.b32.xlu0 %v672, 17
  %v816 = vpop.permute.xlu0 %815
  %817 = vrot.lane.b32.xlu0 %v674, 17
  %v818 = vpop.permute.xlu0 %817
  %819 = vrot.lane.b32.xlu0 %v675, 17
  %v820 = vpop.permute.xlu0 %819
  %821 = vrot.lane.b32.xlu0 %v676, 17
  %v822 = vpop.permute.xlu0 %821
  %823 = vrot.lane.b32.xlu0 %v678, 17
  %v824 = vpop.permute.xlu0 %823
  %825 = vrot.lane.b32.xlu0 %v679, 17
  %v826 = vpop.permute.xlu0 %825
  %827 = vrot.lane.b32.xlu0 %v680, 17
  %v828 = vpop.permute.xlu0 %827
  %829 = vrot.lane.b32.xlu0 %v682, 17
  %v830 = vpop.permute.xlu0 %829
  %831 = vrot.lane.b32.xlu0 %v683, 17
  %v832 = vpop.permute.xlu0 %831
  %833 = vrot.lane.b32.xlu0 %v684, 17
  %v834 = vpop.permute.xlu0 %833
  %835 = vrot.lane.b32.xlu0 %v686, 17
  %v836 = vpop.permute.xlu0 %835
  %837 = vrot.lane.b32.xlu0 %v687, 17
  %v838 = vpop.permute.xlu0 %837
  %839 = vrot.lane.b32.xlu0 %v688, 17
  %v840 = vpop.permute.xlu0 %839
  %841 = vrot.lane.b32.xlu0 %v690, 17
  %v842 = vpop.permute.xlu0 %841
  %843 = vrot.lane.b32.xlu0 %v691, 17
  %v844 = vpop.permute.xlu0 %843
  %845 = vrot.lane.b32.xlu0 %v692, 17
  %v846 = vpop.permute.xlu0 %845
  %847 = vrot.lane.b32.xlu0 %v694, 17
  %v848 = vpop.permute.xlu0 %847
  %849 = vrot.lane.b32.xlu0 %v695, 17
  %v850 = vpop.permute.xlu0 %849
  %851 = vrot.lane.b32.xlu0 %v696, 17
  %v852 = vpop.permute.xlu0 %851
  %853 = vrot.lane.b32.xlu0 %v698, 17
  %v854 = vpop.permute.xlu0 %853
  %855 = vrot.lane.b32.xlu0 %v699, 17
  %v856 = vpop.permute.xlu0 %855
  %857 = vrot.lane.b32.xlu0 %v700, 17
  %v858 = vpop.permute.xlu0 %857
  %vm859 = vcmask 138240
  %v860 = vsel %vm859, %v812, %v814
  %v861 = vsel %vm859, %v814, %v816
  %v862 = vsel %vm859, %v816, %v764
  %v863 = vsel %vm859, %v818, %v820
  %v864 = vsel %vm859, %v820, %v822
  %v865 = vsel %vm859, %v822, %v766
  %v866 = vsel %vm859, %v824, %v826
  %v867 = vsel %vm859, %v826, %v828
  %v868 = vsel %vm859, %v828, %v768
  %v869 = vsel %vm859, %v830, %v832
  %v870 = vsel %vm859, %v832, %v834
  %v871 = vsel %vm859, %v834, %v770
  %v872 = vsel %vm859, %v836, %v838
  %v873 = vsel %vm859, %v838, %v840
  %v874 = vsel %vm859, %v840, %v772
  %v875 = vsel %vm859, %v842, %v844
  %v876 = vsel %vm859, %v844, %v846
  %v877 = vsel %vm859, %v846, %v774
  %v878 = vsel %vm859, %v848, %v850
  %v879 = vsel %vm859, %v850, %v852
  %v880 = vsel %vm859, %v852, %v776
  %v881 = vsel %vm859, %v854, %v856
  %v882 = vsel %vm859, %v856, %v858
  %v883 = vsel %vm859, %v858, %v778
  %v916 = vsel %vm859, %v764, %v812
  %v917 = vsel %vm859, %v766, %v818
  %v918 = vsel %vm859, %v768, %v824
  %v919 = vsel %vm859, %v770, %v830
  %v920 = vsel %vm859, %v772, %v836
  %v921 = vsel %vm859, %v774, %v842
  %v922 = vsel %vm859, %v776, %v848
  %v923 = vsel %vm859, %v778, %v854
  %v924 = vsel %vm751, 1, 0
  %v925 = vsel %vm752, 1, 0
  %v926 = vsel %vm753, 1, 0
  %v927 = vsel %vm754, 1, 0
  %vm928 = vcmp.eq.s32.totalorder %v924, 1
  %vm929 = vcmp.eq.s32.totalorder %v925, 1
  %vm930 = vcmp.eq.s32.totalorder %v926, 1
  %vm931 = vcmp.eq.s32.totalorder %v927, 1
  %v932 = vsel %vm928, %v916, 0.0
  %v933 = vsel %vm929, %v860, 0.0
  %v934 = vsel %vm930, %v861, 0.0
  %v935 = vsel %vm931, %v862, 0.0
  %v936 = vsel %vm928, %v917, 0.0
  %v937 = vsel %vm929, %v863, 0.0
  %v938 = vsel %vm930, %v864, 0.0
  %v939 = vsel %vm931, %v865, 0.0
  %v940 = vsel %vm928, %v918, 0.0
  %v941 = vsel %vm929, %v866, 0.0
  %v942 = vsel %vm930, %v867, 0.0
  %v943 = vsel %vm931, %v868, 0.0
  %v944 = vsel %vm928, %v919, 0.0
  %v945 = vsel %vm929, %v869, 0.0
  %v946 = vsel %vm930, %v870, 0.0
  %v947 = vsel %vm931, %v871, 0.0
  %v948 = vsel %vm928, %v920, 0.0
  %v949 = vsel %vm929, %v872, 0.0
  %v950 = vsel %vm930, %v873, 0.0
  %v951 = vsel %vm931, %v874, 0.0
  %v952 = vsel %vm928, %v921, 0.0
  %v953 = vsel %vm929, %v875, 0.0
  %v954 = vsel %vm930, %v876, 0.0
  %v955 = vsel %vm931, %v877, 0.0
  %v956 = vsel %vm928, %v922, 0.0
  %v957 = vsel %vm929, %v878, 0.0
  %v958 = vsel %vm930, %v879, 0.0
  %v959 = vsel %vm931, %v880, 0.0
  %v960 = vsel %vm928, %v923, 0.0
  %v961 = vsel %vm929, %v881, 0.0
  %v962 = vsel %vm930, %v882, 0.0
  %v963 = vsel %vm931, %v883, 0.0
  %v964 = vmax.f32 %v670, %v932
  %v965 = vmax.f32 %v671, %v933
  %v966 = vmax.f32 %v672, %v934
  %v967 = vmax.f32 %v673, %v935
  %v968 = vmax.f32 %v674, %v936
  %v969 = vmax.f32 %v675, %v937
  %v970 = vmax.f32 %v676, %v938
  %v971 = vmax.f32 %v677, %v939
  %v972 = vmax.f32 %v678, %v940
  %v973 = vmax.f32 %v679, %v941
  %v974 = vmax.f32 %v680, %v942
  %v975 = vmax.f32 %v681, %v943
  %v976 = vmax.f32 %v682, %v944
  %v977 = vmax.f32 %v683, %v945
  %v978 = vmax.f32 %v684, %v946
  %v979 = vmax.f32 %v685, %v947
  %v980 = vmax.f32 %v686, %v948
  %v981 = vmax.f32 %v687, %v949
  %v982 = vmax.f32 %v688, %v950
  %v983 = vmax.f32 %v689, %v951
  %v984 = vmax.f32 %v690, %v952
  %v985 = vmax.f32 %v691, %v953
  %v986 = vmax.f32 %v692, %v954
  %v987 = vmax.f32 %v693, %v955
  %v988 = vmax.f32 %v694, %v956
  %v989 = vmax.f32 %v695, %v957
  %v990 = vmax.f32 %v696, %v958
  %v991 = vmax.f32 %v697, %v959
  %v992 = vmax.f32 %v698, %v960
  %v993 = vmax.f32 %v699, %v961
  %v994 = vmax.f32 %v700, %v962
  %v995 = vmax.f32 %v701, %v963
  %vm996 = vcmp.ge.s32.totalorder %v715, 0
  %vm997 = vcmp.ge.s32.totalorder %v716, 0
  %vm998 = vcmp.ge.s32.totalorder %v717, 0
  %vm999 = vcmp.ge.s32.totalorder %v718, 0
  %vm1000 = vmand %vm731, %vm996
  %vm1001 = vmand %vm732, %vm997
  %vm1002 = vmand %vm733, %vm998
  %vm1003 = vmand %vm734, %vm999
  %vm1004 = vcmp.lt.s32.totalorder %v715, 16
  %vm1005 = vcmp.lt.s32.totalorder %v716, 16
  %vm1006 = vcmp.lt.s32.totalorder %v717, 16
  %vm1007 = vcmp.lt.s32.totalorder %v718, 16
  %vm1008 = vmand %vm1000, %vm1004
  %vm1009 = vmand %vm1001, %vm1005
  %vm1010 = vmand %vm1002, %vm1006
  %vm1011 = vmand %vm1003, %vm1007
  %1012 = vrot.lane.b32.xlu0 %v673, 16
  %v1013 = vpop.permute.xlu0 %1012
  %1014 = vrot.lane.b32.xlu0 %v677, 16
  %v1015 = vpop.permute.xlu0 %1014
  %1016 = vrot.lane.b32.xlu0 %v681, 16
  %v1017 = vpop.permute.xlu0 %1016
  %1018 = vrot.lane.b32.xlu0 %v685, 16
  %v1019 = vpop.permute.xlu0 %1018
  %1020 = vrot.lane.b32.xlu0 %v689, 16
  %v1021 = vpop.permute.xlu0 %1020
  %1022 = vrot.lane.b32.xlu0 %v693, 16
  %v1023 = vpop.permute.xlu0 %1022
  %1024 = vrot.lane.b32.xlu0 %v697, 16
  %v1025 = vpop.permute.xlu0 %1024
  %1026 = vrot.lane.b32.xlu0 %v701, 16
  %v1027 = vpop.permute.xlu0 %1026
  %1036 = vrot.lane.b32.xlu0 %v670, 16
  %v1037 = vpop.permute.xlu0 %1036
  %1038 = vrot.lane.b32.xlu0 %v671, 16
  %v1039 = vpop.permute.xlu0 %1038
  %1040 = vrot.lane.b32.xlu0 %v672, 16
  %v1041 = vpop.permute.xlu0 %1040
  %1042 = vrot.lane.b32.xlu0 %v674, 16
  %v1043 = vpop.permute.xlu0 %1042
  %1044 = vrot.lane.b32.xlu0 %v675, 16
  %v1045 = vpop.permute.xlu0 %1044
  %1046 = vrot.lane.b32.xlu0 %v676, 16
  %v1047 = vpop.permute.xlu0 %1046
  %1048 = vrot.lane.b32.xlu0 %v678, 16
  %v1049 = vpop.permute.xlu0 %1048
  %1050 = vrot.lane.b32.xlu0 %v679, 16
  %v1051 = vpop.permute.xlu0 %1050
  %1052 = vrot.lane.b32.xlu0 %v680, 16
  %v1053 = vpop.permute.xlu0 %1052
  %1054 = vrot.lane.b32.xlu0 %v682, 16
  %v1055 = vpop.permute.xlu0 %1054
  %1056 = vrot.lane.b32.xlu0 %v683, 16
  %v1057 = vpop.permute.xlu0 %1056
  %1058 = vrot.lane.b32.xlu0 %v684, 16
  %v1059 = vpop.permute.xlu0 %1058
  %1060 = vrot.lane.b32.xlu0 %v686, 16
  %v1061 = vpop.permute.xlu0 %1060
  %1062 = vrot.lane.b32.xlu0 %v687, 16
  %v1063 = vpop.permute.xlu0 %1062
  %1064 = vrot.lane.b32.xlu0 %v688, 16
  %v1065 = vpop.permute.xlu0 %1064
  %1066 = vrot.lane.b32.xlu0 %v690, 16
  %v1067 = vpop.permute.xlu0 %1066
  %1068 = vrot.lane.b32.xlu0 %v691, 16
  %v1069 = vpop.permute.xlu0 %1068
  %1070 = vrot.lane.b32.xlu0 %v692, 16
  %v1071 = vpop.permute.xlu0 %1070
  %1072 = vrot.lane.b32.xlu0 %v694, 16
  %v1073 = vpop.permute.xlu0 %1072
  %1074 = vrot.lane.b32.xlu0 %v695, 16
  %v1075 = vpop.permute.xlu0 %1074
  %1076 = vrot.lane.b32.xlu0 %v696, 16
  %v1077 = vpop.permute.xlu0 %1076
  %1078 = vrot.lane.b32.xlu0 %v698, 16
  %v1079 = vpop.permute.xlu0 %1078
  %1080 = vrot.lane.b32.xlu0 %v699, 16
  %v1081 = vpop.permute.xlu0 %1080
  %1082 = vrot.lane.b32.xlu0 %v700, 16
  %v1083 = vpop.permute.xlu0 %1082
  %vm1084 = vcmask 130048
  %v1085 = vsel %vm1084, %v1037, %v1039
  %v1086 = vsel %vm1084, %v1039, %v1041
  %v1087 = vsel %vm1084, %v1041, %v1013
  %v1088 = vsel %vm1084, %v1043, %v1045
  %v1089 = vsel %vm1084, %v1045, %v1047
  %v1090 = vsel %vm1084, %v1047, %v1015
  %v1091 = vsel %vm1084, %v1049, %v1051
  %v1092 = vsel %vm1084, %v1051, %v1053
  %v1093 = vsel %vm1084, %v1053, %v1017
  %v1094 = vsel %vm1084, %v1055, %v1057
  %v1095 = vsel %vm1084, %v1057, %v1059
  %v1096 = vsel %vm1084, %v1059, %v1019
  %v1097 = vsel %vm1084, %v1061, %v1063
  %v1098 = vsel %vm1084, %v1063, %v1065
  %v1099 = vsel %vm1084, %v1065, %v1021
  %v1100 = vsel %vm1084, %v1067, %v1069
  %v1101 = vsel %vm1084, %v1069, %v1071
  %v1102 = vsel %vm1084, %v1071, %v1023
  %v1103 = vsel %vm1084, %v1073, %v1075
  %v1104 = vsel %vm1084, %v1075, %v1077
  %v1105 = vsel %vm1084, %v1077, %v1025
  %v1106 = vsel %vm1084, %v1079, %v1081
  %v1107 = vsel %vm1084, %v1081, %v1083
  %v1108 = vsel %vm1084, %v1083, %v1027
  %v1141 = vsel %vm1084, %v1013, %v1037
  %v1142 = vsel %vm1084, %v1015, %v1043
  %v1143 = vsel %vm1084, %v1017, %v1049
  %v1144 = vsel %vm1084, %v1019, %v1055
  %v1145 = vsel %vm1084, %v1021, %v1061
  %v1146 = vsel %vm1084, %v1023, %v1067
  %v1147 = vsel %vm1084, %v1025, %v1073
  %v1148 = vsel %vm1084, %v1027, %v1079
  %v1149 = vsel %vm1008, 1, 0
  %v1150 = vsel %vm1009, 1, 0
  %v1151 = vsel %vm1010, 1, 0
  %v1152 = vsel %vm1011, 1, 0
  %vm1153 = vcmp.eq.s32.totalorder %v1149, 1
  %vm1154 = vcmp.eq.s32.totalorder %v1150, 1
  %vm1155 = vcmp.eq.s32.totalorder %v1151, 1
  %vm1156 = vcmp.eq.s32.totalorder %v1152, 1
  %v1157 = vsel %vm1153, %v1141, 0.0
  %v1158 = vsel %vm1154, %v1085, 0.0
  %v1159 = vsel %vm1155, %v1086, 0.0
  %v1160 = vsel %vm1156, %v1087, 0.0
  %v1161 = vsel %vm1153, %v1142, 0.0
  %v1162 = vsel %vm1154, %v1088, 0.0
  %v1163 = vsel %vm1155, %v1089, 0.0
  %v1164 = vsel %vm1156, %v1090, 0.0
  %v1165 = vsel %vm1153, %v1143, 0.0
  %v1166 = vsel %vm1154, %v1091, 0.0
  %v1167 = vsel %vm1155, %v1092, 0.0
  %v1168 = vsel %vm1156, %v1093, 0.0
  %v1169 = vsel %vm1153, %v1144, 0.0
  %v1170 = vsel %vm1154, %v1094, 0.0
  %v1171 = vsel %vm1155, %v1095, 0.0
  %v1172 = vsel %vm1156, %v1096, 0.0
  %v1173 = vsel %vm1153, %v1145, 0.0
  %v1174 = vsel %vm1154, %v1097, 0.0
  %v1175 = vsel %vm1155, %v1098, 0.0
  %v1176 = vsel %vm1156, %v1099, 0.0
  %v1177 = vsel %vm1153, %v1146, 0.0
  %v1178 = vsel %vm1154, %v1100, 0.0
  %v1179 = vsel %vm1155, %v1101, 0.0
  %v1180 = vsel %vm1156, %v1102, 0.0
  %v1181 = vsel %vm1153, %v1147, 0.0
  %v1182 = vsel %vm1154, %v1103, 0.0
  %v1183 = vsel %vm1155, %v1104, 0.0
  %v1184 = vsel %vm1156, %v1105, 0.0
  %v1185 = vsel %vm1153, %v1148, 0.0
  %v1186 = vsel %vm1154, %v1106, 0.0
  %v1187 = vsel %vm1155, %v1107, 0.0
  %v1188 = vsel %vm1156, %v1108, 0.0
  %v1189 = vmax.f32 %v964, %v1157
  %v1190 = vmax.f32 %v965, %v1158
  %v1191 = vmax.f32 %v966, %v1159
  %v1192 = vmax.f32 %v967, %v1160
  %v1193 = vmax.f32 %v968, %v1161
  %v1194 = vmax.f32 %v969, %v1162
  %v1195 = vmax.f32 %v970, %v1163
  %v1196 = vmax.f32 %v971, %v1164
  %v1197 = vmax.f32 %v972, %v1165
  %v1198 = vmax.f32 %v973, %v1166
  %v1199 = vmax.f32 %v974, %v1167
  %v1200 = vmax.f32 %v975, %v1168
  %v1201 = vmax.f32 %v976, %v1169
  %v1202 = vmax.f32 %v977, %v1170
  %v1203 = vmax.f32 %v978, %v1171
  %v1204 = vmax.f32 %v979, %v1172
  %v1205 = vmax.f32 %v980, %v1173
  %v1206 = vmax.f32 %v981, %v1174
  %v1207 = vmax.f32 %v982, %v1175
  %v1208 = vmax.f32 %v983, %v1176
  %v1209 = vmax.f32 %v984, %v1177
  %v1210 = vmax.f32 %v985, %v1178
  %v1211 = vmax.f32 %v986, %v1179
  %v1212 = vmax.f32 %v987, %v1180
  %v1213 = vmax.f32 %v988, %v1181
  %v1214 = vmax.f32 %v989, %v1182
  %v1215 = vmax.f32 %v990, %v1183
  %v1216 = vmax.f32 %v991, %v1184
  %v1217 = vmax.f32 %v992, %v1185
  %v1218 = vmax.f32 %v993, %v1186
  %v1219 = vmax.f32 %v994, %v1187
  %v1220 = vmax.f32 %v995, %v1188
  %v1221 = vadd.s32 %v715, 1
  %v1222 = vadd.s32 %v716, 1
  %v1223 = vadd.s32 %v717, 1
  %v1224 = vadd.s32 %v718, 1
  %vm1225 = vcmp.ge.s32.totalorder %v1221, 0
  %vm1226 = vcmp.ge.s32.totalorder %v1222, 0
  %vm1227 = vcmp.ge.s32.totalorder %v1223, 0
  %vm1228 = vcmp.ge.s32.totalorder %v1224, 0
  %vm1229 = vmand %vm731, %vm1225
  %vm1230 = vmand %vm732, %vm1226
  %vm1231 = vmand %vm733, %vm1227
  %vm1232 = vmand %vm734, %vm1228
  %vm1233 = vcmp.lt.s32.totalorder %v1221, 16
  %vm1234 = vcmp.lt.s32.totalorder %v1222, 16
  %vm1235 = vcmp.lt.s32.totalorder %v1223, 16
  %vm1236 = vcmp.lt.s32.totalorder %v1224, 16
  %vm1237 = vmand %vm1229, %vm1233
  %vm1238 = vmand %vm1230, %vm1234
  %vm1239 = vmand %vm1231, %vm1235
  %vm1240 = vmand %vm1232, %vm1236
  %1241 = vrot.lane.b32.xlu0 %v673, 15
  %v1242 = vpop.permute.xlu0 %1241
  %1243 = vrot.lane.b32.xlu0 %v677, 15
  %v1244 = vpop.permute.xlu0 %1243
  %1245 = vrot.lane.b32.xlu0 %v681, 15
  %v1246 = vpop.permute.xlu0 %1245
  %1247 = vrot.lane.b32.xlu0 %v685, 15
  %v1248 = vpop.permute.xlu0 %1247
  %1249 = vrot.lane.b32.xlu0 %v689, 15
  %v1250 = vpop.permute.xlu0 %1249
  %1251 = vrot.lane.b32.xlu0 %v693, 15
  %v1252 = vpop.permute.xlu0 %1251
  %1253 = vrot.lane.b32.xlu0 %v697, 15
  %v1254 = vpop.permute.xlu0 %1253
  %1255 = vrot.lane.b32.xlu0 %v701, 15
  %v1256 = vpop.permute.xlu0 %1255
  %1265 = vrot.lane.b32.xlu0 %v670, 15
  %v1266 = vpop.permute.xlu0 %1265
  %1267 = vrot.lane.b32.xlu0 %v671, 15
  %v1268 = vpop.permute.xlu0 %1267
  %1269 = vrot.lane.b32.xlu0 %v672, 15
  %v1270 = vpop.permute.xlu0 %1269
  %1271 = vrot.lane.b32.xlu0 %v674, 15
  %v1272 = vpop.permute.xlu0 %1271
  %1273 = vrot.lane.b32.xlu0 %v675, 15
  %v1274 = vpop.permute.xlu0 %1273
  %1275 = vrot.lane.b32.xlu0 %v676, 15
  %v1276 = vpop.permute.xlu0 %1275
  %1277 = vrot.lane.b32.xlu0 %v678, 15
  %v1278 = vpop.permute.xlu0 %1277
  %1279 = vrot.lane.b32.xlu0 %v679, 15
  %v1280 = vpop.permute.xlu0 %1279
  %1281 = vrot.lane.b32.xlu0 %v680, 15
  %v1282 = vpop.permute.xlu0 %1281
  %1283 = vrot.lane.b32.xlu0 %v682, 15
  %v1284 = vpop.permute.xlu0 %1283
  %1285 = vrot.lane.b32.xlu0 %v683, 15
  %v1286 = vpop.permute.xlu0 %1285
  %1287 = vrot.lane.b32.xlu0 %v684, 15
  %v1288 = vpop.permute.xlu0 %1287
  %1289 = vrot.lane.b32.xlu0 %v686, 15
  %v1290 = vpop.permute.xlu0 %1289
  %1291 = vrot.lane.b32.xlu0 %v687, 15
  %v1292 = vpop.permute.xlu0 %1291
  %1293 = vrot.lane.b32.xlu0 %v688, 15
  %v1294 = vpop.permute.xlu0 %1293
  %1295 = vrot.lane.b32.xlu0 %v690, 15
  %v1296 = vpop.permute.xlu0 %1295
  %1297 = vrot.lane.b32.xlu0 %v691, 15
  %v1298 = vpop.permute.xlu0 %1297
  %1299 = vrot.lane.b32.xlu0 %v692, 15
  %v1300 = vpop.permute.xlu0 %1299
  %1301 = vrot.lane.b32.xlu0 %v694, 15
  %v1302 = vpop.permute.xlu0 %1301
  %1303 = vrot.lane.b32.xlu0 %v695, 15
  %v1304 = vpop.permute.xlu0 %1303
  %1305 = vrot.lane.b32.xlu0 %v696, 15
  %v1306 = vpop.permute.xlu0 %1305
  %1307 = vrot.lane.b32.xlu0 %v698, 15
  %v1308 = vpop.permute.xlu0 %1307
  %1309 = vrot.lane.b32.xlu0 %v699, 15
  %v1310 = vpop.permute.xlu0 %1309
  %1311 = vrot.lane.b32.xlu0 %v700, 15
  %v1312 = vpop.permute.xlu0 %1311
  %vm1313 = vcmask 121856
  %v1314 = vsel %vm1313, %v1266, %v1268
  %v1315 = vsel %vm1313, %v1268, %v1270
  %v1316 = vsel %vm1313, %v1270, %v1242
  %v1317 = vsel %vm1313, %v1272, %v1274
  %v1318 = vsel %vm1313, %v1274, %v1276
  %v1319 = vsel %vm1313, %v1276, %v1244
  %v1320 = vsel %vm1313, %v1278, %v1280
  %v1321 = vsel %vm1313, %v1280, %v1282
  %v1322 = vsel %vm1313, %v1282, %v1246
  %v1323 = vsel %vm1313, %v1284, %v1286
  %v1324 = vsel %vm1313, %v1286, %v1288
  %v1325 = vsel %vm1313, %v1288, %v1248
  %v1326 = vsel %vm1313, %v1290, %v1292
  %v1327 = vsel %vm1313, %v1292, %v1294
  %v1328 = vsel %vm1313, %v1294, %v1250
  %v1329 = vsel %vm1313, %v1296, %v1298
  %v1330 = vsel %vm1313, %v1298, %v1300
  %v1331 = vsel %vm1313, %v1300, %v1252
  %v1332 = vsel %vm1313, %v1302, %v1304
  %v1333 = vsel %vm1313, %v1304, %v1306
  %v1334 = vsel %vm1313, %v1306, %v1254
  %v1335 = vsel %vm1313, %v1308, %v1310
  %v1336 = vsel %vm1313, %v1310, %v1312
  %v1337 = vsel %vm1313, %v1312, %v1256
  %v1370 = vsel %vm1313, %v1242, %v1266
  %v1371 = vsel %vm1313, %v1244, %v1272
  %v1372 = vsel %vm1313, %v1246, %v1278
  %v1373 = vsel %vm1313, %v1248, %v1284
  %v1374 = vsel %vm1313, %v1250, %v1290
  %v1375 = vsel %vm1313, %v1252, %v1296
  %v1376 = vsel %vm1313, %v1254, %v1302
  %v1377 = vsel %vm1313, %v1256, %v1308
  %v1378 = vsel %vm1237, 1, 0
  %v1379 = vsel %vm1238, 1, 0
  %v1380 = vsel %vm1239, 1, 0
  %v1381 = vsel %vm1240, 1, 0
  %vm1382 = vcmp.eq.s32.totalorder %v1378, 1
  %vm1383 = vcmp.eq.s32.totalorder %v1379, 1
  %vm1384 = vcmp.eq.s32.totalorder %v1380, 1
  %vm1385 = vcmp.eq.s32.totalorder %v1381, 1
  %v1386 = vsel %vm1382, %v1370, 0.0
  %v1387 = vsel %vm1383, %v1314, 0.0
  %v1388 = vsel %vm1384, %v1315, 0.0
  %v1389 = vsel %vm1385, %v1316, 0.0
  %v1390 = vsel %vm1382, %v1371, 0.0
  %v1391 = vsel %vm1383, %v1317, 0.0
  %v1392 = vsel %vm1384, %v1318, 0.0
  %v1393 = vsel %vm1385, %v1319, 0.0
  %v1394 = vsel %vm1382, %v1372, 0.0
  %v1395 = vsel %vm1383, %v1320, 0.0
  %v1396 = vsel %vm1384, %v1321, 0.0
  %v1397 = vsel %vm1385, %v1322, 0.0
  %v1398 = vsel %vm1382, %v1373, 0.0
  %v1399 = vsel %vm1383, %v1323, 0.0
  %v1400 = vsel %vm1384, %v1324, 0.0
  %v1401 = vsel %vm1385, %v1325, 0.0
  %v1402 = vsel %vm1382, %v1374, 0.0
  %v1403 = vsel %vm1383, %v1326, 0.0
  %v1404 = vsel %vm1384, %v1327, 0.0
  %v1405 = vsel %vm1385, %v1328, 0.0
  %v1406 = vsel %vm1382, %v1375, 0.0
  %v1407 = vsel %vm1383, %v1329, 0.0
  %v1408 = vsel %vm1384, %v1330, 0.0
  %v1409 = vsel %vm1385, %v1331, 0.0
  %v1410 = vsel %vm1382, %v1376, 0.0
  %v1411 = vsel %vm1383, %v1332, 0.0
  %v1412 = vsel %vm1384, %v1333, 0.0
  %v1413 = vsel %vm1385, %v1334, 0.0
  %v1414 = vsel %vm1382, %v1377, 0.0
  %v1415 = vsel %vm1383, %v1335, 0.0
  %v1416 = vsel %vm1384, %v1336, 0.0
  %v1417 = vsel %vm1385, %v1337, 0.0
  %v1418 = vmax.f32 %v1189, %v1386
  %v1419 = vmax.f32 %v1190, %v1387
  %v1420 = vmax.f32 %v1191, %v1388
  %v1421 = vmax.f32 %v1192, %v1389
  %v1422 = vmax.f32 %v1193, %v1390
  %v1423 = vmax.f32 %v1194, %v1391
  %v1424 = vmax.f32 %v1195, %v1392
  %v1425 = vmax.f32 %v1196, %v1393
  %v1426 = vmax.f32 %v1197, %v1394
  %v1427 = vmax.f32 %v1198, %v1395
  %v1428 = vmax.f32 %v1199, %v1396
  %v1429 = vmax.f32 %v1200, %v1397
  %v1430 = vmax.f32 %v1201, %v1398
  %v1431 = vmax.f32 %v1202, %v1399
  %v1432 = vmax.f32 %v1203, %v1400
  %v1433 = vmax.f32 %v1204, %v1401
  %v1434 = vmax.f32 %v1205, %v1402
  %v1435 = vmax.f32 %v1206, %v1403
  %v1436 = vmax.f32 %v1207, %v1404
  %v1437 = vmax.f32 %v1208, %v1405
  %v1438 = vmax.f32 %v1209, %v1406
  %v1439 = vmax.f32 %v1210, %v1407
  %v1440 = vmax.f32 %v1211, %v1408
  %v1441 = vmax.f32 %v1212, %v1409
  %v1442 = vmax.f32 %v1213, %v1410
  %v1443 = vmax.f32 %v1214, %v1411
  %v1444 = vmax.f32 %v1215, %v1412
  %v1445 = vmax.f32 %v1216, %v1413
  %v1446 = vmax.f32 %v1217, %v1414
  %v1447 = vmax.f32 %v1218, %v1415
  %v1448 = vmax.f32 %v1219, %v1416
  %v1449 = vmax.f32 %v1220, %v1417
  %vm1450 = vcmp.ge.s32.totalorder %v711, 0
  %vm1451 = vcmp.ge.s32.totalorder %v712, 0
  %vm1452 = vcmp.ge.s32.totalorder %v713, 0
  %vm1453 = vcmp.ge.s32.totalorder %v714, 0
  %vm1454 = vcmp.lt.s32.totalorder %v711, 16
  %vm1455 = vcmp.lt.s32.totalorder %v712, 16
  %vm1456 = vcmp.lt.s32.totalorder %v713, 16
  %vm1457 = vcmp.lt.s32.totalorder %v714, 16
  %vm1458 = vmand %vm1450, %vm1454
  %vm1459 = vmand %vm1451, %vm1455
  %vm1460 = vmand %vm1452, %vm1456
  %vm1461 = vmand %vm1453, %vm1457
  %vm1462 = vmand %vm1458, %vm739
  %vm1463 = vmand %vm1459, %vm740
  %vm1464 = vmand %vm1460, %vm741
  %vm1465 = vmand %vm1461, %vm742
  %vm1466 = vmand %vm1462, %vm747
  %vm1467 = vmand %vm1463, %vm748
  %vm1468 = vmand %vm1464, %vm749
  %vm1469 = vmand %vm1465, %vm750
  %1470 = vrot.lane.b32.xlu0 %v673, 1
  %v1471 = vpop.permute.xlu0 %1470
  %1472 = vrot.lane.b32.xlu0 %v677, 1
  %v1473 = vpop.permute.xlu0 %1472
  %1474 = vrot.lane.b32.xlu0 %v681, 1
  %v1475 = vpop.permute.xlu0 %1474
  %1476 = vrot.lane.b32.xlu0 %v685, 1
  %v1477 = vpop.permute.xlu0 %1476
  %1478 = vrot.lane.b32.xlu0 %v689, 1
  %v1479 = vpop.permute.xlu0 %1478
  %1480 = vrot.lane.b32.xlu0 %v693, 1
  %v1481 = vpop.permute.xlu0 %1480
  %1482 = vrot.lane.b32.xlu0 %v697, 1
  %v1483 = vpop.permute.xlu0 %1482
  %1484 = vrot.lane.b32.xlu0 %v701, 1
  %v1485 = vpop.permute.xlu0 %1484
  %1494 = vrot.lane.b32.xlu0 %v670, 1
  %v1495 = vpop.permute.xlu0 %1494
  %1496 = vrot.lane.b32.xlu0 %v671, 1
  %v1497 = vpop.permute.xlu0 %1496
  %1498 = vrot.lane.b32.xlu0 %v672, 1
  %v1499 = vpop.permute.xlu0 %1498
  %1500 = vrot.lane.b32.xlu0 %v674, 1
  %v1501 = vpop.permute.xlu0 %1500
  %1502 = vrot.lane.b32.xlu0 %v675, 1
  %v1503 = vpop.permute.xlu0 %1502
  %1504 = vrot.lane.b32.xlu0 %v676, 1
  %v1505 = vpop.permute.xlu0 %1504
  %1506 = vrot.lane.b32.xlu0 %v678, 1
  %v1507 = vpop.permute.xlu0 %1506
  %1508 = vrot.lane.b32.xlu0 %v679, 1
  %v1509 = vpop.permute.xlu0 %1508
  %1510 = vrot.lane.b32.xlu0 %v680, 1
  %v1511 = vpop.permute.xlu0 %1510
  %1512 = vrot.lane.b32.xlu0 %v682, 1
  %v1513 = vpop.permute.xlu0 %1512
  %1514 = vrot.lane.b32.xlu0 %v683, 1
  %v1515 = vpop.permute.xlu0 %1514
  %1516 = vrot.lane.b32.xlu0 %v684, 1
  %v1517 = vpop.permute.xlu0 %1516
  %1518 = vrot.lane.b32.xlu0 %v686, 1
  %v1519 = vpop.permute.xlu0 %1518
  %1520 = vrot.lane.b32.xlu0 %v687, 1
  %v1521 = vpop.permute.xlu0 %1520
  %1522 = vrot.lane.b32.xlu0 %v688, 1
  %v1523 = vpop.permute.xlu0 %1522
  %1524 = vrot.lane.b32.xlu0 %v690, 1
  %v1525 = vpop.permute.xlu0 %1524
  %1526 = vrot.lane.b32.xlu0 %v691, 1
  %v1527 = vpop.permute.xlu0 %1526
  %1528 = vrot.lane.b32.xlu0 %v692, 1
  %v1529 = vpop.permute.xlu0 %1528
  %1530 = vrot.lane.b32.xlu0 %v694, 1
  %v1531 = vpop.permute.xlu0 %1530
  %1532 = vrot.lane.b32.xlu0 %v695, 1
  %v1533 = vpop.permute.xlu0 %1532
  %1534 = vrot.lane.b32.xlu0 %v696, 1
  %v1535 = vpop.permute.xlu0 %1534
  %1536 = vrot.lane.b32.xlu0 %v698, 1
  %v1537 = vpop.permute.xlu0 %1536
  %1538 = vrot.lane.b32.xlu0 %v699, 1
  %v1539 = vpop.permute.xlu0 %1538
  %1540 = vrot.lane.b32.xlu0 %v700, 1
  %v1541 = vpop.permute.xlu0 %1540
  %vm1542 = vcmask 7168
  %v1543 = vsel %vm1542, %v1495, %v1497
  %v1544 = vsel %vm1542, %v1497, %v1499
  %v1545 = vsel %vm1542, %v1499, %v1471
  %v1546 = vsel %vm1542, %v1501, %v1503
  %v1547 = vsel %vm1542, %v1503, %v1505
  %v1548 = vsel %vm1542, %v1505, %v1473
  %v1549 = vsel %vm1542, %v1507, %v1509
  %v1550 = vsel %vm1542, %v1509, %v1511
  %v1551 = vsel %vm1542, %v1511, %v1475
  %v1552 = vsel %vm1542, %v1513, %v1515
  %v1553 = vsel %vm1542, %v1515, %v1517
  %v1554 = vsel %vm1542, %v1517, %v1477
  %v1555 = vsel %vm1542, %v1519, %v1521
  %v1556 = vsel %vm1542, %v1521, %v1523
  %v1557 = vsel %vm1542, %v1523, %v1479
  %v1558 = vsel %vm1542, %v1525, %v1527
  %v1559 = vsel %vm1542, %v1527, %v1529
  %v1560 = vsel %vm1542, %v1529, %v1481
  %v1561 = vsel %vm1542, %v1531, %v1533
  %v1562 = vsel %vm1542, %v1533, %v1535
  %v1563 = vsel %vm1542, %v1535, %v1483
  %v1564 = vsel %vm1542, %v1537, %v1539
  %v1565 = vsel %vm1542, %v1539, %v1541
  %v1566 = vsel %vm1542, %v1541, %v1485
  %v1599 = vsel %vm1542, %v1471, %v1495
  %v1600 = vsel %vm1542, %v1473, %v1501
  %v1601 = vsel %vm1542, %v1475, %v1507
  %v1602 = vsel %vm1542, %v1477, %v1513
  %v1603 = vsel %vm1542, %v1479, %v1519
  %v1604 = vsel %vm1542, %v1481, %v1525
  %v1605 = vsel %vm1542, %v1483, %v1531
  %v1606 = vsel %vm1542, %v1485, %v1537
  %v1607 = vsel %vm1466, 1, 0
  %v1608 = vsel %vm1467, 1, 0
  %v1609 = vsel %vm1468, 1, 0
  %v1610 = vsel %vm1469, 1, 0
  %vm1611 = vcmp.eq.s32.totalorder %v1607, 1
  %vm1612 = vcmp.eq.s32.totalorder %v1608, 1
  %vm1613 = vcmp.eq.s32.totalorder %v1609, 1
  %vm1614 = vcmp.eq.s32.totalorder %v1610, 1
  %v1615 = vsel %vm1611, %v1599, 0.0
  %v1616 = vsel %vm1612, %v1543, 0.0
  %v1617 = vsel %vm1613, %v1544, 0.0
  %v1618 = vsel %vm1614, %v1545, 0.0
  %v1619 = vsel %vm1611, %v1600, 0.0
  %v1620 = vsel %vm1612, %v1546, 0.0
  %v1621 = vsel %vm1613, %v1547, 0.0
  %v1622 = vsel %vm1614, %v1548, 0.0
  %v1623 = vsel %vm1611, %v1601, 0.0
  %v1624 = vsel %vm1612, %v1549, 0.0
  %v1625 = vsel %vm1613, %v1550, 0.0
  %v1626 = vsel %vm1614, %v1551, 0.0
  %v1627 = vsel %vm1611, %v1602, 0.0
  %v1628 = vsel %vm1612, %v1552, 0.0
  %v1629 = vsel %vm1613, %v1553, 0.0
  %v1630 = vsel %vm1614, %v1554, 0.0
  %v1631 = vsel %vm1611, %v1603, 0.0
  %v1632 = vsel %vm1612, %v1555, 0.0
  %v1633 = vsel %vm1613, %v1556, 0.0
  %v1634 = vsel %vm1614, %v1557, 0.0
  %v1635 = vsel %vm1611, %v1604, 0.0
  %v1636 = vsel %vm1612, %v1558, 0.0
  %v1637 = vsel %vm1613, %v1559, 0.0
  %v1638 = vsel %vm1614, %v1560, 0.0
  %v1639 = vsel %vm1611, %v1605, 0.0
  %v1640 = vsel %vm1612, %v1561, 0.0
  %v1641 = vsel %vm1613, %v1562, 0.0
  %v1642 = vsel %vm1614, %v1563, 0.0
  %v1643 = vsel %vm1611, %v1606, 0.0
  %v1644 = vsel %vm1612, %v1564, 0.0
  %v1645 = vsel %vm1613, %v1565, 0.0
  %v1646 = vsel %vm1614, %v1566, 0.0
  %v1647 = vmax.f32 %v1418, %v1615
  %v1648 = vmax.f32 %v1419, %v1616
  %v1649 = vmax.f32 %v1420, %v1617
  %v1650 = vmax.f32 %v1421, %v1618
  %v1651 = vmax.f32 %v1422, %v1619
  %v1652 = vmax.f32 %v1423, %v1620
  %v1653 = vmax.f32 %v1424, %v1621
  %v1654 = vmax.f32 %v1425, %v1622
  %v1655 = vmax.f32 %v1426, %v1623
  %v1656 = vmax.f32 %v1427, %v1624
  %v1657 = vmax.f32 %v1428, %v1625
  %v1658 = vmax.f32 %v1429, %v1626
  %v1659 = vmax.f32 %v1430, %v1627
  %v1660 = vmax.f32 %v1431, %v1628
  %v1661 = vmax.f32 %v1432, %v1629
  %v1662 = vmax.f32 %v1433, %v1630
  %v1663 = vmax.f32 %v1434, %v1631
  %v1664 = vmax.f32 %v1435, %v1632
  %v1665 = vmax.f32 %v1436, %v1633
  %v1666 = vmax.f32 %v1437, %v1634
  %v1667 = vmax.f32 %v1438, %v1635
  %v1668 = vmax.f32 %v1439, %v1636
  %v1669 = vmax.f32 %v1440, %v1637
  %v1670 = vmax.f32 %v1441, %v1638
  %v1671 = vmax.f32 %v1442, %v1639
  %v1672 = vmax.f32 %v1443, %v1640
  %v1673 = vmax.f32 %v1444, %v1641
  %v1674 = vmax.f32 %v1445, %v1642
  %v1675 = vmax.f32 %v1446, %v1643
  %v1676 = vmax.f32 %v1447, %v1644
  %v1677 = vmax.f32 %v1448, %v1645
  %v1678 = vmax.f32 %v1449, %v1646
  %vm1679 = vmand %vm1458, %vm1225
  %vm1680 = vmand %vm1459, %vm1226
  %vm1681 = vmand %vm1460, %vm1227
  %vm1682 = vmand %vm1461, %vm1228
  %vm1683 = vmand %vm1679, %vm1233
  %vm1684 = vmand %vm1680, %vm1234
  %vm1685 = vmand %vm1681, %vm1235
  %vm1686 = vmand %vm1682, %vm1236
  %1687 = vrot.lane.b32.xlu0 %v670, 127
  %v1688 = vpop.permute.xlu0 %1687
  %1689 = vrot.lane.b32.xlu0 %v671, 127
  %v1690 = vpop.permute.xlu0 %1689
  %1691 = vrot.lane.b32.xlu0 %v672, 127
  %v1692 = vpop.permute.xlu0 %1691
  %1693 = vrot.lane.b32.xlu0 %v673, 127
  %v1694 = vpop.permute.xlu0 %1693
  %1695 = vrot.lane.b32.xlu0 %v674, 127
  %v1696 = vpop.permute.xlu0 %1695
  %1697 = vrot.lane.b32.xlu0 %v675, 127
  %v1698 = vpop.permute.xlu0 %1697
  %1699 = vrot.lane.b32.xlu0 %v676, 127
  %v1700 = vpop.permute.xlu0 %1699
  %1701 = vrot.lane.b32.xlu0 %v677, 127
  %v1702 = vpop.permute.xlu0 %1701
  %1703 = vrot.lane.b32.xlu0 %v678, 127
  %v1704 = vpop.permute.xlu0 %1703
  %1705 = vrot.lane.b32.xlu0 %v679, 127
  %v1706 = vpop.permute.xlu0 %1705
  %1707 = vrot.lane.b32.xlu0 %v680, 127
  %v1708 = vpop.permute.xlu0 %1707
  %1709 = vrot.lane.b32.xlu0 %v681, 127
  %v1710 = vpop.permute.xlu0 %1709
  %1711 = vrot.lane.b32.xlu0 %v682, 127
  %v1712 = vpop.permute.xlu0 %1711
  %1713 = vrot.lane.b32.xlu0 %v683, 127
  %v1714 = vpop.permute.xlu0 %1713
  %1715 = vrot.lane.b32.xlu0 %v684, 127
  %v1716 = vpop.permute.xlu0 %1715
  %1717 = vrot.lane.b32.xlu0 %v685, 127
  %v1718 = vpop.permute.xlu0 %1717
  %1719 = vrot.lane.b32.xlu0 %v686, 127
  %v1720 = vpop.permute.xlu0 %1719
  %1721 = vrot.lane.b32.xlu0 %v687, 127
  %v1722 = vpop.permute.xlu0 %1721
  %1723 = vrot.lane.b32.xlu0 %v688, 127
  %v1724 = vpop.permute.xlu0 %1723
  %1725 = vrot.lane.b32.xlu0 %v689, 127
  %v1726 = vpop.permute.xlu0 %1725
  %1727 = vrot.lane.b32.xlu0 %v690, 127
  %v1728 = vpop.permute.xlu0 %1727
  %1729 = vrot.lane.b32.xlu0 %v691, 127
  %v1730 = vpop.permute.xlu0 %1729
  %1731 = vrot.lane.b32.xlu0 %v692, 127
  %v1732 = vpop.permute.xlu0 %1731
  %1733 = vrot.lane.b32.xlu0 %v693, 127
  %v1734 = vpop.permute.xlu0 %1733
  %1735 = vrot.lane.b32.xlu0 %v694, 127
  %v1736 = vpop.permute.xlu0 %1735
  %1737 = vrot.lane.b32.xlu0 %v695, 127
  %v1738 = vpop.permute.xlu0 %1737
  %1739 = vrot.lane.b32.xlu0 %v696, 127
  %v1740 = vpop.permute.xlu0 %1739
  %1741 = vrot.lane.b32.xlu0 %v697, 127
  %v1742 = vpop.permute.xlu0 %1741
  %1743 = vrot.lane.b32.xlu0 %v698, 127
  %v1744 = vpop.permute.xlu0 %1743
  %1745 = vrot.lane.b32.xlu0 %v699, 127
  %v1746 = vpop.permute.xlu0 %1745
  %1747 = vrot.lane.b32.xlu0 %v700, 127
  %v1748 = vpop.permute.xlu0 %1747
  %1749 = vrot.lane.b32.xlu0 %v701, 127
  %v1750 = vpop.permute.xlu0 %1749
  %vm1751 = vcmask 1039360
  %v1752 = vsel %vm1751, %v1688, %v1690
  %v1753 = vsel %vm1751, %v1690, %v1692
  %v1754 = vsel %vm1751, %v1692, %v1694
  %v1755 = vsel %vm1751, %v1696, %v1698
  %v1756 = vsel %vm1751, %v1698, %v1700
  %v1757 = vsel %vm1751, %v1700, %v1702
  %v1758 = vsel %vm1751, %v1704, %v1706
  %v1759 = vsel %vm1751, %v1706, %v1708
  %v1760 = vsel %vm1751, %v1708, %v1710
  %v1761 = vsel %vm1751, %v1712, %v1714
  %v1762 = vsel %vm1751, %v1714, %v1716
  %v1763 = vsel %vm1751, %v1716, %v1718
  %v1764 = vsel %vm1751, %v1720, %v1722
  %v1765 = vsel %vm1751, %v1722, %v1724
  %v1766 = vsel %vm1751, %v1724, %v1726
  %v1767 = vsel %vm1751, %v1728, %v1730
  %v1768 = vsel %vm1751, %v1730, %v1732
  %v1769 = vsel %vm1751, %v1732, %v1734
  %v1770 = vsel %vm1751, %v1736, %v1738
  %v1771 = vsel %vm1751, %v1738, %v1740
  %v1772 = vsel %vm1751, %v1740, %v1742
  %v1773 = vsel %vm1751, %v1744, %v1746
  %v1774 = vsel %vm1751, %v1746, %v1748
  %v1775 = vsel %vm1751, %v1748, %v1750
  %v1816 = vsel %vm1751, %v1694, %v1688
  %v1817 = vsel %vm1751, %v1702, %v1696
  %v1818 = vsel %vm1751, %v1710, %v1704
  %v1819 = vsel %vm1751, %v1718, %v1712
  %v1820 = vsel %vm1751, %v1726, %v1720
  %v1821 = vsel %vm1751, %v1734, %v1728
  %v1822 = vsel %vm1751, %v1742, %v1736
  %v1823 = vsel %vm1751, %v1750, %v1744
  %v1824 = vsel %vm1683, 1, 0
  %v1825 = vsel %vm1684, 1, 0
  %v1826 = vsel %vm1685, 1, 0
  %v1827 = vsel %vm1686, 1, 0
  %vm1828 = vcmp.eq.s32.totalorder %v1824, 1
  %vm1829 = vcmp.eq.s32.totalorder %v1825, 1
  %vm1830 = vcmp.eq.s32.totalorder %v1826, 1
  %vm1831 = vcmp.eq.s32.totalorder %v1827, 1
  %v1832 = vsel %vm1828, %v1752, 0.0
  %v1833 = vsel %vm1829, %v1753, 0.0
  %v1834 = vsel %vm1830, %v1754, 0.0
  %v1835 = vsel %vm1831, %v1816, 0.0
  %v1836 = vsel %vm1828, %v1755, 0.0
  %v1837 = vsel %vm1829, %v1756, 0.0
  %v1838 = vsel %vm1830, %v1757, 0.0
  %v1839 = vsel %vm1831, %v1817, 0.0
  %v1840 = vsel %vm1828, %v1758, 0.0
  %v1841 = vsel %vm1829, %v1759, 0.0
  %v1842 = vsel %vm1830, %v1760, 0.0
  %v1843 = vsel %vm1831, %v1818, 0.0
  %v1844 = vsel %vm1828, %v1761, 0.0
  %v1845 = vsel %vm1829, %v1762, 0.0
  %v1846 = vsel %vm1830, %v1763, 0.0
  %v1847 = vsel %vm1831, %v1819, 0.0
  %v1848 = vsel %vm1828, %v1764, 0.0
  %v1849 = vsel %vm1829, %v1765, 0.0
  %v1850 = vsel %vm1830, %v1766, 0.0
  %v1851 = vsel %vm1831, %v1820, 0.0
  %v1852 = vsel %vm1828, %v1767, 0.0
  %v1853 = vsel %vm1829, %v1768, 0.0
  %v1854 = vsel %vm1830, %v1769, 0.0
  %v1855 = vsel %vm1831, %v1821, 0.0
  %v1856 = vsel %vm1828, %v1770, 0.0
  %v1857 = vsel %vm1829, %v1771, 0.0
  %v1858 = vsel %vm1830, %v1772, 0.0
  %v1859 = vsel %vm1831, %v1822, 0.0
  %v1860 = vsel %vm1828, %v1773, 0.0
  %v1861 = vsel %vm1829, %v1774, 0.0
  %v1862 = vsel %vm1830, %v1775, 0.0
  %v1863 = vsel %vm1831, %v1823, 0.0
  %v1864 = vmax.f32 %v1647, %v1832
  %v1865 = vmax.f32 %v1648, %v1833
  %v1866 = vmax.f32 %v1649, %v1834
  %v1867 = vmax.f32 %v1650, %v1835
  %v1868 = vmax.f32 %v1651, %v1836
  %v1869 = vmax.f32 %v1652, %v1837
  %v1870 = vmax.f32 %v1653, %v1838
  %v1871 = vmax.f32 %v1654, %v1839
  %v1872 = vmax.f32 %v1655, %v1840
  %v1873 = vmax.f32 %v1656, %v1841
  %v1874 = vmax.f32 %v1657, %v1842
  %v1875 = vmax.f32 %v1658, %v1843
  %v1876 = vmax.f32 %v1659, %v1844
  %v1877 = vmax.f32 %v1660, %v1845
  %v1878 = vmax.f32 %v1661, %v1846
  %v1879 = vmax.f32 %v1662, %v1847
  %v1880 = vmax.f32 %v1663, %v1848
  %v1881 = vmax.f32 %v1664, %v1849
  %v1882 = vmax.f32 %v1665, %v1850
  %v1883 = vmax.f32 %v1666, %v1851
  %v1884 = vmax.f32 %v1667, %v1852
  %v1885 = vmax.f32 %v1668, %v1853
  %v1886 = vmax.f32 %v1669, %v1854
  %v1887 = vmax.f32 %v1670, %v1855
  %v1888 = vmax.f32 %v1671, %v1856
  %v1889 = vmax.f32 %v1672, %v1857
  %v1890 = vmax.f32 %v1673, %v1858
  %v1891 = vmax.f32 %v1674, %v1859
  %v1892 = vmax.f32 %v1675, %v1860
  %v1893 = vmax.f32 %v1676, %v1861
  %v1894 = vmax.f32 %v1677, %v1862
  %v1895 = vmax.f32 %v1678, %v1863
  %v1896 = vadd.s32 %v711, 1
  %v1897 = vadd.s32 %v712, 1
  %v1898 = vadd.s32 %v713, 1
  %v1899 = vadd.s32 %v714, 1
  %vm1900 = vcmp.ge.s32.totalorder %v1896, 0
  %vm1901 = vcmp.ge.s32.totalorder %v1897, 0
  %vm1902 = vcmp.ge.s32.totalorder %v1898, 0
  %vm1903 = vcmp.ge.s32.totalorder %v1899, 0
  %vm1904 = vcmp.lt.s32.totalorder %v1896, 16
  %vm1905 = vcmp.lt.s32.totalorder %v1897, 16
  %vm1906 = vcmp.lt.s32.totalorder %v1898, 16
  %vm1907 = vcmp.lt.s32.totalorder %v1899, 16
  %vm1908 = vmand %vm1900, %vm1904
  %vm1909 = vmand %vm1901, %vm1905
  %vm1910 = vmand %vm1902, %vm1906
  %vm1911 = vmand %vm1903, %vm1907
  %vm1912 = vmand %vm1908, %vm739
  %vm1913 = vmand %vm1909, %vm740
  %vm1914 = vmand %vm1910, %vm741
  %vm1915 = vmand %vm1911, %vm742
  %vm1916 = vmand %vm1912, %vm747
  %vm1917 = vmand %vm1913, %vm748
  %vm1918 = vmand %vm1914, %vm749
  %vm1919 = vmand %vm1915, %vm750
  %1920 = vrot.lane.b32.xlu0 %v670, 113
  %v1921 = vpop.permute.xlu0 %1920
  %1922 = vrot.lane.b32.xlu0 %v671, 113
  %v1923 = vpop.permute.xlu0 %1922
  %1924 = vrot.lane.b32.xlu0 %v672, 113
  %v1925 = vpop.permute.xlu0 %1924
  %1926 = vrot.lane.b32.xlu0 %v673, 113
  %v1927 = vpop.permute.xlu0 %1926
  %1928 = vrot.lane.b32.xlu0 %v674, 113
  %v1929 = vpop.permute.xlu0 %1928
  %1930 = vrot.lane.b32.xlu0 %v675, 113
  %v1931 = vpop.permute.xlu0 %1930
  %1932 = vrot.lane.b32.xlu0 %v676, 113
  %v1933 = vpop.permute.xlu0 %1932
  %1934 = vrot.lane.b32.xlu0 %v677, 113
  %v1935 = vpop.permute.xlu0 %1934
  %1936 = vrot.lane.b32.xlu0 %v678, 113
  %v1937 = vpop.permute.xlu0 %1936
  %1938 = vrot.lane.b32.xlu0 %v679, 113
  %v1939 = vpop.permute.xlu0 %1938
  %1940 = vrot.lane.b32.xlu0 %v680, 113
  %v1941 = vpop.permute.xlu0 %1940
  %1942 = vrot.lane.b32.xlu0 %v681, 113
  %v1943 = vpop.permute.xlu0 %1942
  %1944 = vrot.lane.b32.xlu0 %v682, 113
  %v1945 = vpop.permute.xlu0 %1944
  %1946 = vrot.lane.b32.xlu0 %v683, 113
  %v1947 = vpop.permute.xlu0 %1946
  %1948 = vrot.lane.b32.xlu0 %v684, 113
  %v1949 = vpop.permute.xlu0 %1948
  %1950 = vrot.lane.b32.xlu0 %v685, 113
  %v1951 = vpop.permute.xlu0 %1950
  %1952 = vrot.lane.b32.xlu0 %v686, 113
  %v1953 = vpop.permute.xlu0 %1952
  %1954 = vrot.lane.b32.xlu0 %v687, 113
  %v1955 = vpop.permute.xlu0 %1954
  %1956 = vrot.lane.b32.xlu0 %v688, 113
  %v1957 = vpop.permute.xlu0 %1956
  %1958 = vrot.lane.b32.xlu0 %v689, 113
  %v1959 = vpop.permute.xlu0 %1958
  %1960 = vrot.lane.b32.xlu0 %v690, 113
  %v1961 = vpop.permute.xlu0 %1960
  %1962 = vrot.lane.b32.xlu0 %v691, 113
  %v1963 = vpop.permute.xlu0 %1962
  %1964 = vrot.lane.b32.xlu0 %v692, 113
  %v1965 = vpop.permute.xlu0 %1964
  %1966 = vrot.lane.b32.xlu0 %v693, 113
  %v1967 = vpop.permute.xlu0 %1966
  %1968 = vrot.lane.b32.xlu0 %v694, 113
  %v1969 = vpop.permute.xlu0 %1968
  %1970 = vrot.lane.b32.xlu0 %v695, 113
  %v1971 = vpop.permute.xlu0 %1970
  %1972 = vrot.lane.b32.xlu0 %v696, 113
  %v1973 = vpop.permute.xlu0 %1972
  %1974 = vrot.lane.b32.xlu0 %v697, 113
  %v1975 = vpop.permute.xlu0 %1974
  %1976 = vrot.lane.b32.xlu0 %v698, 113
  %v1977 = vpop.permute.xlu0 %1976
  %1978 = vrot.lane.b32.xlu0 %v699, 113
  %v1979 = vpop.permute.xlu0 %1978
  %1980 = vrot.lane.b32.xlu0 %v700, 113
  %v1981 = vpop.permute.xlu0 %1980
  %1982 = vrot.lane.b32.xlu0 %v701, 113
  %v1983 = vpop.permute.xlu0 %1982
  %vm1984 = vcmask 924672
  %v1985 = vsel %vm1984, %v1921, %v1923
  %v1986 = vsel %vm1984, %v1923, %v1925
  %v1987 = vsel %vm1984, %v1925, %v1927
  %v1988 = vsel %vm1984, %v1929, %v1931
  %v1989 = vsel %vm1984, %v1931, %v1933
  %v1990 = vsel %vm1984, %v1933, %v1935
  %v1991 = vsel %vm1984, %v1937, %v1939
  %v1992 = vsel %vm1984, %v1939, %v1941
  %v1993 = vsel %vm1984, %v1941, %v1943
  %v1994 = vsel %vm1984, %v1945, %v1947
  %v1995 = vsel %vm1984, %v1947, %v1949
  %v1996 = vsel %vm1984, %v1949, %v1951
  %v1997 = vsel %vm1984, %v1953, %v1955
  %v1998 = vsel %vm1984, %v1955, %v1957
  %v1999 = vsel %vm1984, %v1957, %v1959
  %v2000 = vsel %vm1984, %v1961, %v1963
  %v2001 = vsel %vm1984, %v1963, %v1965
  %v2002 = vsel %vm1984, %v1965, %v1967
  %v2003 = vsel %vm1984, %v1969, %v1971
  %v2004 = vsel %vm1984, %v1971, %v1973
  %v2005 = vsel %vm1984, %v1973, %v1975
  %v2006 = vsel %vm1984, %v1977, %v1979
  %v2007 = vsel %vm1984, %v1979, %v1981
  %v2008 = vsel %vm1984, %v1981, %v1983
  %v2049 = vsel %vm1984, %v1927, %v1921
  %v2050 = vsel %vm1984, %v1935, %v1929
  %v2051 = vsel %vm1984, %v1943, %v1937
  %v2052 = vsel %vm1984, %v1951, %v1945
  %v2053 = vsel %vm1984, %v1959, %v1953
  %v2054 = vsel %vm1984, %v1967, %v1961
  %v2055 = vsel %vm1984, %v1975, %v1969
  %v2056 = vsel %vm1984, %v1983, %v1977
  %v2057 = vsel %vm1916, 1, 0
  %v2058 = vsel %vm1917, 1, 0
  %v2059 = vsel %vm1918, 1, 0
  %v2060 = vsel %vm1919, 1, 0
  %vm2061 = vcmp.eq.s32.totalorder %v2057, 1
  %vm2062 = vcmp.eq.s32.totalorder %v2058, 1
  %vm2063 = vcmp.eq.s32.totalorder %v2059, 1
  %vm2064 = vcmp.eq.s32.totalorder %v2060, 1
  %v2065 = vsel %vm2061, %v1985, 0.0
  %v2066 = vsel %vm2062, %v1986, 0.0
  %v2067 = vsel %vm2063, %v1987, 0.0
  %v2068 = vsel %vm2064, %v2049, 0.0
  %v2069 = vsel %vm2061, %v1988, 0.0
  %v2070 = vsel %vm2062, %v1989, 0.0
  %v2071 = vsel %vm2063, %v1990, 0.0
  %v2072 = vsel %vm2064, %v2050, 0.0
  %v2073 = vsel %vm2061, %v1991, 0.0
  %v2074 = vsel %vm2062, %v1992, 0.0
  %v2075 = vsel %vm2063, %v1993, 0.0
  %v2076 = vsel %vm2064, %v2051, 0.0
  %v2077 = vsel %vm2061, %v1994, 0.0
  %v2078 = vsel %vm2062, %v1995, 0.0
  %v2079 = vsel %vm2063, %v1996, 0.0
  %v2080 = vsel %vm2064, %v2052, 0.0
  %v2081 = vsel %vm2061, %v1997, 0.0
  %v2082 = vsel %vm2062, %v1998, 0.0
  %v2083 = vsel %vm2063, %v1999, 0.0
  %v2084 = vsel %vm2064, %v2053, 0.0
  %v2085 = vsel %vm2061, %v2000, 0.0
  %v2086 = vsel %vm2062, %v2001, 0.0
  %v2087 = vsel %vm2063, %v2002, 0.0
  %v2088 = vsel %vm2064, %v2054, 0.0
  %v2089 = vsel %vm2061, %v2003, 0.0
  %v2090 = vsel %vm2062, %v2004, 0.0
  %v2091 = vsel %vm2063, %v2005, 0.0
  %v2092 = vsel %vm2064, %v2055, 0.0
  %v2093 = vsel %vm2061, %v2006, 0.0
  %v2094 = vsel %vm2062, %v2007, 0.0
  %v2095 = vsel %vm2063, %v2008, 0.0
  %v2096 = vsel %vm2064, %v2056, 0.0
  %v2097 = vmax.f32 %v1864, %v2065
  %v2098 = vmax.f32 %v1865, %v2066
  %v2099 = vmax.f32 %v1866, %v2067
  %v2100 = vmax.f32 %v1867, %v2068
  %v2101 = vmax.f32 %v1868, %v2069
  %v2102 = vmax.f32 %v1869, %v2070
  %v2103 = vmax.f32 %v1870, %v2071
  %v2104 = vmax.f32 %v1871, %v2072
  %v2105 = vmax.f32 %v1872, %v2073
  %v2106 = vmax.f32 %v1873, %v2074
  %v2107 = vmax.f32 %v1874, %v2075
  %v2108 = vmax.f32 %v1875, %v2076
  %v2109 = vmax.f32 %v1876, %v2077
  %v2110 = vmax.f32 %v1877, %v2078
  %v2111 = vmax.f32 %v1878, %v2079
  %v2112 = vmax.f32 %v1879, %v2080
  %v2113 = vmax.f32 %v1880, %v2081
  %v2114 = vmax.f32 %v1881, %v2082
  %v2115 = vmax.f32 %v1882, %v2083
  %v2116 = vmax.f32 %v1883, %v2084
  %v2117 = vmax.f32 %v1884, %v2085
  %v2118 = vmax.f32 %v1885, %v2086
  %v2119 = vmax.f32 %v1886, %v2087
  %v2120 = vmax.f32 %v1887, %v2088
  %v2121 = vmax.f32 %v1888, %v2089
  %v2122 = vmax.f32 %v1889, %v2090
  %v2123 = vmax.f32 %v1890, %v2091
  %v2124 = vmax.f32 %v1891, %v2092
  %v2125 = vmax.f32 %v1892, %v2093
  %v2126 = vmax.f32 %v1893, %v2094
  %v2127 = vmax.f32 %v1894, %v2095
  %v2128 = vmax.f32 %v1895, %v2096
  %vm2129 = vmand %vm1908, %vm996
  %vm2130 = vmand %vm1909, %vm997
  %vm2131 = vmand %vm1910, %vm998
  %vm2132 = vmand %vm1911, %vm999
  %vm2133 = vmand %vm2129, %vm1004
  %vm2134 = vmand %vm2130, %vm1005
  %vm2135 = vmand %vm2131, %vm1006
  %vm2136 = vmand %vm2132, %vm1007
  %2137 = vrot.lane.b32.xlu0 %v670, 112
  %v2138 = vpop.permute.xlu0 %2137
  %2139 = vrot.lane.b32.xlu0 %v671, 112
  %v2140 = vpop.permute.xlu0 %2139
  %2141 = vrot.lane.b32.xlu0 %v672, 112
  %v2142 = vpop.permute.xlu0 %2141
  %2143 = vrot.lane.b32.xlu0 %v673, 112
  %v2144 = vpop.permute.xlu0 %2143
  %2145 = vrot.lane.b32.xlu0 %v674, 112
  %v2146 = vpop.permute.xlu0 %2145
  %2147 = vrot.lane.b32.xlu0 %v675, 112
  %v2148 = vpop.permute.xlu0 %2147
  %2149 = vrot.lane.b32.xlu0 %v676, 112
  %v2150 = vpop.permute.xlu0 %2149
  %2151 = vrot.lane.b32.xlu0 %v677, 112
  %v2152 = vpop.permute.xlu0 %2151
  %2153 = vrot.lane.b32.xlu0 %v678, 112
  %v2154 = vpop.permute.xlu0 %2153
  %2155 = vrot.lane.b32.xlu0 %v679, 112
  %v2156 = vpop.permute.xlu0 %2155
  %2157 = vrot.lane.b32.xlu0 %v680, 112
  %v2158 = vpop.permute.xlu0 %2157
  %2159 = vrot.lane.b32.xlu0 %v681, 112
  %v2160 = vpop.permute.xlu0 %2159
  %2161 = vrot.lane.b32.xlu0 %v682, 112
  %v2162 = vpop.permute.xlu0 %2161
  %2163 = vrot.lane.b32.xlu0 %v683, 112
  %v2164 = vpop.permute.xlu0 %2163
  %2165 = vrot.lane.b32.xlu0 %v684, 112
  %v2166 = vpop.permute.xlu0 %2165
  %2167 = vrot.lane.b32.xlu0 %v685, 112
  %v2168 = vpop.permute.xlu0 %2167
  %2169 = vrot.lane.b32.xlu0 %v686, 112
  %v2170 = vpop.permute.xlu0 %2169
  %2171 = vrot.lane.b32.xlu0 %v687, 112
  %v2172 = vpop.permute.xlu0 %2171
  %2173 = vrot.lane.b32.xlu0 %v688, 112
  %v2174 = vpop.permute.xlu0 %2173
  %2175 = vrot.lane.b32.xlu0 %v689, 112
  %v2176 = vpop.permute.xlu0 %2175
  %2177 = vrot.lane.b32.xlu0 %v690, 112
  %v2178 = vpop.permute.xlu0 %2177
  %2179 = vrot.lane.b32.xlu0 %v691, 112
  %v2180 = vpop.permute.xlu0 %2179
  %2181 = vrot.lane.b32.xlu0 %v692, 112
  %v2182 = vpop.permute.xlu0 %2181
  %2183 = vrot.lane.b32.xlu0 %v693, 112
  %v2184 = vpop.permute.xlu0 %2183
  %2185 = vrot.lane.b32.xlu0 %v694, 112
  %v2186 = vpop.permute.xlu0 %2185
  %2187 = vrot.lane.b32.xlu0 %v695, 112
  %v2188 = vpop.permute.xlu0 %2187
  %2189 = vrot.lane.b32.xlu0 %v696, 112
  %v2190 = vpop.permute.xlu0 %2189
  %2191 = vrot.lane.b32.xlu0 %v697, 112
  %v2192 = vpop.permute.xlu0 %2191
  %2193 = vrot.lane.b32.xlu0 %v698, 112
  %v2194 = vpop.permute.xlu0 %2193
  %2195 = vrot.lane.b32.xlu0 %v699, 112
  %v2196 = vpop.permute.xlu0 %2195
  %2197 = vrot.lane.b32.xlu0 %v700, 112
  %v2198 = vpop.permute.xlu0 %2197
  %2199 = vrot.lane.b32.xlu0 %v701, 112
  %v2200 = vpop.permute.xlu0 %2199
  %vm2201 = vcmask 916480
  %v2202 = vsel %vm2201, %v2138, %v2140
  %v2203 = vsel %vm2201, %v2140, %v2142
  %v2204 = vsel %vm2201, %v2142, %v2144
  %v2205 = vsel %vm2201, %v2146, %v2148
  %v2206 = vsel %vm2201, %v2148, %v2150
  %v2207 = vsel %vm2201, %v2150, %v2152
  %v2208 = vsel %vm2201, %v2154, %v2156
  %v2209 = vsel %vm2201, %v2156, %v2158
  %v2210 = vsel %vm2201, %v2158, %v2160
  %v2211 = vsel %vm2201, %v2162, %v2164
  %v2212 = vsel %vm2201, %v2164, %v2166
  %v2213 = vsel %vm2201, %v2166, %v2168
  %v2214 = vsel %vm2201, %v2170, %v2172
  %v2215 = vsel %vm2201, %v2172, %v2174
  %v2216 = vsel %vm2201, %v2174, %v2176
  %v2217 = vsel %vm2201, %v2178, %v2180
  %v2218 = vsel %vm2201, %v2180, %v2182
  %v2219 = vsel %vm2201, %v2182, %v2184
  %v2220 = vsel %vm2201, %v2186, %v2188
  %v2221 = vsel %vm2201, %v2188, %v2190
  %v2222 = vsel %vm2201, %v2190, %v2192
  %v2223 = vsel %vm2201, %v2194, %v2196
  %v2224 = vsel %vm2201, %v2196, %v2198
  %v2225 = vsel %vm2201, %v2198, %v2200
  %v2266 = vsel %vm2201, %v2144, %v2138
  %v2267 = vsel %vm2201, %v2152, %v2146
  %v2268 = vsel %vm2201, %v2160, %v2154
  %v2269 = vsel %vm2201, %v2168, %v2162
  %v2270 = vsel %vm2201, %v2176, %v2170
  %v2271 = vsel %vm2201, %v2184, %v2178
  %v2272 = vsel %vm2201, %v2192, %v2186
  %v2273 = vsel %vm2201, %v2200, %v2194
  %v2274 = vsel %vm2133, 1, 0
  %v2275 = vsel %vm2134, 1, 0
  %v2276 = vsel %vm2135, 1, 0
  %v2277 = vsel %vm2136, 1, 0
  %vm2278 = vcmp.eq.s32.totalorder %v2274, 1
  %vm2279 = vcmp.eq.s32.totalorder %v2275, 1
  %vm2280 = vcmp.eq.s32.totalorder %v2276, 1
  %vm2281 = vcmp.eq.s32.totalorder %v2277, 1
  %v2282 = vsel %vm2278, %v2202, 0.0
  %v2283 = vsel %vm2279, %v2203, 0.0
  %v2284 = vsel %vm2280, %v2204, 0.0
  %v2285 = vsel %vm2281, %v2266, 0.0
  %v2286 = vsel %vm2278, %v2205, 0.0
  %v2287 = vsel %vm2279, %v2206, 0.0
  %v2288 = vsel %vm2280, %v2207, 0.0
  %v2289 = vsel %vm2281, %v2267, 0.0
  %v2290 = vsel %vm2278, %v2208, 0.0
  %v2291 = vsel %vm2279, %v2209, 0.0
  %v2292 = vsel %vm2280, %v2210, 0.0
  %v2293 = vsel %vm2281, %v2268, 0.0
  %v2294 = vsel %vm2278, %v2211, 0.0
  %v2295 = vsel %vm2279, %v2212, 0.0
  %v2296 = vsel %vm2280, %v2213, 0.0
  %v2297 = vsel %vm2281, %v2269, 0.0
  %v2298 = vsel %vm2278, %v2214, 0.0
  %v2299 = vsel %vm2279, %v2215, 0.0
  %v2300 = vsel %vm2280, %v2216, 0.0
  %v2301 = vsel %vm2281, %v2270, 0.0
  %v2302 = vsel %vm2278, %v2217, 0.0
  %v2303 = vsel %vm2279, %v2218, 0.0
  %v2304 = vsel %vm2280, %v2219, 0.0
  %v2305 = vsel %vm2281, %v2271, 0.0
  %v2306 = vsel %vm2278, %v2220, 0.0
  %v2307 = vsel %vm2279, %v2221, 0.0
  %v2308 = vsel %vm2280, %v2222, 0.0
  %v2309 = vsel %vm2281, %v2272, 0.0
  %v2310 = vsel %vm2278, %v2223, 0.0
  %v2311 = vsel %vm2279, %v2224, 0.0
  %v2312 = vsel %vm2280, %v2225, 0.0
  %v2313 = vsel %vm2281, %v2273, 0.0
  %v2314 = vmax.f32 %v2097, %v2282
  %v2315 = vmax.f32 %v2098, %v2283
  %v2316 = vmax.f32 %v2099, %v2284
  %v2317 = vmax.f32 %v2100, %v2285
  %v2318 = vmax.f32 %v2101, %v2286
  %v2319 = vmax.f32 %v2102, %v2287
  %v2320 = vmax.f32 %v2103, %v2288
  %v2321 = vmax.f32 %v2104, %v2289
  %v2322 = vmax.f32 %v2105, %v2290
  %v2323 = vmax.f32 %v2106, %v2291
  %v2324 = vmax.f32 %v2107, %v2292
  %v2325 = vmax.f32 %v2108, %v2293
  %v2326 = vmax.f32 %v2109, %v2294
  %v2327 = vmax.f32 %v2110, %v2295
  %v2328 = vmax.f32 %v2111, %v2296
  %v2329 = vmax.f32 %v2112, %v2297
  %v2330 = vmax.f32 %v2113, %v2298
  %v2331 = vmax.f32 %v2114, %v2299
  %v2332 = vmax.f32 %v2115, %v2300
  %v2333 = vmax.f32 %v2116, %v2301
  %v2334 = vmax.f32 %v2117, %v2302
  %v2335 = vmax.f32 %v2118, %v2303
  %v2336 = vmax.f32 %v2119, %v2304
  %v2337 = vmax.f32 %v2120, %v2305
  %v2338 = vmax.f32 %v2121, %v2306
  %v2339 = vmax.f32 %v2122, %v2307
  %v2340 = vmax.f32 %v2123, %v2308
  %v2341 = vmax.f32 %v2124, %v2309
  %v2342 = vmax.f32 %v2125, %v2310
  %v2343 = vmax.f32 %v2126, %v2311
  %v2344 = vmax.f32 %v2127, %v2312
  %v2345 = vmax.f32 %v2128, %v2313
  %vm2346 = vmand %vm1908, %vm1225
  %vm2347 = vmand %vm1909, %vm1226
  %vm2348 = vmand %vm1910, %vm1227
  %vm2349 = vmand %vm1911, %vm1228
  %vm2350 = vmand %vm2346, %vm1233
  %vm2351 = vmand %vm2347, %vm1234
  %vm2352 = vmand %vm2348, %vm1235
  %vm2353 = vmand %vm2349, %vm1236
  %2354 = vrot.lane.b32.xlu0 %v670, 111
  %v2355 = vpop.permute.xlu0 %2354
  %2356 = vrot.lane.b32.xlu0 %v671, 111
  %v2357 = vpop.permute.xlu0 %2356
  %2358 = vrot.lane.b32.xlu0 %v672, 111
  %v2359 = vpop.permute.xlu0 %2358
  %2360 = vrot.lane.b32.xlu0 %v673, 111
  %v2361 = vpop.permute.xlu0 %2360
  %2362 = vrot.lane.b32.xlu0 %v674, 111
  %v2363 = vpop.permute.xlu0 %2362
  %2364 = vrot.lane.b32.xlu0 %v675, 111
  %v2365 = vpop.permute.xlu0 %2364
  %2366 = vrot.lane.b32.xlu0 %v676, 111
  %v2367 = vpop.permute.xlu0 %2366
  %2368 = vrot.lane.b32.xlu0 %v677, 111
  %v2369 = vpop.permute.xlu0 %2368
  %2370 = vrot.lane.b32.xlu0 %v678, 111
  %v2371 = vpop.permute.xlu0 %2370
  %2372 = vrot.lane.b32.xlu0 %v679, 111
  %v2373 = vpop.permute.xlu0 %2372
  %2374 = vrot.lane.b32.xlu0 %v680, 111
  %v2375 = vpop.permute.xlu0 %2374
  %2376 = vrot.lane.b32.xlu0 %v681, 111
  %v2377 = vpop.permute.xlu0 %2376
  %2378 = vrot.lane.b32.xlu0 %v682, 111
  %v2379 = vpop.permute.xlu0 %2378
  %2380 = vrot.lane.b32.xlu0 %v683, 111
  %v2381 = vpop.permute.xlu0 %2380
  %2382 = vrot.lane.b32.xlu0 %v684, 111
  %v2383 = vpop.permute.xlu0 %2382
  %2384 = vrot.lane.b32.xlu0 %v685, 111
  %v2385 = vpop.permute.xlu0 %2384
  %2386 = vrot.lane.b32.xlu0 %v686, 111
  %v2387 = vpop.permute.xlu0 %2386
  %2388 = vrot.lane.b32.xlu0 %v687, 111
  %v2389 = vpop.permute.xlu0 %2388
  %2390 = vrot.lane.b32.xlu0 %v688, 111
  %v2391 = vpop.permute.xlu0 %2390
  %2392 = vrot.lane.b32.xlu0 %v689, 111
  %v2393 = vpop.permute.xlu0 %2392
  %2394 = vrot.lane.b32.xlu0 %v690, 111
  %v2395 = vpop.permute.xlu0 %2394
  %2396 = vrot.lane.b32.xlu0 %v691, 111
  %v2397 = vpop.permute.xlu0 %2396
  %2398 = vrot.lane.b32.xlu0 %v692, 111
  %v2399 = vpop.permute.xlu0 %2398
  %2400 = vrot.lane.b32.xlu0 %v693, 111
  %v2401 = vpop.permute.xlu0 %2400
  %2402 = vrot.lane.b32.xlu0 %v694, 111
  %v2403 = vpop.permute.xlu0 %2402
  %2404 = vrot.lane.b32.xlu0 %v695, 111
  %v2405 = vpop.permute.xlu0 %2404
  %2406 = vrot.lane.b32.xlu0 %v696, 111
  %v2407 = vpop.permute.xlu0 %2406
  %2408 = vrot.lane.b32.xlu0 %v697, 111
  %v2409 = vpop.permute.xlu0 %2408
  %2410 = vrot.lane.b32.xlu0 %v698, 111
  %v2411 = vpop.permute.xlu0 %2410
  %2412 = vrot.lane.b32.xlu0 %v699, 111
  %v2413 = vpop.permute.xlu0 %2412
  %2414 = vrot.lane.b32.xlu0 %v700, 111
  %v2415 = vpop.permute.xlu0 %2414
  %2416 = vrot.lane.b32.xlu0 %v701, 111
  %v2417 = vpop.permute.xlu0 %2416
  %vm2418 = vcmask 908288
  %v2419 = vsel %vm2418, %v2355, %v2357
  %v2420 = vsel %vm2418, %v2357, %v2359
  %v2421 = vsel %vm2418, %v2359, %v2361
  %v2422 = vsel %vm2418, %v2363, %v2365
  %v2423 = vsel %vm2418, %v2365, %v2367
  %v2424 = vsel %vm2418, %v2367, %v2369
  %v2425 = vsel %vm2418, %v2371, %v2373
  %v2426 = vsel %vm2418, %v2373, %v2375
  %v2427 = vsel %vm2418, %v2375, %v2377
  %v2428 = vsel %vm2418, %v2379, %v2381
  %v2429 = vsel %vm2418, %v2381, %v2383
  %v2430 = vsel %vm2418, %v2383, %v2385
  %v2431 = vsel %vm2418, %v2387, %v2389
  %v2432 = vsel %vm2418, %v2389, %v2391
  %v2433 = vsel %vm2418, %v2391, %v2393
  %v2434 = vsel %vm2418, %v2395, %v2397
  %v2435 = vsel %vm2418, %v2397, %v2399
  %v2436 = vsel %vm2418, %v2399, %v2401
  %v2437 = vsel %vm2418, %v2403, %v2405
  %v2438 = vsel %vm2418, %v2405, %v2407
  %v2439 = vsel %vm2418, %v2407, %v2409
  %v2440 = vsel %vm2418, %v2411, %v2413
  %v2441 = vsel %vm2418, %v2413, %v2415
  %v2442 = vsel %vm2418, %v2415, %v2417
  %v2483 = vsel %vm2418, %v2361, %v2355
  %v2484 = vsel %vm2418, %v2369, %v2363
  %v2485 = vsel %vm2418, %v2377, %v2371
  %v2486 = vsel %vm2418, %v2385, %v2379
  %v2487 = vsel %vm2418, %v2393, %v2387
  %v2488 = vsel %vm2418, %v2401, %v2395
  %v2489 = vsel %vm2418, %v2409, %v2403
  %v2490 = vsel %vm2418, %v2417, %v2411
  %v2491 = vsel %vm2350, 1, 0
  %v2492 = vsel %vm2351, 1, 0
  %v2493 = vsel %vm2352, 1, 0
  %v2494 = vsel %vm2353, 1, 0
  %vm2495 = vcmp.eq.s32.totalorder %v2491, 1
  %vm2496 = vcmp.eq.s32.totalorder %v2492, 1
  %vm2497 = vcmp.eq.s32.totalorder %v2493, 1
  %vm2498 = vcmp.eq.s32.totalorder %v2494, 1
  %v2499 = vsel %vm2495, %v2419, 0.0
  %v2500 = vsel %vm2496, %v2420, 0.0
  %v2501 = vsel %vm2497, %v2421, 0.0
  %v2502 = vsel %vm2498, %v2483, 0.0
  %v2503 = vsel %vm2495, %v2422, 0.0
  %v2504 = vsel %vm2496, %v2423, 0.0
  %v2505 = vsel %vm2497, %v2424, 0.0
  %v2506 = vsel %vm2498, %v2484, 0.0
  %v2507 = vsel %vm2495, %v2425, 0.0
  %v2508 = vsel %vm2496, %v2426, 0.0
  %v2509 = vsel %vm2497, %v2427, 0.0
  %v2510 = vsel %vm2498, %v2485, 0.0
  %v2511 = vsel %vm2495, %v2428, 0.0
  %v2512 = vsel %vm2496, %v2429, 0.0
  %v2513 = vsel %vm2497, %v2430, 0.0
  %v2514 = vsel %vm2498, %v2486, 0.0
  %v2515 = vsel %vm2495, %v2431, 0.0
  %v2516 = vsel %vm2496, %v2432, 0.0
  %v2517 = vsel %vm2497, %v2433, 0.0
  %v2518 = vsel %vm2498, %v2487, 0.0
  %v2519 = vsel %vm2495, %v2434, 0.0
  %v2520 = vsel %vm2496, %v2435, 0.0
  %v2521 = vsel %vm2497, %v2436, 0.0
  %v2522 = vsel %vm2498, %v2488, 0.0
  %v2523 = vsel %vm2495, %v2437, 0.0
  %v2524 = vsel %vm2496, %v2438, 0.0
  %v2525 = vsel %vm2497, %v2439, 0.0
  %v2526 = vsel %vm2498, %v2489, 0.0
  %v2527 = vsel %vm2495, %v2440, 0.0
  %v2528 = vsel %vm2496, %v2441, 0.0
  %v2529 = vsel %vm2497, %v2442, 0.0
  %v2530 = vsel %vm2498, %v2490, 0.0
  %v2531 = vmax.f32 %v2314, %v2499
  %v2532 = vmax.f32 %v2315, %v2500
  %v2533 = vmax.f32 %v2316, %v2501
  %v2534 = vmax.f32 %v2317, %v2502
  %v2535 = vmax.f32 %v2318, %v2503
  %v2536 = vmax.f32 %v2319, %v2504
  %v2537 = vmax.f32 %v2320, %v2505
  %v2538 = vmax.f32 %v2321, %v2506
  %v2539 = vmax.f32 %v2322, %v2507
  %v2540 = vmax.f32 %v2323, %v2508
  %v2541 = vmax.f32 %v2324, %v2509
  %v2542 = vmax.f32 %v2325, %v2510
  %v2543 = vmax.f32 %v2326, %v2511
  %v2544 = vmax.f32 %v2327, %v2512
  %v2545 = vmax.f32 %v2328, %v2513
  %v2546 = vmax.f32 %v2329, %v2514
  %v2547 = vmax.f32 %v2330, %v2515
  %v2548 = vmax.f32 %v2331, %v2516
  %v2549 = vmax.f32 %v2332, %v2517
  %v2550 = vmax.f32 %v2333, %v2518
  %v2551 = vmax.f32 %v2334, %v2519
  %v2552 = vmax.f32 %v2335, %v2520
  %v2553 = vmax.f32 %v2336, %v2521
  %v2554 = vmax.f32 %v2337, %v2522
  %v2555 = vmax.f32 %v2338, %v2523
  %v2556 = vmax.f32 %v2339, %v2524
  %v2557 = vmax.f32 %v2340, %v2525
  %v2558 = vmax.f32 %v2341, %v2526
  %v2559 = vmax.f32 %v2342, %v2527
  %v2560 = vmax.f32 %v2343, %v2528
  %v2561 = vmax.f32 %v2344, %v2529
  %v2562 = vmax.f32 %v2345, %v2530
  %v2563 = vpack.c.bf16 %v2535, %v2531
  %v2564 = vpack.c.bf16 %v2536, %v2532
  %v2565 = vpack.c.bf16 %v2537, %v2533
  %v2566 = vpack.c.bf16 %v2538, %v2534
  %v2567 = vpack.c.bf16 %v2543, %v2539
  %v2568 = vpack.c.bf16 %v2544, %v2540
  %v2569 = vpack.c.bf16 %v2545, %v2541
  %v2570 = vpack.c.bf16 %v2546, %v2542
  %v2571 = vpack.c.bf16 %v2551, %v2547
  %v2572 = vpack.c.bf16 %v2552, %v2548
  %v2573 = vpack.c.bf16 %v2553, %v2549
  %v2574 = vpack.c.bf16 %v2554, %v2550
  %v2575 = vpack.c.bf16 %v2559, %v2555
  %v2576 = vpack.c.bf16 %v2560, %v2556
  %v2577 = vpack.c.bf16 %v2561, %v2557
  %v2578 = vpack.c.bf16 %v2562, %v2558
  %v2579 = vld [vmem:[%s3] sm:$0xf]
  %v2580 = vld [vmem:[%s3 + $0x4] sm:$0xf]
  %v2581 = vld [vmem:[%s3 + $0x8] sm:$0xf]
  %v2582 = vld [vmem:[%s3 + $0xc] sm:$0xf]
  %v2583 = vld [vmem:[%s3 + $0x10] sm:$0xf]
  %v2584 = vld [vmem:[%s3 + $0x14] sm:$0xf]
  %v2585 = vld [vmem:[%s3 + $0x18] sm:$0xf]
  %v2586 = vld [vmem:[%s3 + $0x1c] sm:$0xf]
  %v2587 = vld [vmem:[%s3 + $0x20] sm:$0xf]
  %v2588 = vld [vmem:[%s3 + $0x24] sm:$0xf]
  %v2589 = vld [vmem:[%s3 + $0x28] sm:$0xf]
  %v2590 = vld [vmem:[%s3 + $0x2c] sm:$0xf]
  %v2591 = vld [vmem:[%s3 + $0x30] sm:$0xf]
  %v2592 = vld [vmem:[%s3 + $0x34] sm:$0xf]
  %v2593 = vld [vmem:[%s3 + $0x38] sm:$0xf]
  %v2594 = vld [vmem:[%s3 + $0x3c] sm:$0xf]
  %v2595 = vld [vmem:[%s3 + $0x40] sm:$0xf]
  %v2596 = vld [vmem:[%s3 + $0x44] sm:$0xf]
  %v2597 = vld [vmem:[%s3 + $0x48] sm:$0xf]
  %v2598 = vld [vmem:[%s3 + $0x4c] sm:$0xf]
  %v2599 = vld [vmem:[%s3 + $0x50] sm:$0xf]
  %v2600 = vld [vmem:[%s3 + $0x54] sm:$0xf]
  %v2601 = vld [vmem:[%s3 + $0x58] sm:$0xf]
  %v2602 = vld [vmem:[%s3 + $0x5c] sm:$0xf]
  %v2603 = vld [vmem:[%s3 + $0x60] sm:$0xf]
  %v2604 = vld [vmem:[%s3 + $0x64] sm:$0xf]
  %v2605 = vld [vmem:[%s3 + $0x68] sm:$0xf]
  %v2606 = vld [vmem:[%s3 + $0x6c] sm:$0xf]
  %v2607 = vld [vmem:[%s3 + $0x70] sm:$0xf]
  %v2608 = vld [vmem:[%s3 + $0x74] sm:$0xf]
  %v2609 = vld [vmem:[%s3 + $0x78] sm:$0xf]
  %v2610 = vld [vmem:[%s3 + $0x7c] sm:$0xf]
  %v2611 = vld [vmem:[%s3 + $0x80] sm:$0xf]
  %v2612 = vld [vmem:[%s3 + $0x84] sm:$0xf]
  %v2613 = vld [vmem:[%s3 + $0x88] sm:$0xf]
  %v2614 = vld [vmem:[%s3 + $0x8c] sm:$0xf]
  %v2615 = vld [vmem:[%s3 + $0x90] sm:$0xf]
  %v2616 = vld [vmem:[%s3 + $0x94] sm:$0xf]
  %v2617 = vld [vmem:[%s3 + $0x98] sm:$0xf]
  %v2618 = vld [vmem:[%s3 + $0x9c] sm:$0xf]
  %v2619 = vld [vmem:[%s3 + $0xa0] sm:$0xf]
  %v2620 = vld [vmem:[%s3 + $0xa4] sm:$0xf]
  %v2621 = vld [vmem:[%s3 + $0xa8] sm:$0xf]
  %v2622 = vld [vmem:[%s3 + $0xac] sm:$0xf]
  %v2623 = vld [vmem:[%s3 + $0xb0] sm:$0xf]
  %v2624 = vld [vmem:[%s3 + $0xb4] sm:$0xf]
  %v2625 = vld [vmem:[%s3 + $0xb8] sm:$0xf]
  %v2626 = vld [vmem:[%s3 + $0xbc] sm:$0xf]
  %v2627 = vld [vmem:[%s3 + $0xc0] sm:$0xf]
  %v2628 = vld [vmem:[%s3 + $0xc4] sm:$0xf]
  %v2629 = vld [vmem:[%s3 + $0xc8] sm:$0xf]
  %v2630 = vld [vmem:[%s3 + $0xcc] sm:$0xf]
  %v2631 = vld [vmem:[%s3 + $0xd0] sm:$0xf]
  %v2632 = vld [vmem:[%s3 + $0xd4] sm:$0xf]
  %v2633 = vld [vmem:[%s3 + $0xd8] sm:$0xf]
  %v2634 = vld [vmem:[%s3 + $0xdc] sm:$0xf]
  %v2635 = vld [vmem:[%s3 + $0xe0] sm:$0xf]
  %v2636 = vld [vmem:[%s3 + $0xe4] sm:$0xf]
  %v2637 = vld [vmem:[%s3 + $0xe8] sm:$0xf]
  %v2638 = vld [vmem:[%s3 + $0xec] sm:$0xf]
  %v2639 = vld [vmem:[%s3 + $0xf0] sm:$0xf]
  %v2640 = vld [vmem:[%s3 + $0xf4] sm:$0xf]
  %v2641 = vld [vmem:[%s3 + $0xf8] sm:$0xf]
  %v2642 = vld [vmem:[%s3 + $0xfc] sm:$0xf]
  %v2707 = vunpack.c.l.b16 %v2579
  %v2708 = vunpack.c.l.b16 %v2580
  %v2709 = vunpack.c.l.b16 %v2581
  %v2710 = vunpack.c.l.b16 %v2582
  %v2711 = vunpack.c.l.b16 %v2583
  %v2712 = vunpack.c.l.b16 %v2584
  %v2713 = vunpack.c.l.b16 %v2585
  %v2714 = vunpack.c.l.b16 %v2586
  %v2715 = vunpack.c.l.b16 %v2587
  %v2716 = vunpack.c.l.b16 %v2588
  %v2717 = vunpack.c.l.b16 %v2589
  %v2718 = vunpack.c.l.b16 %v2590
  %v2719 = vunpack.c.l.b16 %v2591
  %v2720 = vunpack.c.l.b16 %v2592
  %v2721 = vunpack.c.l.b16 %v2593
  %v2722 = vunpack.c.l.b16 %v2594
  %v2723 = vunpack.c.l.b16 %v2595
  %v2724 = vunpack.c.l.b16 %v2596
  %v2725 = vunpack.c.l.b16 %v2597
  %v2726 = vunpack.c.l.b16 %v2598
  %v2727 = vunpack.c.l.b16 %v2599
  %v2728 = vunpack.c.l.b16 %v2600
  %v2729 = vunpack.c.l.b16 %v2601
  %v2730 = vunpack.c.l.b16 %v2602
  %v2731 = vunpack.c.l.b16 %v2603
  %v2732 = vunpack.c.l.b16 %v2604
  %v2733 = vunpack.c.l.b16 %v2605
  %v2734 = vunpack.c.l.b16 %v2606
  %v2735 = vunpack.c.l.b16 %v2607
  %v2736 = vunpack.c.l.b16 %v2608
  %v2737 = vunpack.c.l.b16 %v2609
  %v2738 = vunpack.c.l.b16 %v2610
  %v2739 = vunpack.c.l.b16 %v2611
  %v2740 = vunpack.c.l.b16 %v2612
  %v2741 = vunpack.c.l.b16 %v2613
  %v2742 = vunpack.c.l.b16 %v2614
  %v2743 = vunpack.c.l.b16 %v2615
  %v2744 = vunpack.c.l.b16 %v2616
  %v2745 = vunpack.c.l.b16 %v2617
  %v2746 = vunpack.c.l.b16 %v2618
  %v2747 = vunpack.c.l.b16 %v2619
  %v2748 = vunpack.c.l.b16 %v2620
  %v2749 = vunpack.c.l.b16 %v2621
  %v2750 = vunpack.c.l.b16 %v2622
  %v2751 = vunpack.c.l.b16 %v2623
  %v2752 = vunpack.c.l.b16 %v2624
  %v2753 = vunpack.c.l.b16 %v2625
  %v2754 = vunpack.c.l.b16 %v2626
  %v2755 = vunpack.c.l.b16 %v2627
  %v2756 = vunpack.c.l.b16 %v2628
  %v2757 = vunpack.c.l.b16 %v2629
  %v2758 = vunpack.c.l.b16 %v2630
  %v2759 = vunpack.c.l.b16 %v2631
  %v2760 = vunpack.c.l.b16 %v2632
  %v2761 = vunpack.c.l.b16 %v2633
  %v2762 = vunpack.c.l.b16 %v2634
  %v2763 = vunpack.c.l.b16 %v2635
  %v2764 = vunpack.c.l.b16 %v2636
  %v2765 = vunpack.c.l.b16 %v2637
  %v2766 = vunpack.c.l.b16 %v2638
  %v2767 = vunpack.c.l.b16 %v2639
  %v2768 = vunpack.c.l.b16 %v2640
  %v2769 = vunpack.c.l.b16 %v2641
  %v2770 = vunpack.c.l.b16 %v2642
  %v2771 = vpack.c.b16 %v2708, %v2707
  %v2772 = vpack.c.b16 %v2710, %v2709
  %v2773 = vpack.c.b16 %v2712, %v2711
  %v2774 = vpack.c.b16 %v2714, %v2713
  %v2775 = vpack.c.b16 %v2716, %v2715
  %v2776 = vpack.c.b16 %v2718, %v2717
  %v2777 = vpack.c.b16 %v2720, %v2719
  %v2778 = vpack.c.b16 %v2722, %v2721
  %v2779 = vpack.c.b16 %v2724, %v2723
  %v2780 = vpack.c.b16 %v2726, %v2725
  %v2781 = vpack.c.b16 %v2728, %v2727
  %v2782 = vpack.c.b16 %v2730, %v2729
  %v2783 = vpack.c.b16 %v2732, %v2731
  %v2784 = vpack.c.b16 %v2734, %v2733
  %v2785 = vpack.c.b16 %v2736, %v2735
  %v2786 = vpack.c.b16 %v2738, %v2737
  %v2787 = vpack.c.b16 %v2740, %v2739
  %v2788 = vpack.c.b16 %v2742, %v2741
  %v2789 = vpack.c.b16 %v2744, %v2743
  %v2790 = vpack.c.b16 %v2746, %v2745
  %v2791 = vpack.c.b16 %v2748, %v2747
  %v2792 = vpack.c.b16 %v2750, %v2749
  %v2793 = vpack.c.b16 %v2752, %v2751
  %v2794 = vpack.c.b16 %v2754, %v2753
  %v2795 = vpack.c.b16 %v2756, %v2755
  %v2796 = vpack.c.b16 %v2758, %v2757
  %v2797 = vpack.c.b16 %v2760, %v2759
  %v2798 = vpack.c.b16 %v2762, %v2761
  %v2799 = vpack.c.b16 %v2764, %v2763
  %v2800 = vpack.c.b16 %v2766, %v2765
  %v2801 = vpack.c.b16 %v2768, %v2767
  %v2802 = vpack.c.b16 %v2770, %v2769
  %2835 = vmatprep.subr.bf16.mxu0 0
  %2836 = vmatpush1.bf16.msra.mxu0 %v2771
  %2837 = vmatprep.subr.bf16.mxu0 0
  %2838 = vmatpush1.bf16.msra.mxu0 %v2772
  %2839 = vmatprep.subr.bf16.mxu0 0
  %2840 = vmatpush1.bf16.msra.mxu0 %v2773
  %2841 = vmatprep.subr.bf16.mxu0 0
  %2842 = vmatpush1.bf16.msra.mxu0 %v2774
  %2843 = vmatprep.subr.bf16.mxu0 0
  %2844 = vmatpush1.bf16.msra.mxu0 %v2775
  %2845 = vmatprep.subr.bf16.mxu0 0
  %2846 = vmatpush1.bf16.msra.mxu0 %v2776
  %2847 = vmatprep.subr.bf16.mxu0 0
  %2848 = vmatpush1.bf16.msra.mxu0 %v2777
  %2849 = vmatprep.subr.bf16.mxu0 0
  %2850 = vmatpush1.bf16.msra.mxu0 %v2778
  %2851 = vmatprep.subr.bf16.mxu0 0
  %2852 = vmatpush1.bf16.msra.mxu0 %v2779
  %2853 = vmatprep.subr.bf16.mxu0 0
  %2854 = vmatpush1.bf16.msra.mxu0 %v2780
  %2855 = vmatprep.subr.bf16.mxu0 0
  %2856 = vmatpush1.bf16.msra.mxu0 %v2781
  %2857 = vmatprep.subr.bf16.mxu0 0
  %2858 = vmatpush1.bf16.msra.mxu0 %v2782
  %2859 = vmatprep.subr.bf16.mxu0 0
  %2860 = vmatpush1.bf16.msra.mxu0 %v2783
  %2861 = vmatprep.subr.bf16.mxu0 0
  %2862 = vmatpush1.bf16.msra.mxu0 %v2784
  %2863 = vmatprep.subr.bf16.mxu0 0
  %2864 = vmatpush1.bf16.msra.mxu0 %v2785
  %2865 = vmatprep.subr.bf16.mxu0 0
  %2866 = vmatpush1.bf16.msra.mxu0 %v2786
  %2867 = vmatprep.mubr.bf16.mxu0 %v2564
  %2868 = vmatmul.mubr.bf16.gmra.mrb[0].mxu0 %v2563
  %v2869 = vpop.f32.mrb[0].mxu0
  %v2870 = vadd.f32 0.0, %v2869
  %v2871 = vpop.f32.mrb[0].mxu0
  %v2872 = vpop.f32.mrb[0].mxu0
  %v2873 = vadd.f32 0.0, %v2872
  %v2874 = vpop.f32.mrb[0].mxu0
  %2875 = vmatprep.mubr.bf16.mxu0 %v2568
  %2876 = vmatmul.mubr.bf16.gmra.mrb[0].mxu0 %v2567
  %v2877 = vpop.f32.mrb[0].mxu0
  %v2878 = vadd.f32 0.0, %v2877
  %v2879 = vpop.f32.mrb[0].mxu0
  %v2880 = vpop.f32.mrb[0].mxu0
  %v2881 = vadd.f32 0.0, %v2880
  %v2882 = vpop.f32.mrb[0].mxu0
  %2883 = vmatprep.mubr.bf16.mxu0 %v2572
  %2884 = vmatmul.mubr.bf16.gmra.mrb[0].mxu0 %v2571
  %v2885 = vpop.f32.mrb[0].mxu0
  %v2886 = vadd.f32 0.0, %v2885
  %v2887 = vpop.f32.mrb[0].mxu0
  %v2888 = vpop.f32.mrb[0].mxu0
  %v2889 = vadd.f32 0.0, %v2888
  %v2890 = vpop.f32.mrb[0].mxu0
  %2891 = vmatprep.mubr.bf16.mxu0 %v2576
  %2892 = vmatmul.mubr.bf16.gmra.mrb[0].mxu0 %v2575
  %v2893 = vpop.f32.mrb[0].mxu0
  %v2894 = vadd.f32 0.0, %v2893
  %v2895 = vpop.f32.mrb[0].mxu0
  %v2896 = vpop.f32.mrb[0].mxu0
  %v2897 = vadd.f32 0.0, %v2896
  %v2898 = vpop.f32.mrb[0].mxu0
  %2899 = vdwg.mxu0
  %2900 = vmatprep.subr.bf16.mxu0 0
  %2901 = vmatpush1.bf16.msra.mxu0 %v2787
  %2902 = vmatprep.subr.bf16.mxu0 0
  %2903 = vmatpush1.bf16.msra.mxu0 %v2788
  %2904 = vmatprep.subr.bf16.mxu0 0
  %2905 = vmatpush1.bf16.msra.mxu0 %v2789
  %2906 = vmatprep.subr.bf16.mxu0 0
  %2907 = vmatpush1.bf16.msra.mxu0 %v2790
  %2908 = vmatprep.subr.bf16.mxu0 0
  %2909 = vmatpush1.bf16.msra.mxu0 %v2791
  %2910 = vmatprep.subr.bf16.mxu0 0
  %2911 = vmatpush1.bf16.msra.mxu0 %v2792
  %2912 = vmatprep.subr.bf16.mxu0 0
  %2913 = vmatpush1.bf16.msra.mxu0 %v2793
  %2914 = vmatprep.subr.bf16.mxu0 0
  %2915 = vmatpush1.bf16.msra.mxu0 %v2794
  %2916 = vmatprep.subr.bf16.mxu0 0
  %2917 = vmatpush1.bf16.msra.mxu0 %v2795
  %2918 = vmatprep.subr.bf16.mxu0 0
  %2919 = vmatpush1.bf16.msra.mxu0 %v2796
  %2920 = vmatprep.subr.bf16.mxu0 0
  %2921 = vmatpush1.bf16.msra.mxu0 %v2797
  %2922 = vmatprep.subr.bf16.mxu0 0
  %2923 = vmatpush1.bf16.msra.mxu0 %v2798
  %2924 = vmatprep.subr.bf16.mxu0 0
  %2925 = vmatpush1.bf16.msra.mxu0 %v2799
  %2926 = vmatprep.subr.bf16.mxu0 0
  %2927 = vmatpush1.bf16.msra.mxu0 %v2800
  %2928 = vmatprep.subr.bf16.mxu0 0
  %2929 = vmatpush1.bf16.msra.mxu0 %v2801
  %2930 = vmatprep.subr.bf16.mxu0 0
  %2931 = vmatpush1.bf16.msra.mxu0 %v2802
  %2932 = vmatprep.mubr.bf16.mxu0 %v2566
  %2933 = vmatmul.mubr.bf16.gmra.mrb[0].mxu0 %v2565
  %v2934 = vpop.f32.mrb[0].mxu0
  %v2935 = vadd.f32 %v2870, %v2934
  %v2936 = vpop.f32.mrb[0].mxu0
  %v2937 = vpop.f32.mrb[0].mxu0
  %v2938 = vadd.f32 %v2873, %v2937
  %v2939 = vpop.f32.mrb[0].mxu0
  %2940 = vmatprep.mubr.bf16.mxu0 %v2570
  %2941 = vmatmul.mubr.bf16.gmra.mrb[0].mxu0 %v2569
  %v2942 = vpop.f32.mrb[0].mxu0
  %v2943 = vadd.f32 %v2878, %v2942
  %v2944 = vpop.f32.mrb[0].mxu0
  %v2945 = vpop.f32.mrb[0].mxu0
  %v2946 = vadd.f32 %v2881, %v2945
  %v2947 = vpop.f32.mrb[0].mxu0
  %2948 = vmatprep.mubr.bf16.mxu0 %v2574
  %2949 = vmatmul.mubr.bf16.gmra.mrb[0].mxu0 %v2573
  %v2950 = vpop.f32.mrb[0].mxu0
  %v2951 = vadd.f32 %v2886, %v2950
  %v2952 = vpop.f32.mrb[0].mxu0
  %v2953 = vpop.f32.mrb[0].mxu0
  %v2954 = vadd.f32 %v2889, %v2953
  %v2955 = vpop.f32.mrb[0].mxu0
  %2956 = vmatprep.mubr.bf16.mxu0 %v2578
  %2957 = vmatmul.mubr.bf16.gmra.mrb[0].mxu0 %v2577
  %v2958 = vpop.f32.mrb[0].mxu0
  %v2959 = vadd.f32 %v2894, %v2958
  %v2960 = vpop.f32.mrb[0].mxu0
  %v2961 = vpop.f32.mrb[0].mxu0
  %v2962 = vadd.f32 %v2897, %v2961
  %v2963 = vpop.f32.mrb[0].mxu0
  %2964 = vdwg.mxu0
  %v2965 = vand.u32 %v703, 63
  %v2966 = vshra.s32 %v2965, 3
  %v2967 = vand.u32 %v703, 7
  %v2968 = vadd.s32 %v2966, 4294967295
  %vm2969 = vcmp.ge.s32.totalorder %v2968, 0
  %vm2970 = vcmp.lt.s32.totalorder %v2968, 8
  %vm2971 = vmand %vm2969, %vm2970
  %v2972 = vadd.s32 %v2967, 4294967295
  %vm2973 = vcmp.ge.s32.totalorder %v2972, 0
  %vm2974 = vmand %vm2971, %vm2973
  %vm2975 = vcmp.lt.s32.totalorder %v2972, 8
  %vm2976 = vmand %vm2974, %vm2975
  %vm2977 = vcmp.ge.s32.totalorder %v2967, 0
  %vm2978 = vmand %vm2971, %vm2977
  %vm2979 = vcmp.lt.s32.totalorder %v2967, 8
  %vm2980 = vmand %vm2978, %vm2979
  %v2981 = vadd.s32 %v2967, 1
  %vm2982 = vcmp.ge.s32.totalorder %v2981, 0
  %vm2983 = vmand %vm2971, %vm2982
  %vm2984 = vcmp.lt.s32.totalorder %v2981, 8
  %vm2985 = vmand %vm2983, %vm2984
  %vm2986 = vcmp.ge.s32.totalorder %v2966, 0
  %vm2987 = vcmp.lt.s32.totalorder %v2966, 8
  %vm2988 = vmand %vm2986, %vm2987
  %vm2989 = vmand %vm2988, %vm2973
  %vm2990 = vmand %vm2989, %vm2975
  %vm2991 = vmand %vm2988, %vm2977
  %vm2992 = vmand %vm2991, %vm2979
  %vm2993 = vmand %vm2988, %vm2982
  %vm2994 = vmand %vm2993, %vm2984
  %v2995 = vadd.s32 %v2966, 1
  %vm2996 = vcmp.ge.s32.totalorder %v2995, 0
  %vm2997 = vcmp.lt.s32.totalorder %v2995, 8
  %vm2998 = vmand %vm2996, %vm2997
  %vm2999 = vmand %vm2998, %vm2973
  %vm3000 = vmand %vm2999, %vm2975
  %vm3001 = vmand %vm2998, %vm2977
  %vm3002 = vmand %vm3001, %vm2979
  %vm3003 = vmand %vm2998, %vm2982
  %vm3004 = vmand %vm3003, %vm2984
  %v3005 = vpack.c.bf16 %v2938, %v2935
  %v3006 = vpack.c.bf16 %v2946, %v2943
  %v3007 = vpack.c.bf16 %v2954, %v2951
  %v3008 = vpack.c.bf16 %v2962, %v2959
  %3013 = vrot.lane.b32.xlu0 %v3005, 9
  %v3014 = vpop.permute.xlu0 %3013
  %3015 = vrot.lane.b32.xlu0 %v3006, 9
  %v3016 = vpop.permute.xlu0 %3015
  %3017 = vrot.lane.b32.xlu0 %v3007, 9
  %v3018 = vpop.permute.xlu0 %3017
  %3019 = vrot.lane.b32.xlu0 %v3008, 9
  %v3020 = vpop.permute.xlu0 %3019
  %v3029 = vsel %vm2976, 1, 0
  %vm3030 = vcmp.eq.s32.totalorder %v3029, 1
  %vm3031 = vmpackc.low %vm3030, %vm3030
  %v3032 = vsel %vm3031, 65537, 0
  %v3033 = vlaneseq
  %v3034 = vshrl.u32 %v3033, 7
  %v3035 = vsub.s32 0, %v3034
  %v3036 = vrot.slane %v3032, %v3035
  %vm3037 = vcmp.ne.s16.totalorder %v3036, 0
  %v3038 = vsel %vm3037, %v3014, 0
  %v3039 = vsel %vm3037, %v3016, 0
  %v3040 = vsel %vm3037, %v3018, 0
  %v3041 = vsel %vm3037, %v3020, 0
  %3042 = vrot.lane.b32.xlu0 %v3005, 8
  %v3043 = vpop.permute.xlu0 %3042
  %3044 = vrot.lane.b32.xlu0 %v3006, 8
  %v3045 = vpop.permute.xlu0 %3044
  %3046 = vrot.lane.b32.xlu0 %v3007, 8
  %v3047 = vpop.permute.xlu0 %3046
  %3048 = vrot.lane.b32.xlu0 %v3008, 8
  %v3049 = vpop.permute.xlu0 %3048
  %v3058 = vsel %vm2980, 1, 0
  %vm3059 = vcmp.eq.s32.totalorder %v3058, 1
  %vm3060 = vmpackc.low %vm3059, %vm3059
  %v3061 = vsel %vm3060, 65537, 0
  %v3062 = vlaneseq
  %v3063 = vshrl.u32 %v3062, 7
  %v3064 = vsub.s32 0, %v3063
  %v3065 = vrot.slane %v3061, %v3064
  %vm3066 = vcmp.ne.s16.totalorder %v3065, 0
  %v3067 = vsel %vm3066, %v3043, 0
  %v3068 = vsel %vm3066, %v3045, 0
  %v3069 = vsel %vm3066, %v3047, 0
  %v3070 = vsel %vm3066, %v3049, 0
  %3071 = vrot.lane.b32.xlu0 %v3005, 7
  %v3072 = vpop.permute.xlu0 %3071
  %3073 = vrot.lane.b32.xlu0 %v3006, 7
  %v3074 = vpop.permute.xlu0 %3073
  %3075 = vrot.lane.b32.xlu0 %v3007, 7
  %v3076 = vpop.permute.xlu0 %3075
  %3077 = vrot.lane.b32.xlu0 %v3008, 7
  %v3078 = vpop.permute.xlu0 %3077
  %v3087 = vsel %vm2985, 1, 0
  %vm3088 = vcmp.eq.s32.totalorder %v3087, 1
  %vm3089 = vmpackc.low %vm3088, %vm3088
  %v3090 = vsel %vm3089, 65537, 0
  %v3091 = vlaneseq
  %v3092 = vshrl.u32 %v3091, 7
  %v3093 = vsub.s32 0, %v3092
  %v3094 = vrot.slane %v3090, %v3093
  %vm3095 = vcmp.ne.s16.totalorder %v3094, 0
  %v3096 = vsel %vm3095, %v3072, 0
  %v3097 = vsel %vm3095, %v3074, 0
  %v3098 = vsel %vm3095, %v3076, 0
  %v3099 = vsel %vm3095, %v3078, 0
  %3100 = vrot.lane.b32.xlu0 %v3005, 1
  %v3101 = vpop.permute.xlu0 %3100
  %3102 = vrot.lane.b32.xlu0 %v3006, 1
  %v3103 = vpop.permute.xlu0 %3102
  %3104 = vrot.lane.b32.xlu0 %v3007, 1
  %v3105 = vpop.permute.xlu0 %3104
  %3106 = vrot.lane.b32.xlu0 %v3008, 1
  %v3107 = vpop.permute.xlu0 %3106
  %v3116 = vsel %vm2990, 1, 0
  %vm3117 = vcmp.eq.s32.totalorder %v3116, 1
  %vm3118 = vmpackc.low %vm3117, %vm3117
  %v3119 = vsel %vm3118, 65537, 0
  %v3120 = vlaneseq
  %v3121 = vshrl.u32 %v3120, 7
  %v3122 = vsub.s32 0, %v3121
  %v3123 = vrot.slane %v3119, %v3122
  %vm3124 = vcmp.ne.s16.totalorder %v3123, 0
  %v3125 = vsel %vm3124, %v3101, 0
  %v3126 = vsel %vm3124, %v3103, 0
  %v3127 = vsel %vm3124, %v3105, 0
  %v3128 = vsel %vm3124, %v3107, 0
  %v3129 = vsel %vm2992, 1, 0
  %vm3130 = vcmp.eq.s32.totalorder %v3129, 1
  %vm3131 = vmpackc.low %vm3130, %vm3130
  %v3132 = vsel %vm3131, 65537, 0
  %v3133 = vlaneseq
  %v3134 = vshrl.u32 %v3133, 7
  %v3135 = vsub.s32 0, %v3134
  %v3136 = vrot.slane %v3132, %v3135
  %vm3137 = vcmp.ne.s16.totalorder %v3136, 0
  %v3138 = vsel %vm3137, %v3005, 0
  %v3139 = vsel %vm3137, %v3006, 0
  %v3140 = vsel %vm3137, %v3007, 0
  %v3141 = vsel %vm3137, %v3008, 0
  %3142 = vrot.lane.b32.xlu0 %v3005, 127
  %v3143 = vpop.permute.xlu0 %3142
  %3144 = vrot.lane.b32.xlu0 %v3006, 127
  %v3145 = vpop.permute.xlu0 %3144
  %3146 = vrot.lane.b32.xlu0 %v3007, 127
  %v3147 = vpop.permute.xlu0 %3146
  %3148 = vrot.lane.b32.xlu0 %v3008, 127
  %v3149 = vpop.permute.xlu0 %3148
  %v3158 = vsel %vm2994, 1, 0
  %vm3159 = vcmp.eq.s32.totalorder %v3158, 1
  %vm3160 = vmpackc.low %vm3159, %vm3159
  %v3161 = vsel %vm3160, 65537, 0
  %v3162 = vlaneseq
  %v3163 = vshrl.u32 %v3162, 7
  %v3164 = vsub.s32 0, %v3163
  %v3165 = vrot.slane %v3161, %v3164
  %vm3166 = vcmp.ne.s16.totalorder %v3165, 0
  %v3167 = vsel %vm3166, %v3143, 0
  %v3168 = vsel %vm3166, %v3145, 0
  %v3169 = vsel %vm3166, %v3147, 0
  %v3170 = vsel %vm3166, %v3149, 0
  %3171 = vrot.lane.b32.xlu0 %v3005, 121
  %v3172 = vpop.permute.xlu0 %3171
  %3173 = vrot.lane.b32.xlu0 %v3006, 121
  %v3174 = vpop.permute.xlu0 %3173
  %3175 = vrot.lane.b32.xlu0 %v3007, 121
  %v3176 = vpop.permute.xlu0 %3175
  %3177 = vrot.lane.b32.xlu0 %v3008, 121
  %v3178 = vpop.permute.xlu0 %3177
  %v3187 = vsel %vm3000, 1, 0
  %vm3188 = vcmp.eq.s32.totalorder %v3187, 1
  %vm3189 = vmpackc.low %vm3188, %vm3188
  %v3190 = vsel %vm3189, 65537, 0
  %v3191 = vlaneseq
  %v3192 = vshrl.u32 %v3191, 7
  %v3193 = vsub.s32 0, %v3192
  %v3194 = vrot.slane %v3190, %v3193
  %vm3195 = vcmp.ne.s16.totalorder %v3194, 0
  %v3196 = vsel %vm3195, %v3172, 0
  %v3197 = vsel %vm3195, %v3174, 0
  %v3198 = vsel %vm3195, %v3176, 0
  %v3199 = vsel %vm3195, %v3178, 0
  %3200 = vrot.lane.b32.xlu0 %v3005, 120
  %v3201 = vpop.permute.xlu0 %3200
  %3202 = vrot.lane.b32.xlu0 %v3006, 120
  %v3203 = vpop.permute.xlu0 %3202
  %3204 = vrot.lane.b32.xlu0 %v3007, 120
  %v3205 = vpop.permute.xlu0 %3204
  %3206 = vrot.lane.b32.xlu0 %v3008, 120
  %v3207 = vpop.permute.xlu0 %3206
  %v3216 = vsel %vm3002, 1, 0
  %vm3217 = vcmp.eq.s32.totalorder %v3216, 1
  %vm3218 = vmpackc.low %vm3217, %vm3217
  %v3219 = vsel %vm3218, 65537, 0
  %v3220 = vlaneseq
  %v3221 = vshrl.u32 %v3220, 7
  %v3222 = vsub.s32 0, %v3221
  %v3223 = vrot.slane %v3219, %v3222
  %vm3224 = vcmp.ne.s16.totalorder %v3223, 0
  %v3225 = vsel %vm3224, %v3201, 0
  %v3226 = vsel %vm3224, %v3203, 0
  %v3227 = vsel %vm3224, %v3205, 0
  %v3228 = vsel %vm3224, %v3207, 0
  %3229 = vrot.lane.b32.xlu0 %v3005, 119
  %v3230 = vpop.permute.xlu0 %3229
  %3231 = vrot.lane.b32.xlu0 %v3006, 119
  %v3232 = vpop.permute.xlu0 %3231
  %3233 = vrot.lane.b32.xlu0 %v3007, 119
  %v3234 = vpop.permute.xlu0 %3233
  %3235 = vrot.lane.b32.xlu0 %v3008, 119
  %v3236 = vpop.permute.xlu0 %3235
  %v3245 = vsel %vm3004, 1, 0
  %vm3246 = vcmp.eq.s32.totalorder %v3245, 1
  %vm3247 = vmpackc.low %vm3246, %vm3246
  %v3248 = vsel %vm3247, 65537, 0
  %v3249 = vlaneseq
  %v3250 = vshrl.u32 %v3249, 7
  %v3251 = vsub.s32 0, %v3250
  %v3252 = vrot.slane %v3248, %v3251
  %vm3253 = vcmp.ne.s16.totalorder %v3252, 0
  %v3254 = vsel %vm3253, %v3230, 0
  %v3255 = vsel %vm3253, %v3232, 0
  %v3256 = vsel %vm3253, %v3234, 0
  %v3257 = vsel %vm3253, %v3236, 0
  %v3258 = vld [vmem:[%s4] sm:$0xff]
  %v3259 = vld [vmem:[%s4 + $0x8] sm:$0xff]
  %v3260 = vld [vmem:[%s4 + $0x10] sm:$0xf]
  %v3261 = vld [vmem:[%s4 + $0x14] sm:$0xff]
  %v3262 = vld [vmem:[%s4 + $0x1c] sm:$0xff]
  %v3263 = vld [vmem:[%s4 + $0x24] sm:$0xf]
  %v3264 = vld [vmem:[%s4 + $0x28] sm:$0xff]
  %v3265 = vld [vmem:[%s4 + $0x30] sm:$0xff]
  %v3266 = vld [vmem:[%s4 + $0x38] sm:$0xf]
  %v3267 = vld [vmem:[%s4 + $0x3c] sm:$0xff]
  %v3268 = vld [vmem:[%s4 + $0x44] sm:$0xff]
  %v3269 = vld [vmem:[%s4 + $0x4c] sm:$0xf]
  %v3270 = vld [vmem:[%s4 + $0x50] sm:$0xff]
  %v3271 = vld [vmem:[%s4 + $0x58] sm:$0xff]
  %v3272 = vld [vmem:[%s4 + $0x60] sm:$0xf]
  %v3273 = vld [vmem:[%s4 + $0x64] sm:$0xff]
  %v3274 = vld [vmem:[%s4 + $0x6c] sm:$0xff]
  %v3275 = vld [vmem:[%s4 + $0x74] sm:$0xf]
  %v3276 = vld [vmem:[%s4 + $0x78] sm:$0xff]
  %v3277 = vld [vmem:[%s4 + $0x80] sm:$0xff]
  %v3278 = vld [vmem:[%s4 + $0x88] sm:$0xf]
  %v3279 = vld [vmem:[%s4 + $0x8c] sm:$0xff]
  %v3280 = vld [vmem:[%s4 + $0x94] sm:$0xff]
  %v3281 = vld [vmem:[%s4 + $0x9c] sm:$0xf]
  %v3282 = vld [vmem:[%s5] sm:$0xff]
  %v3283 = vld [vmem:[%s5 + $0x8] sm:$0xff]
  %v3284 = vld [vmem:[%s5 + $0x10] sm:$0xff]
  %v3285 = vld [vmem:[%s5 + $0x18] sm:$0xff]
  %v3286 = vld [vmem:[%s5 + $0x20] sm:$0xff]
  %v3287 = vld [vmem:[%s5 + $0x28] sm:$0xff]
  %v3288 = vld [vmem:[%s5 + $0x30] sm:$0xff]
  %v3289 = vld [vmem:[%s5 + $0x38] sm:$0xff]
  %3291 = vset.pattern.permute.xlu0 0
  %3292 = vperm.xlu0 %3291, %v3282
  %v3293 = vpop.permute.xlu0 %3292
  %3296 = vset.pattern.permute.xlu0 0
  %3297 = vperm.xlu0 %3296, %v3283
  %v3298 = vpop.permute.xlu0 %3297
  %3301 = vset.pattern.permute.xlu0 0
  %3302 = vperm.xlu0 %3301, %v3284
  %v3303 = vpop.permute.xlu0 %3302
  %3306 = vset.pattern.permute.xlu0 0
  %3307 = vperm.xlu0 %3306, %v3285
  %v3308 = vpop.permute.xlu0 %3307
  %3311 = vset.pattern.permute.xlu0 0
  %3312 = vperm.xlu0 %3311, %v3286
  %v3313 = vpop.permute.xlu0 %3312
  %3316 = vset.pattern.permute.xlu0 0
  %3317 = vperm.xlu0 %3316, %v3287
  %v3318 = vpop.permute.xlu0 %3317
  %3321 = vset.pattern.permute.xlu0 0
  %3322 = vperm.xlu0 %3321, %v3288
  %v3323 = vpop.permute.xlu0 %3322
  %3326 = vset.pattern.permute.xlu0 0
  %3327 = vperm.xlu0 %3326, %v3289
  %v3328 = vpop.permute.xlu0 %3327
  %v3354 = vunpack.c.l.b16 %v3258
  %v3355 = vunpack.c.h.b16 %v3258
  %v3356 = vunpack.c.l.b16 %v3259
  %v3357 = vunpack.c.h.b16 %v3259
  %v3358 = vunpack.c.l.b16 %v3260
  %v3359 = vunpack.c.l.b16 %v3261
  %v3360 = vunpack.c.h.b16 %v3261
  %v3361 = vunpack.c.l.b16 %v3262
  %v3362 = vunpack.c.h.b16 %v3262
  %v3363 = vunpack.c.l.b16 %v3263
  %v3364 = vunpack.c.l.b16 %v3264
  %v3365 = vunpack.c.h.b16 %v3264
  %v3366 = vunpack.c.l.b16 %v3265
  %v3367 = vunpack.c.h.b16 %v3265
  %v3368 = vunpack.c.l.b16 %v3266
  %v3369 = vunpack.c.l.b16 %v3267
  %v3370 = vunpack.c.h.b16 %v3267
  %v3371 = vunpack.c.l.b16 %v3268
  %v3372 = vunpack.c.h.b16 %v3268
  %v3373 = vunpack.c.l.b16 %v3269
  %v3374 = vunpack.c.l.b16 %v3270
  %v3375 = vunpack.c.h.b16 %v3270
  %v3376 = vunpack.c.l.b16 %v3271
  %v3377 = vunpack.c.h.b16 %v3271
  %v3378 = vunpack.c.l.b16 %v3272
  %v3379 = vunpack.c.l.b16 %v3273
  %v3380 = vunpack.c.h.b16 %v3273
  %v3381 = vunpack.c.l.b16 %v3274
  %v3382 = vunpack.c.h.b16 %v3274
  %v3383 = vunpack.c.l.b16 %v3275
  %v3384 = vunpack.c.l.b16 %v3276
  %v3385 = vunpack.c.h.b16 %v3276
  %v3386 = vunpack.c.l.b16 %v3277
  %v3387 = vunpack.c.h.b16 %v3277
  %v3388 = vunpack.c.l.b16 %v3278
  %v3389 = vunpack.c.l.b16 %v3279
  %v3390 = vunpack.c.h.b16 %v3279
  %v3391 = vunpack.c.l.b16 %v3280
  %v3392 = vunpack.c.h.b16 %v3280
  %v3393 = vunpack.c.l.b16 %v3281
  %v3394 = vpack.c.b16 %v3359, %v3354
  %v3395 = vpack.c.b16 %v3360, %v3355
  %v3396 = vpack.c.b16 %v3361, %v3356
  %v3397 = vpack.c.b16 %v3362, %v3357
  %v3398 = vpack.c.b16 %v3363, %v3358
  %v3399 = vpack.c.b16 %v3369, %v3364
  %v3400 = vpack.c.b16 %v3370, %v3365
  %v3401 = vpack.c.b16 %v3371, %v3366
  %v3402 = vpack.c.b16 %v3372, %v3367
  %v3403 = vpack.c.b16 %v3373, %v3368
  %v3404 = vpack.c.b16 %v3379, %v3374
  %v3405 = vpack.c.b16 %v3380, %v3375
  %v3406 = vpack.c.b16 %v3381, %v3376
  %v3407 = vpack.c.b16 %v3382, %v3377
  %v3408 = vpack.c.b16 %v3383, %v3378
  %v3409 = vpack.c.b16 %v3389, %v3384
  %v3410 = vpack.c.b16 %v3390, %v3385
  %v3411 = vpack.c.b16 %v3391, %v3386
  %v3412 = vpack.c.b16 %v3392, %v3387
  %v3413 = vpack.c.b16 %v3393, %v3388
  %vm3430 = vcmask 523264
  %v3432 = vsel %vm3430, %v3398, 0
  %v3435 = vsel %vm3430, %v3403, 0
  %v3438 = vsel %vm3430, %v3408, 0
  %v3441 = vsel %vm3430, %v3413, 0
  %3443 = vmatprep.subr.bf16.mxu0 0
  %3444 = vmatpush1.bf16.msra.mxu0 %v3038
  %3445 = vmatprep.subr.bf16.mxu0 0
  %3446 = vmatpush1.bf16.msra.mxu0 %v3039
  %3447 = vmatprep.subr.bf16.mxu0 0
  %3448 = vmatpush1.bf16.msra.mxu0 %v3040
  %3449 = vmatprep.subr.bf16.mxu0 0
  %3450 = vmatpush1.bf16.msra.mxu0 %v3041
  %3451 = vmatprep.subr.bf16.mxu0 0
  %3452 = vmatpush1.bf16.msra.mxu0 %v3067
  %3453 = vmatprep.subr.bf16.mxu0 0
  %3454 = vmatpush1.bf16.msra.mxu0 %v3068
  %3455 = vmatprep.subr.bf16.mxu0 0
  %3456 = vmatpush1.bf16.msra.mxu0 %v3069
  %3457 = vmatprep.subr.bf16.mxu0 0
  %3458 = vmatpush1.bf16.msra.mxu0 %v3070
  %3459 = vmatprep.subr.bf16.mxu0 0
  %3460 = vmatpush1.bf16.msra.mxu0 %v3096
  %3461 = vmatprep.subr.bf16.mxu0 0
  %3462 = vmatpush1.bf16.msra.mxu0 %v3097
  %3463 = vmatprep.subr.bf16.mxu0 0
  %3464 = vmatpush1.bf16.msra.mxu0 %v3098
  %3465 = vmatprep.subr.bf16.mxu0 0
  %3466 = vmatpush1.bf16.msra.mxu0 %v3099
  %3467 = vmatprep.subr.bf16.mxu0 0
  %3468 = vmatpush1.bf16.msra.mxu0 %v3125
  %3469 = vmatprep.subr.bf16.mxu0 0
  %3470 = vmatpush1.bf16.msra.mxu0 %v3126
  %3471 = vmatprep.subr.bf16.mxu0 0
  %3472 = vmatpush1.bf16.msra.mxu0 %v3127
  %3473 = vmatprep.subr.bf16.mxu0 0
  %3474 = vmatpush1.bf16.msra.mxu0 %v3128
  %3475 = vmatprep.mubr.bf16.mxu0 %v3395
  %3476 = vmatmul.mubr.bf16.gmra.mrb[0].mxu0 %v3394
  %v3477 = vpop.f32.mrb[0].mxu0
  %v3478 = vadd.f32 %v3293, %v3477
  %v3479 = vpop.f32.mrb[0].mxu0
  %v3480 = vpop.f32.mrb[0].mxu0
  %v3481 = vadd.f32 %v3298, %v3480
  %v3482 = vpop.f32.mrb[0].mxu0
  %3483 = vmatprep.mubr.bf16.mxu0 %v3400
  %3484 = vmatmul.mubr.bf16.gmra.mrb[0].mxu0 %v3399
  %v3485 = vpop.f32.mrb[0].mxu0
  %v3486 = vadd.f32 %v3303, %v3485
  %v3487 = vpop.f32.mrb[0].mxu0
  %v3488 = vpop.f32.mrb[0].mxu0
  %v3489 = vadd.f32 %v3308, %v3488
  %v3490 = vpop.f32.mrb[0].mxu0
  %3491 = vmatprep.mubr.bf16.mxu0 %v3405
  %3492 = vmatmul.mubr.bf16.gmra.mrb[0].mxu0 %v3404
  %v3493 = vpop.f32.mrb[0].mxu0
  %v3494 = vadd.f32 %v3313, %v3493
  %v3495 = vpop.f32.mrb[0].mxu0
  %v3496 = vpop.f32.mrb[0].mxu0
  %v3497 = vadd.f32 %v3318, %v3496
  %v3498 = vpop.f32.mrb[0].mxu0
  %3499 = vmatprep.mubr.bf16.mxu0 %v3410
  %3500 = vmatmul.mubr.bf16.gmra.mrb[0].mxu0 %v3409
  %v3501 = vpop.f32.mrb[0].mxu0
  %v3502 = vadd.f32 %v3323, %v3501
  %v3503 = vpop.f32.mrb[0].mxu0
  %v3504 = vpop.f32.mrb[0].mxu0
  %v3505 = vadd.f32 %v3328, %v3504
  %v3506 = vpop.f32.mrb[0].mxu0
  %3507 = vdwg.mxu0
  %3508 = vmatprep.subr.bf16.mxu0 0
  %3509 = vmatpush1.bf16.msra.mxu0 %v3138
  %3510 = vmatprep.subr.bf16.mxu0 0
  %3511 = vmatpush1.bf16.msra.mxu0 %v3139
  %3512 = vmatprep.subr.bf16.mxu0 0
  %3513 = vmatpush1.bf16.msra.mxu0 %v3140
  %3514 = vmatprep.subr.bf16.mxu0 0
  %3515 = vmatpush1.bf16.msra.mxu0 %v3141
  %3516 = vmatprep.subr.bf16.mxu0 0
  %3517 = vmatpush1.bf16.msra.mxu0 %v3167
  %3518 = vmatprep.subr.bf16.mxu0 0
  %3519 = vmatpush1.bf16.msra.mxu0 %v3168
  %3520 = vmatprep.subr.bf16.mxu0 0
  %3521 = vmatpush1.bf16.msra.mxu0 %v3169
  %3522 = vmatprep.subr.bf16.mxu0 0
  %3523 = vmatpush1.bf16.msra.mxu0 %v3170
  %3524 = vmatprep.subr.bf16.mxu0 0
  %3525 = vmatpush1.bf16.msra.mxu0 %v3196
  %3526 = vmatprep.subr.bf16.mxu0 0
  %3527 = vmatpush1.bf16.msra.mxu0 %v3197
  %3528 = vmatprep.subr.bf16.mxu0 0
  %3529 = vmatpush1.bf16.msra.mxu0 %v3198
  %3530 = vmatprep.subr.bf16.mxu0 0
  %3531 = vmatpush1.bf16.msra.mxu0 %v3199
  %3532 = vmatprep.subr.bf16.mxu0 0
  %3533 = vmatpush1.bf16.msra.mxu0 %v3225
  %3534 = vmatprep.subr.bf16.mxu0 0
  %3535 = vmatpush1.bf16.msra.mxu0 %v3226
  %3536 = vmatprep.subr.bf16.mxu0 0
  %3537 = vmatpush1.bf16.msra.mxu0 %v3227
  %3538 = vmatprep.subr.bf16.mxu0 0
  %3539 = vmatpush1.bf16.msra.mxu0 %v3228
  %3540 = vmatprep.mubr.bf16.mxu0 %v3397
  %3541 = vmatmul.mubr.bf16.gmra.mrb[0].mxu0 %v3396
  %v3542 = vpop.f32.mrb[0].mxu0
  %v3543 = vadd.f32 %v3478, %v3542
  %v3544 = vpop.f32.mrb[0].mxu0
  %v3545 = vpop.f32.mrb[0].mxu0
  %v3546 = vadd.f32 %v3481, %v3545
  %v3547 = vpop.f32.mrb[0].mxu0
  %3548 = vmatprep.mubr.bf16.mxu0 %v3402
  %3549 = vmatmul.mubr.bf16.gmra.mrb[0].mxu0 %v3401
  %v3550 = vpop.f32.mrb[0].mxu0
  %v3551 = vadd.f32 %v3486, %v3550
  %v3552 = vpop.f32.mrb[0].mxu0
  %v3553 = vpop.f32.mrb[0].mxu0
  %v3554 = vadd.f32 %v3489, %v3553
  %v3555 = vpop.f32.mrb[0].mxu0
  %3556 = vmatprep.mubr.bf16.mxu0 %v3407
  %3557 = vmatmul.mubr.bf16.gmra.mrb[0].mxu0 %v3406
  %v3558 = vpop.f32.mrb[0].mxu0
  %v3559 = vadd.f32 %v3494, %v3558
  %v3560 = vpop.f32.mrb[0].mxu0
  %v3561 = vpop.f32.mrb[0].mxu0
  %v3562 = vadd.f32 %v3497, %v3561
  %v3563 = vpop.f32.mrb[0].mxu0
  %3564 = vmatprep.mubr.bf16.mxu0 %v3412
  %3565 = vmatmul.mubr.bf16.gmra.mrb[0].mxu0 %v3411
  %v3566 = vpop.f32.mrb[0].mxu0
  %v3567 = vadd.f32 %v3502, %v3566
  %v3568 = vpop.f32.mrb[0].mxu0
  %v3569 = vpop.f32.mrb[0].mxu0
  %v3570 = vadd.f32 %v3505, %v3569
  %v3571 = vpop.f32.mrb[0].mxu0
  %3572 = vdwg.mxu0
  %3573 = vmatprep.subr.bf16.mxu0 0
  %3574 = vmatpush1.bf16.msra.mxu0 %v3254
  %3575 = vmatprep.subr.bf16.mxu0 0
  %3576 = vmatpush1.bf16.msra.mxu0 %v3255
  %3577 = vmatprep.subr.bf16.mxu0 0
  %3578 = vmatpush1.bf16.msra.mxu0 %v3256
  %3579 = vmatprep.subr.bf16.mxu0 0
  %3580 = vmatpush1.bf16.msra.mxu0 %v3257
  %3581 = vmatprep.subr.bf16.mxu0 0
  %3582 = vmatpush1.bf16.msra.mxu0 0
  %3583 = vmatprep.subr.bf16.mxu0 0
  %3584 = vmatpush1.bf16.msra.mxu0 0
  %3585 = vmatprep.subr.bf16.mxu0 0
  %3586 = vmatpush1.bf16.msra.mxu0 0
  %3587 = vmatprep.subr.bf16.mxu0 0
  %3588 = vmatpush1.bf16.msra.mxu0 0
  %3589 = vmatprep.subr.bf16.mxu0 0
  %3590 = vmatpush1.bf16.msra.mxu0 0
  %3591 = vmatprep.subr.bf16.mxu0 0
  %3592 = vmatpush1.bf16.msra.mxu0 0
  %3593 = vmatprep.subr.bf16.mxu0 0
  %3594 = vmatpush1.bf16.msra.mxu0 0
  %3595 = vmatprep.subr.bf16.mxu0 0
  %3596 = vmatpush1.bf16.msra.mxu0 0
  %3597 = vmatprep.subr.bf16.mxu0 0
  %3598 = vmatpush1.bf16.msra.mxu0 0
  %3599 = vmatprep.subr.bf16.mxu0 0
  %3600 = vmatpush1.bf16.msra.mxu0 0
  %3601 = vmatprep.subr.bf16.mxu0 0
  %3602 = vmatpush1.bf16.msra.mxu0 0
  %3603 = vmatprep.subr.bf16.mxu0 0
  %3604 = vmatpush1.bf16.msra.mxu0 0
  %3605 = vmatprep.mubr.bf16.mxu0 0
  %3606 = vmatmul.mubr.bf16.gmra.mrb[0].mxu0 %v3432
  %v3607 = vpop.f32.mrb[0].mxu0
  %v3608 = vadd.f32 %v3543, %v3607
  %v3609 = vpop.f32.mrb[0].mxu0
  %v3610 = vpop.f32.mrb[0].mxu0
  %v3611 = vadd.f32 %v3546, %v3610
  %v3612 = vpop.f32.mrb[0].mxu0
  %3613 = vmatprep.mubr.bf16.mxu0 0
  %3614 = vmatmul.mubr.bf16.gmra.mrb[0].mxu0 %v3435
  %v3615 = vpop.f32.mrb[0].mxu0
  %v3616 = vadd.f32 %v3551, %v3615
  %v3617 = vpop.f32.mrb[0].mxu0
  %v3618 = vpop.f32.mrb[0].mxu0
  %v3619 = vadd.f32 %v3554, %v3618
  %v3620 = vpop.f32.mrb[0].mxu0
  %3621 = vmatprep.mubr.bf16.mxu0 0
  %3622 = vmatmul.mubr.bf16.gmra.mrb[0].mxu0 %v3438
  %v3623 = vpop.f32.mrb[0].mxu0
  %v3624 = vadd.f32 %v3559, %v3623
  %v3625 = vpop.f32.mrb[0].mxu0
  %v3626 = vpop.f32.mrb[0].mxu0
  %v3627 = vadd.f32 %v3562, %v3626
  %v3628 = vpop.f32.mrb[0].mxu0
  %3629 = vmatprep.mubr.bf16.mxu0 0
  %3630 = vmatmul.mubr.bf16.gmra.mrb[0].mxu0 %v3441
  %v3631 = vpop.f32.mrb[0].mxu0
  %v3632 = vadd.f32 %v3567, %v3631
  %v3633 = vpop.f32.mrb[0].mxu0
  %v3634 = vpop.f32.mrb[0].mxu0
  %v3635 = vadd.f32 %v3570, %v3634
  %v3636 = vpop.f32.mrb[0].mxu0
  %3637 = vdwg.mxu0
  %v3638 = vmax.f32 %v3608, 0.0
  %v3639 = vmax.f32 %v3611, 0.0
  %v3640 = vmax.f32 %v3616, 0.0
  %v3641 = vmax.f32 %v3619, 0.0
  %v3642 = vmax.f32 %v3624, 0.0
  %v3643 = vmax.f32 %v3627, 0.0
  %v3644 = vmax.f32 %v3632, 0.0
  %v3645 = vmax.f32 %v3635, 0.0
  %v3646 = vpack.c.bf16 %v3639, %v3638
  %v3647 = vpack.c.bf16 %v3641, %v3640
  %v3648 = vpack.c.bf16 %v3643, %v3642
  %v3649 = vpack.c.bf16 %v3645, %v3644
  %3654 = vrot.lane.b32.xlu0 %v3646, 9
  %v3655 = vpop.permute.xlu0 %3654
  %3656 = vrot.lane.b32.xlu0 %v3647, 9
  %v3657 = vpop.permute.xlu0 %3656
  %3658 = vrot.lane.b32.xlu0 %v3648, 9
  %v3659 = vpop.permute.xlu0 %3658
  %3660 = vrot.lane.b32.xlu0 %v3649, 9
  %v3661 = vpop.permute.xlu0 %3660
  %v3670 = vsel %vm3037, %v3655, 0
  %v3671 = vsel %vm3037, %v3657, 0
  %v3672 = vsel %vm3037, %v3659, 0
  %v3673 = vsel %vm3037, %v3661, 0
  %3674 = vrot.lane.b32.xlu0 %v3646, 8
  %v3675 = vpop.permute.xlu0 %3674
  %3676 = vrot.lane.b32.xlu0 %v3647, 8
  %v3677 = vpop.permute.xlu0 %3676
  %3678 = vrot.lane.b32.xlu0 %v3648, 8
  %v3679 = vpop.permute.xlu0 %3678
  %3680 = vrot.lane.b32.xlu0 %v3649, 8
  %v3681 = vpop.permute.xlu0 %3680
  %v3690 = vsel %vm3066, %v3675, 0
  %v3691 = vsel %vm3066, %v3677, 0
  %v3692 = vsel %vm3066, %v3679, 0
  %v3693 = vsel %vm3066, %v3681, 0
  %3694 = vrot.lane.b32.xlu0 %v3646, 7
  %v3695 = vpop.permute.xlu0 %3694
  %3696 = vrot.lane.b32.xlu0 %v3647, 7
  %v3697 = vpop.permute.xlu0 %3696
  %3698 = vrot.lane.b32.xlu0 %v3648, 7
  %v3699 = vpop.permute.xlu0 %3698
  %3700 = vrot.lane.b32.xlu0 %v3649, 7
  %v3701 = vpop.permute.xlu0 %3700
  %v3710 = vsel %vm3095, %v3695, 0
  %v3711 = vsel %vm3095, %v3697, 0
  %v3712 = vsel %vm3095, %v3699, 0
  %v3713 = vsel %vm3095, %v3701, 0
  %3714 = vrot.lane.b32.xlu0 %v3646, 1
  %v3715 = vpop.permute.xlu0 %3714
  %3716 = vrot.lane.b32.xlu0 %v3647, 1
  %v3717 = vpop.permute.xlu0 %3716
  %3718 = vrot.lane.b32.xlu0 %v3648, 1
  %v3719 = vpop.permute.xlu0 %3718
  %3720 = vrot.lane.b32.xlu0 %v3649, 1
  %v3721 = vpop.permute.xlu0 %3720
  %v3730 = vsel %vm3124, %v3715, 0
  %v3731 = vsel %vm3124, %v3717, 0
  %v3732 = vsel %vm3124, %v3719, 0
  %v3733 = vsel %vm3124, %v3721, 0
  %v3734 = vsel %vm3137, %v3646, 0
  %v3735 = vsel %vm3137, %v3647, 0
  %v3736 = vsel %vm3137, %v3648, 0
  %v3737 = vsel %vm3137, %v3649, 0
  %3738 = vrot.lane.b32.xlu0 %v3646, 127
  %v3739 = vpop.permute.xlu0 %3738
  %3740 = vrot.lane.b32.xlu0 %v3647, 127
  %v3741 = vpop.permute.xlu0 %3740
  %3742 = vrot.lane.b32.xlu0 %v3648, 127
  %v3743 = vpop.permute.xlu0 %3742
  %3744 = vrot.lane.b32.xlu0 %v3649, 127
  %v3745 = vpop.permute.xlu0 %3744
  %v3754 = vsel %vm3166, %v3739, 0
  %v3755 = vsel %vm3166, %v3741, 0
  %v3756 = vsel %vm3166, %v3743, 0
  %v3757 = vsel %vm3166, %v3745, 0
  %3758 = vrot.lane.b32.xlu0 %v3646, 121
  %v3759 = vpop.permute.xlu0 %3758
  %3760 = vrot.lane.b32.xlu0 %v3647, 121
  %v3761 = vpop.permute.xlu0 %3760
  %3762 = vrot.lane.b32.xlu0 %v3648, 121
  %v3763 = vpop.permute.xlu0 %3762
  %3764 = vrot.lane.b32.xlu0 %v3649, 121
  %v3765 = vpop.permute.xlu0 %3764
  %v3774 = vsel %vm3195, %v3759, 0
  %v3775 = vsel %vm3195, %v3761, 0
  %v3776 = vsel %vm3195, %v3763, 0
  %v3777 = vsel %vm3195, %v3765, 0
  %3778 = vrot.lane.b32.xlu0 %v3646, 120
  %v3779 = vpop.permute.xlu0 %3778
  %3780 = vrot.lane.b32.xlu0 %v3647, 120
  %v3781 = vpop.permute.xlu0 %3780
  %3782 = vrot.lane.b32.xlu0 %v3648, 120
  %v3783 = vpop.permute.xlu0 %3782
  %3784 = vrot.lane.b32.xlu0 %v3649, 120
  %v3785 = vpop.permute.xlu0 %3784
  %v3794 = vsel %vm3224, %v3779, 0
  %v3795 = vsel %vm3224, %v3781, 0
  %v3796 = vsel %vm3224, %v3783, 0
  %v3797 = vsel %vm3224, %v3785, 0
  %3798 = vrot.lane.b32.xlu0 %v3646, 119
  %v3799 = vpop.permute.xlu0 %3798
  %3800 = vrot.lane.b32.xlu0 %v3647, 119
  %v3801 = vpop.permute.xlu0 %3800
  %3802 = vrot.lane.b32.xlu0 %v3648, 119
  %v3803 = vpop.permute.xlu0 %3802
  %3804 = vrot.lane.b32.xlu0 %v3649, 119
  %v3805 = vpop.permute.xlu0 %3804
  %v3814 = vsel %vm3253, %v3799, 0
  %v3815 = vsel %vm3253, %v3801, 0
  %v3816 = vsel %vm3253, %v3803, 0
  %v3817 = vsel %vm3253, %v3805, 0
  %v3818 = vld [vmem:[%s6] sm:$0xff]
  %v3819 = vld [vmem:[%s6 + $0x8] sm:$0xff]
  %v3820 = vld [vmem:[%s6 + $0x10] sm:$0xf]
  %v3821 = vld [vmem:[%s6 + $0x14] sm:$0xff]
  %v3822 = vld [vmem:[%s6 + $0x1c] sm:$0xff]
  %v3823 = vld [vmem:[%s6 + $0x24] sm:$0xf]
  %v3824 = vld [vmem:[%s6 + $0x28] sm:$0xff]
  %v3825 = vld [vmem:[%s6 + $0x30] sm:$0xff]
  %v3826 = vld [vmem:[%s6 + $0x38] sm:$0xf]
  %v3827 = vld [vmem:[%s6 + $0x3c] sm:$0xff]
  %v3828 = vld [vmem:[%s6 + $0x44] sm:$0xff]
  %v3829 = vld [vmem:[%s6 + $0x4c] sm:$0xf]
  %v3830 = vld [vmem:[%s6 + $0x50] sm:$0xff]
  %v3831 = vld [vmem:[%s6 + $0x58] sm:$0xff]
  %v3832 = vld [vmem:[%s6 + $0x60] sm:$0xf]
  %v3833 = vld [vmem:[%s6 + $0x64] sm:$0xff]
  %v3834 = vld [vmem:[%s6 + $0x6c] sm:$0xff]
  %v3835 = vld [vmem:[%s6 + $0x74] sm:$0xf]
  %v3836 = vld [vmem:[%s6 + $0x78] sm:$0xff]
  %v3837 = vld [vmem:[%s6 + $0x80] sm:$0xff]
  %v3838 = vld [vmem:[%s6 + $0x88] sm:$0xf]
  %v3839 = vld [vmem:[%s6 + $0x8c] sm:$0xff]
  %v3840 = vld [vmem:[%s6 + $0x94] sm:$0xff]
  %v3841 = vld [vmem:[%s6 + $0x9c] sm:$0xf]
  %v3842 = vld [vmem:[%s7] sm:$0xff]
  %v3843 = vld [vmem:[%s7 + $0x8] sm:$0xff]
  %v3844 = vld [vmem:[%s7 + $0x10] sm:$0xff]
  %v3845 = vld [vmem:[%s7 + $0x18] sm:$0xff]
  %v3846 = vld [vmem:[%s7 + $0x20] sm:$0xff]
  %v3847 = vld [vmem:[%s7 + $0x28] sm:$0xff]
  %v3848 = vld [vmem:[%s7 + $0x30] sm:$0xff]
  %v3849 = vld [vmem:[%s7 + $0x38] sm:$0xff]
  %3851 = vset.pattern.permute.xlu0 0
  %3852 = vperm.xlu0 %3851, %v3842
  %v3853 = vpop.permute.xlu0 %3852
  %3856 = vset.pattern.permute.xlu0 0
  %3857 = vperm.xlu0 %3856, %v3843
  %v3858 = vpop.permute.xlu0 %3857
  %3861 = vset.pattern.permute.xlu0 0
  %3862 = vperm.xlu0 %3861, %v3844
  %v3863 = vpop.permute.xlu0 %3862
  %3866 = vset.pattern.permute.xlu0 0
  %3867 = vperm.xlu0 %3866, %v3845
  %v3868 = vpop.permute.xlu0 %3867
  %3871 = vset.pattern.permute.xlu0 0
  %3872 = vperm.xlu0 %3871, %v3846
  %v3873 = vpop.permute.xlu0 %3872
  %3876 = vset.pattern.permute.xlu0 0
  %3877 = vperm.xlu0 %3876, %v3847
  %v3878 = vpop.permute.xlu0 %3877
  %3881 = vset.pattern.permute.xlu0 0
  %3882 = vperm.xlu0 %3881, %v3848
  %v3883 = vpop.permute.xlu0 %3882
  %3886 = vset.pattern.permute.xlu0 0
  %3887 = vperm.xlu0 %3886, %v3849
  %v3888 = vpop.permute.xlu0 %3887
  %v3914 = vunpack.c.l.b16 %v3818
  %v3915 = vunpack.c.h.b16 %v3818
  %v3916 = vunpack.c.l.b16 %v3819
  %v3917 = vunpack.c.h.b16 %v3819
  %v3918 = vunpack.c.l.b16 %v3820
  %v3919 = vunpack.c.l.b16 %v3821
  %v3920 = vunpack.c.h.b16 %v3821
  %v3921 = vunpack.c.l.b16 %v3822
  %v3922 = vunpack.c.h.b16 %v3822
  %v3923 = vunpack.c.l.b16 %v3823
  %v3924 = vunpack.c.l.b16 %v3824
  %v3925 = vunpack.c.h.b16 %v3824
  %v3926 = vunpack.c.l.b16 %v3825
  %v3927 = vunpack.c.h.b16 %v3825
  %v3928 = vunpack.c.l.b16 %v3826
  %v3929 = vunpack.c.l.b16 %v3827
  %v3930 = vunpack.c.h.b16 %v3827
  %v3931 = vunpack.c.l.b16 %v3828
  %v3932 = vunpack.c.h.b16 %v3828
  %v3933 = vunpack.c.l.b16 %v3829
  %v3934 = vunpack.c.l.b16 %v3830
  %v3935 = vunpack.c.h.b16 %v3830
  %v3936 = vunpack.c.l.b16 %v3831
  %v3937 = vunpack.c.h.b16 %v3831
  %v3938 = vunpack.c.l.b16 %v3832
  %v3939 = vunpack.c.l.b16 %v3833
  %v3940 = vunpack.c.h.b16 %v3833
  %v3941 = vunpack.c.l.b16 %v3834
  %v3942 = vunpack.c.h.b16 %v3834
  %v3943 = vunpack.c.l.b16 %v3835
  %v3944 = vunpack.c.l.b16 %v3836
  %v3945 = vunpack.c.h.b16 %v3836
  %v3946 = vunpack.c.l.b16 %v3837
  %v3947 = vunpack.c.h.b16 %v3837
  %v3948 = vunpack.c.l.b16 %v3838
  %v3949 = vunpack.c.l.b16 %v3839
  %v3950 = vunpack.c.h.b16 %v3839
  %v3951 = vunpack.c.l.b16 %v3840
  %v3952 = vunpack.c.h.b16 %v3840
  %v3953 = vunpack.c.l.b16 %v3841
  %v3954 = vpack.c.b16 %v3919, %v3914
  %v3955 = vpack.c.b16 %v3920, %v3915
  %v3956 = vpack.c.b16 %v3921, %v3916
  %v3957 = vpack.c.b16 %v3922, %v3917
  %v3958 = vpack.c.b16 %v3923, %v3918
  %v3959 = vpack.c.b16 %v3929, %v3924
  %v3960 = vpack.c.b16 %v3930, %v3925
  %v3961 = vpack.c.b16 %v3931, %v3926
  %v3962 = vpack.c.b16 %v3932, %v3927
  %v3963 = vpack.c.b16 %v3933, %v3928
  %v3964 = vpack.c.b16 %v3939, %v3934
  %v3965 = vpack.c.b16 %v3940, %v3935
  %v3966 = vpack.c.b16 %v3941, %v3936
  %v3967 = vpack.c.b16 %v3942, %v3937
  %v3968 = vpack.c.b16 %v3943, %v3938
  %v3969 = vpack.c.b16 %v3949, %v3944
  %v3970 = vpack.c.b16 %v3950, %v3945
  %v3971 = vpack.c.b16 %v3951, %v3946
  %v3972 = vpack.c.b16 %v3952, %v3947
  %v3973 = vpack.c.b16 %v3953, %v3948
  %v3991 = vsel %vm3430, %v3958, 0
  %v3994 = vsel %vm3430, %v3963, 0
  %v3997 = vsel %vm3430, %v3968, 0
  %v4000 = vsel %vm3430, %v3973, 0
  %4002 = vmatprep.subr.bf16.mxu0 0
  %4003 = vmatpush1.bf16.msra.mxu0 %v3670
  %4004 = vmatprep.subr.bf16.mxu0 0
  %4005 = vmatpush1.bf16.msra.mxu0 %v3671
  %4006 = vmatprep.subr.bf16.mxu0 0
  %4007 = vmatpush1.bf16.msra.mxu0 %v3672
  %4008 = vmatprep.subr.bf16.mxu0 0
  %4009 = vmatpush1.bf16.msra.mxu0 %v3673
  %4010 = vmatprep.subr.bf16.mxu0 0
  %4011 = vmatpush1.bf16.msra.mxu0 %v3690
  %4012 = vmatprep.subr.bf16.mxu0 0
  %4013 = vmatpush1.bf16.msra.mxu0 %v3691
  %4014 = vmatprep.subr.bf16.mxu0 0
  %4015 = vmatpush1.bf16.msra.mxu0 %v3692
  %4016 = vmatprep.subr.bf16.mxu0 0
  %4017 = vmatpush1.bf16.msra.mxu0 %v3693
  %4018 = vmatprep.subr.bf16.mxu0 0
  %4019 = vmatpush1.bf16.msra.mxu0 %v3710
  %4020 = vmatprep.subr.bf16.mxu0 0
  %4021 = vmatpush1.bf16.msra.mxu0 %v3711
  %4022 = vmatprep.subr.bf16.mxu0 0
  %4023 = vmatpush1.bf16.msra.mxu0 %v3712
  %4024 = vmatprep.subr.bf16.mxu0 0
  %4025 = vmatpush1.bf16.msra.mxu0 %v3713
  %4026 = vmatprep.subr.bf16.mxu0 0
  %4027 = vmatpush1.bf16.msra.mxu0 %v3730
  %4028 = vmatprep.subr.bf16.mxu0 0
  %4029 = vmatpush1.bf16.msra.mxu0 %v3731
  %4030 = vmatprep.subr.bf16.mxu0 0
  %4031 = vmatpush1.bf16.msra.mxu0 %v3732
  %4032 = vmatprep.subr.bf16.mxu0 0
  %4033 = vmatpush1.bf16.msra.mxu0 %v3733
  %4034 = vmatprep.mubr.bf16.mxu0 %v3955
  %4035 = vmatmul.mubr.bf16.gmra.mrb[0].mxu0 %v3954
  %v4036 = vpop.f32.mrb[0].mxu0
  %v4037 = vadd.f32 %v3853, %v4036
  %v4038 = vpop.f32.mrb[0].mxu0
  %v4039 = vpop.f32.mrb[0].mxu0
  %v4040 = vadd.f32 %v3858, %v4039
  %v4041 = vpop.f32.mrb[0].mxu0
  %4042 = vmatprep.mubr.bf16.mxu0 %v3960
  %4043 = vmatmul.mubr.bf16.gmra.mrb[0].mxu0 %v3959
  %v4044 = vpop.f32.mrb[0].mxu0
  %v4045 = vadd.f32 %v3863, %v4044
  %v4046 = vpop.f32.mrb[0].mxu0
  %v4047 = vpop.f32.mrb[0].mxu0
  %v4048 = vadd.f32 %v3868, %v4047
  %v4049 = vpop.f32.mrb[0].mxu0
  %4050 = vmatprep.mubr.bf16.mxu0 %v3965
  %4051 = vmatmul.mubr.bf16.gmra.mrb[0].mxu0 %v3964
  %v4052 = vpop.f32.mrb[0].mxu0
  %v4053 = vadd.f32 %v3873, %v4052
  %v4054 = vpop.f32.mrb[0].mxu0
  %v4055 = vpop.f32.mrb[0].mxu0
  %v4056 = vadd.f32 %v3878, %v4055
  %v4057 = vpop.f32.mrb[0].mxu0
  %4058 = vmatprep.mubr.bf16.mxu0 %v3970
  %4059 = vmatmul.mubr.bf16.gmra.mrb[0].mxu0 %v3969
  %v4060 = vpop.f32.mrb[0].mxu0
  %v4061 = vadd.f32 %v3883, %v4060
  %v4062 = vpop.f32.mrb[0].mxu0
  %v4063 = vpop.f32.mrb[0].mxu0
  %v4064 = vadd.f32 %v3888, %v4063
  %v4065 = vpop.f32.mrb[0].mxu0
  %4066 = vdwg.mxu0
  %4067 = vmatprep.subr.bf16.mxu0 0
  %4068 = vmatpush1.bf16.msra.mxu0 %v3734
  %4069 = vmatprep.subr.bf16.mxu0 0
  %4070 = vmatpush1.bf16.msra.mxu0 %v3735
  %4071 = vmatprep.subr.bf16.mxu0 0
  %4072 = vmatpush1.bf16.msra.mxu0 %v3736
  %4073 = vmatprep.subr.bf16.mxu0 0
  %4074 = vmatpush1.bf16.msra.mxu0 %v3737
  %4075 = vmatprep.subr.bf16.mxu0 0
  %4076 = vmatpush1.bf16.msra.mxu0 %v3754
  %4077 = vmatprep.subr.bf16.mxu0 0
  %4078 = vmatpush1.bf16.msra.mxu0 %v3755
  %4079 = vmatprep.subr.bf16.mxu0 0
  %4080 = vmatpush1.bf16.msra.mxu0 %v3756
  %4081 = vmatprep.subr.bf16.mxu0 0
  %4082 = vmatpush1.bf16.msra.mxu0 %v3757
  %4083 = vmatprep.subr.bf16.mxu0 0
  %4084 = vmatpush1.bf16.msra.mxu0 %v3774
  %4085 = vmatprep.subr.bf16.mxu0 0
  %4086 = vmatpush1.bf16.msra.mxu0 %v3775
  %4087 = vmatprep.subr.bf16.mxu0 0
  %4088 = vmatpush1.bf16.msra.mxu0 %v3776
  %4089 = vmatprep.subr.bf16.mxu0 0
  %4090 = vmatpush1.bf16.msra.mxu0 %v3777
  %4091 = vmatprep.subr.bf16.mxu0 0
  %4092 = vmatpush1.bf16.msra.mxu0 %v3794
  %4093 = vmatprep.subr.bf16.mxu0 0
  %4094 = vmatpush1.bf16.msra.mxu0 %v3795
  %4095 = vmatprep.subr.bf16.mxu0 0
  %4096 = vmatpush1.bf16.msra.mxu0 %v3796
  %4097 = vmatprep.subr.bf16.mxu0 0
  %4098 = vmatpush1.bf16.msra.mxu0 %v3797
  %4099 = vmatprep.mubr.bf16.mxu0 %v3957
  %4100 = vmatmul.mubr.bf16.gmra.mrb[0].mxu0 %v3956
  %v4101 = vpop.f32.mrb[0].mxu0
  %v4102 = vadd.f32 %v4037, %v4101
  %v4103 = vpop.f32.mrb[0].mxu0
  %v4104 = vpop.f32.mrb[0].mxu0
  %v4105 = vadd.f32 %v4040, %v4104
  %v4106 = vpop.f32.mrb[0].mxu0
  %4107 = vmatprep.mubr.bf16.mxu0 %v3962
  %4108 = vmatmul.mubr.bf16.gmra.mrb[0].mxu0 %v3961
  %v4109 = vpop.f32.mrb[0].mxu0
  %v4110 = vadd.f32 %v4045, %v4109
  %v4111 = vpop.f32.mrb[0].mxu0
  %v4112 = vpop.f32.mrb[0].mxu0
  %v4113 = vadd.f32 %v4048, %v4112
  %v4114 = vpop.f32.mrb[0].mxu0
  %4115 = vmatprep.mubr.bf16.mxu0 %v3967
  %4116 = vmatmul.mubr.bf16.gmra.mrb[0].mxu0 %v3966
  %v4117 = vpop.f32.mrb[0].mxu0
  %v4118 = vadd.f32 %v4053, %v4117
  %v4119 = vpop.f32.mrb[0].mxu0
  %v4120 = vpop.f32.mrb[0].mxu0
  %v4121 = vadd.f32 %v4056, %v4120
  %v4122 = vpop.f32.mrb[0].mxu0
  %4123 = vmatprep.mubr.bf16.mxu0 %v3972
  %4124 = vmatmul.mubr.bf16.gmra.mrb[0].mxu0 %v3971
  %v4125 = vpop.f32.mrb[0].mxu0
  %v4126 = vadd.f32 %v4061, %v4125
  %v4127 = vpop.f32.mrb[0].mxu0
  %v4128 = vpop.f32.mrb[0].mxu0
  %v4129 = vadd.f32 %v4064, %v4128
  %v4130 = vpop.f32.mrb[0].mxu0
  %4131 = vdwg.mxu0
  %4132 = vmatprep.subr.bf16.mxu0 0
  %4133 = vmatpush1.bf16.msra.mxu0 %v3814
  %4134 = vmatprep.subr.bf16.mxu0 0
  %4135 = vmatpush1.bf16.msra.mxu0 %v3815
  %4136 = vmatprep.subr.bf16.mxu0 0
  %4137 = vmatpush1.bf16.msra.mxu0 %v3816
  %4138 = vmatprep.subr.bf16.mxu0 0
  %4139 = vmatpush1.bf16.msra.mxu0 %v3817
  %4140 = vmatprep.subr.bf16.mxu0 0
  %4141 = vmatpush1.bf16.msra.mxu0 0
  %4142 = vmatprep.subr.bf16.mxu0 0
  %4143 = vmatpush1.bf16.msra.mxu0 0
  %4144 = vmatprep.subr.bf16.mxu0 0
  %4145 = vmatpush1.bf16.msra.mxu0 0
  %4146 = vmatprep.subr.bf16.mxu0 0
  %4147 = vmatpush1.bf16.msra.mxu0 0
  %4148 = vmatprep.subr.bf16.mxu0 0
  %4149 = vmatpush1.bf16.msra.mxu0 0
  %4150 = vmatprep.subr.bf16.mxu0 0
  %4151 = vmatpush1.bf16.msra.mxu0 0
  %4152 = vmatprep.subr.bf16.mxu0 0
  %4153 = vmatpush1.bf16.msra.mxu0 0
  %4154 = vmatprep.subr.bf16.mxu0 0
  %4155 = vmatpush1.bf16.msra.mxu0 0
  %4156 = vmatprep.subr.bf16.mxu0 0
  %4157 = vmatpush1.bf16.msra.mxu0 0
  %4158 = vmatprep.subr.bf16.mxu0 0
  %4159 = vmatpush1.bf16.msra.mxu0 0
  %4160 = vmatprep.subr.bf16.mxu0 0
  %4161 = vmatpush1.bf16.msra.mxu0 0
  %4162 = vmatprep.subr.bf16.mxu0 0
  %4163 = vmatpush1.bf16.msra.mxu0 0
  %4164 = vmatprep.mubr.bf16.mxu0 0
  %4165 = vmatmul.mubr.bf16.gmra.mrb[0].mxu0 %v3991
  %v4166 = vpop.f32.mrb[0].mxu0
  %v4167 = vadd.f32 %v4102, %v4166
  %v4168 = vpop.f32.mrb[0].mxu0
  %v4169 = vpop.f32.mrb[0].mxu0
  %v4170 = vadd.f32 %v4105, %v4169
  %v4171 = vpop.f32.mrb[0].mxu0
  %4172 = vmatprep.mubr.bf16.mxu0 0
  %4173 = vmatmul.mubr.bf16.gmra.mrb[0].mxu0 %v3994
  %v4174 = vpop.f32.mrb[0].mxu0
  %v4175 = vadd.f32 %v4110, %v4174
  %v4176 = vpop.f32.mrb[0].mxu0
  %v4177 = vpop.f32.mrb[0].mxu0
  %v4178 = vadd.f32 %v4113, %v4177
  %v4179 = vpop.f32.mrb[0].mxu0
  %4180 = vmatprep.mubr.bf16.mxu0 0
  %4181 = vmatmul.mubr.bf16.gmra.mrb[0].mxu0 %v3997
  %v4182 = vpop.f32.mrb[0].mxu0
  %v4183 = vadd.f32 %v4118, %v4182
  %v4184 = vpop.f32.mrb[0].mxu0
  %v4185 = vpop.f32.mrb[0].mxu0
  %v4186 = vadd.f32 %v4121, %v4185
  %v4187 = vpop.f32.mrb[0].mxu0
  %4188 = vmatprep.mubr.bf16.mxu0 0
  %4189 = vmatmul.mubr.bf16.gmra.mrb[0].mxu0 %v4000
  %v4190 = vpop.f32.mrb[0].mxu0
  %v4191 = vadd.f32 %v4126, %v4190
  %v4192 = vpop.f32.mrb[0].mxu0
  %v4193 = vpop.f32.mrb[0].mxu0
  %v4194 = vadd.f32 %v4129, %v4193
  %v4195 = vpop.f32.mrb[0].mxu0
  %4196 = vdwg.mxu0
  %v4197 = vadd.f32 %v4167, %v2935
  %v4198 = vadd.f32 %v4170, %v2938
  %v4199 = vadd.f32 %v4175, %v2943
  %v4200 = vadd.f32 %v4178, %v2946
  %v4201 = vadd.f32 %v4183, %v2951
  %v4202 = vadd.f32 %v4186, %v2954
  %v4203 = vadd.f32 %v4191, %v2959
  %v4204 = vadd.f32 %v4194, %v2962
  %v4205 = vmax.f32 %v4197, 0.0
  %v4206 = vmax.f32 %v4198, 0.0
  %v4207 = vmax.f32 %v4199, 0.0
  %v4208 = vmax.f32 %v4200, 0.0
  %v4209 = vmax.f32 %v4201, 0.0
  %v4210 = vmax.f32 %v4202, 0.0
  %v4211 = vmax.f32 %v4203, 0.0
  %v4212 = vmax.f32 %v4204, 0.0
  %v4213 = vpack.c.bf16 %v4206, %v4205
  %v4214 = vpack.c.bf16 %v4208, %v4207
  %v4215 = vpack.c.bf16 %v4210, %v4209
  %v4216 = vpack.c.bf16 %v4212, %v4211
  %4221 = vrot.lane.b32.xlu0 %v4213, 9
  %v4222 = vpop.permute.xlu0 %4221
  %4223 = vrot.lane.b32.xlu0 %v4214, 9
  %v4224 = vpop.permute.xlu0 %4223
  %4225 = vrot.lane.b32.xlu0 %v4215, 9
  %v4226 = vpop.permute.xlu0 %4225
  %4227 = vrot.lane.b32.xlu0 %v4216, 9
  %v4228 = vpop.permute.xlu0 %4227
  %v4237 = vsel %vm3037, %v4222, 0
  %v4238 = vsel %vm3037, %v4224, 0
  %v4239 = vsel %vm3037, %v4226, 0
  %v4240 = vsel %vm3037, %v4228, 0
  %4241 = vrot.lane.b32.xlu0 %v4213, 8
  %v4242 = vpop.permute.xlu0 %4241
  %4243 = vrot.lane.b32.xlu0 %v4214, 8
  %v4244 = vpop.permute.xlu0 %4243
  %4245 = vrot.lane.b32.xlu0 %v4215, 8
  %v4246 = vpop.permute.xlu0 %4245
  %4247 = vrot.lane.b32.xlu0 %v4216, 8
  %v4248 = vpop.permute.xlu0 %4247
  %v4257 = vsel %vm3066, %v4242, 0
  %v4258 = vsel %vm3066, %v4244, 0
  %v4259 = vsel %vm3066, %v4246, 0
  %v4260 = vsel %vm3066, %v4248, 0
  %4261 = vrot.lane.b32.xlu0 %v4213, 7
  %v4262 = vpop.permute.xlu0 %4261
  %4263 = vrot.lane.b32.xlu0 %v4214, 7
  %v4264 = vpop.permute.xlu0 %4263
  %4265 = vrot.lane.b32.xlu0 %v4215, 7
  %v4266 = vpop.permute.xlu0 %4265
  %4267 = vrot.lane.b32.xlu0 %v4216, 7
  %v4268 = vpop.permute.xlu0 %4267
  %v4277 = vsel %vm3095, %v4262, 0
  %v4278 = vsel %vm3095, %v4264, 0
  %v4279 = vsel %vm3095, %v4266, 0
  %v4280 = vsel %vm3095, %v4268, 0
  %4281 = vrot.lane.b32.xlu0 %v4213, 1
  %v4282 = vpop.permute.xlu0 %4281
  %4283 = vrot.lane.b32.xlu0 %v4214, 1
  %v4284 = vpop.permute.xlu0 %4283
  %4285 = vrot.lane.b32.xlu0 %v4215, 1
  %v4286 = vpop.permute.xlu0 %4285
  %4287 = vrot.lane.b32.xlu0 %v4216, 1
  %v4288 = vpop.permute.xlu0 %4287
  %v4297 = vsel %vm3124, %v4282, 0
  %v4298 = vsel %vm3124, %v4284, 0
  %v4299 = vsel %vm3124, %v4286, 0
  %v4300 = vsel %vm3124, %v4288, 0
  %v4301 = vsel %vm3137, %v4213, 0
  %v4302 = vsel %vm3137, %v4214, 0
  %v4303 = vsel %vm3137, %v4215, 0
  %v4304 = vsel %vm3137, %v4216, 0
  %4305 = vrot.lane.b32.xlu0 %v4213, 127
  %v4306 = vpop.permute.xlu0 %4305
  %4307 = vrot.lane.b32.xlu0 %v4214, 127
  %v4308 = vpop.permute.xlu0 %4307
  %4309 = vrot.lane.b32.xlu0 %v4215, 127
  %v4310 = vpop.permute.xlu0 %4309
  %4311 = vrot.lane.b32.xlu0 %v4216, 127
  %v4312 = vpop.permute.xlu0 %4311
  %v4321 = vsel %vm3166, %v4306, 0
  %v4322 = vsel %vm3166, %v4308, 0
  %v4323 = vsel %vm3166, %v4310, 0
  %v4324 = vsel %vm3166, %v4312, 0
  %4325 = vrot.lane.b32.xlu0 %v4213, 121
  %v4326 = vpop.permute.xlu0 %4325
  %4327 = vrot.lane.b32.xlu0 %v4214, 121
  %v4328 = vpop.permute.xlu0 %4327
  %4329 = vrot.lane.b32.xlu0 %v4215, 121
  %v4330 = vpop.permute.xlu0 %4329
  %4331 = vrot.lane.b32.xlu0 %v4216, 121
  %v4332 = vpop.permute.xlu0 %4331
  %v4341 = vsel %vm3195, %v4326, 0
  %v4342 = vsel %vm3195, %v4328, 0
  %v4343 = vsel %vm3195, %v4330, 0
  %v4344 = vsel %vm3195, %v4332, 0
  %4345 = vrot.lane.b32.xlu0 %v4213, 120
  %v4346 = vpop.permute.xlu0 %4345
  %4347 = vrot.lane.b32.xlu0 %v4214, 120
  %v4348 = vpop.permute.xlu0 %4347
  %4349 = vrot.lane.b32.xlu0 %v4215, 120
  %v4350 = vpop.permute.xlu0 %4349
  %4351 = vrot.lane.b32.xlu0 %v4216, 120
  %v4352 = vpop.permute.xlu0 %4351
  %v4361 = vsel %vm3224, %v4346, 0
  %v4362 = vsel %vm3224, %v4348, 0
  %v4363 = vsel %vm3224, %v4350, 0
  %v4364 = vsel %vm3224, %v4352, 0
  %4365 = vrot.lane.b32.xlu0 %v4213, 119
  %v4366 = vpop.permute.xlu0 %4365
  %4367 = vrot.lane.b32.xlu0 %v4214, 119
  %v4368 = vpop.permute.xlu0 %4367
  %4369 = vrot.lane.b32.xlu0 %v4215, 119
  %v4370 = vpop.permute.xlu0 %4369
  %4371 = vrot.lane.b32.xlu0 %v4216, 119
  %v4372 = vpop.permute.xlu0 %4371
  %v4381 = vsel %vm3253, %v4366, 0
  %v4382 = vsel %vm3253, %v4368, 0
  %v4383 = vsel %vm3253, %v4370, 0
  %v4384 = vsel %vm3253, %v4372, 0
  %v4385 = vld [vmem:[%s8] sm:$0xff]
  %v4386 = vld [vmem:[%s8 + $0x8] sm:$0xff]
  %v4387 = vld [vmem:[%s8 + $0x10] sm:$0xf]
  %v4388 = vld [vmem:[%s8 + $0x14] sm:$0xff]
  %v4389 = vld [vmem:[%s8 + $0x1c] sm:$0xff]
  %v4390 = vld [vmem:[%s8 + $0x24] sm:$0xf]
  %v4391 = vld [vmem:[%s8 + $0x28] sm:$0xff]
  %v4392 = vld [vmem:[%s8 + $0x30] sm:$0xff]
  %v4393 = vld [vmem:[%s8 + $0x38] sm:$0xf]
  %v4394 = vld [vmem:[%s8 + $0x3c] sm:$0xff]
  %v4395 = vld [vmem:[%s8 + $0x44] sm:$0xff]
  %v4396 = vld [vmem:[%s8 + $0x4c] sm:$0xf]
  %v4397 = vld [vmem:[%s8 + $0x50] sm:$0xff]
  %v4398 = vld [vmem:[%s8 + $0x58] sm:$0xff]
  %v4399 = vld [vmem:[%s8 + $0x60] sm:$0xf]
  %v4400 = vld [vmem:[%s8 + $0x64] sm:$0xff]
  %v4401 = vld [vmem:[%s8 + $0x6c] sm:$0xff]
  %v4402 = vld [vmem:[%s8 + $0x74] sm:$0xf]
  %v4403 = vld [vmem:[%s8 + $0x78] sm:$0xff]
  %v4404 = vld [vmem:[%s8 + $0x80] sm:$0xff]
  %v4405 = vld [vmem:[%s8 + $0x88] sm:$0xf]
  %v4406 = vld [vmem:[%s8 + $0x8c] sm:$0xff]
  %v4407 = vld [vmem:[%s8 + $0x94] sm:$0xff]
  %v4408 = vld [vmem:[%s8 + $0x9c] sm:$0xf]
  %v4409 = vld [vmem:[%s9] sm:$0xff]
  %v4410 = vld [vmem:[%s9 + $0x8] sm:$0xff]
  %v4411 = vld [vmem:[%s9 + $0x10] sm:$0xff]
  %v4412 = vld [vmem:[%s9 + $0x18] sm:$0xff]
  %v4413 = vld [vmem:[%s9 + $0x20] sm:$0xff]
  %v4414 = vld [vmem:[%s9 + $0x28] sm:$0xff]
  %v4415 = vld [vmem:[%s9 + $0x30] sm:$0xff]
  %v4416 = vld [vmem:[%s9 + $0x38] sm:$0xff]
  %4418 = vset.pattern.permute.xlu0 0
  %4419 = vperm.xlu0 %4418, %v4409
  %v4420 = vpop.permute.xlu0 %4419
  %4423 = vset.pattern.permute.xlu0 0
  %4424 = vperm.xlu0 %4423, %v4410
  %v4425 = vpop.permute.xlu0 %4424
  %4428 = vset.pattern.permute.xlu0 0
  %4429 = vperm.xlu0 %4428, %v4411
  %v4430 = vpop.permute.xlu0 %4429
  %4433 = vset.pattern.permute.xlu0 0
  %4434 = vperm.xlu0 %4433, %v4412
  %v4435 = vpop.permute.xlu0 %4434
  %4438 = vset.pattern.permute.xlu0 0
  %4439 = vperm.xlu0 %4438, %v4413
  %v4440 = vpop.permute.xlu0 %4439
  %4443 = vset.pattern.permute.xlu0 0
  %4444 = vperm.xlu0 %4443, %v4414
  %v4445 = vpop.permute.xlu0 %4444
  %4448 = vset.pattern.permute.xlu0 0
  %4449 = vperm.xlu0 %4448, %v4415
  %v4450 = vpop.permute.xlu0 %4449
  %4453 = vset.pattern.permute.xlu0 0
  %4454 = vperm.xlu0 %4453, %v4416
  %v4455 = vpop.permute.xlu0 %4454
  %v4481 = vunpack.c.l.b16 %v4385
  %v4482 = vunpack.c.h.b16 %v4385
  %v4483 = vunpack.c.l.b16 %v4386
  %v4484 = vunpack.c.h.b16 %v4386
  %v4485 = vunpack.c.l.b16 %v4387
  %v4486 = vunpack.c.l.b16 %v4388
  %v4487 = vunpack.c.h.b16 %v4388
  %v4488 = vunpack.c.l.b16 %v4389
  %v4489 = vunpack.c.h.b16 %v4389
  %v4490 = vunpack.c.l.b16 %v4390
  %v4491 = vunpack.c.l.b16 %v4391
  %v4492 = vunpack.c.h.b16 %v4391
  %v4493 = vunpack.c.l.b16 %v4392
  %v4494 = vunpack.c.h.b16 %v4392
  %v4495 = vunpack.c.l.b16 %v4393
  %v4496 = vunpack.c.l.b16 %v4394
  %v4497 = vunpack.c.h.b16 %v4394
  %v4498 = vunpack.c.l.b16 %v4395
  %v4499 = vunpack.c.h.b16 %v4395
  %v4500 = vunpack.c.l.b16 %v4396
  %v4501 = vunpack.c.l.b16 %v4397
  %v4502 = vunpack.c.h.b16 %v4397
  %v4503 = vunpack.c.l.b16 %v4398
  %v4504 = vunpack.c.h.b16 %v4398
  %v4505 = vunpack.c.l.b16 %v4399
  %v4506 = vunpack.c.l.b16 %v4400
  %v4507 = vunpack.c.h.b16 %v4400
  %v4508 = vunpack.c.l.b16 %v4401
  %v4509 = vunpack.c.h.b16 %v4401
  %v4510 = vunpack.c.l.b16 %v4402
  %v4511 = vunpack.c.l.b16 %v4403
  %v4512 = vunpack.c.h.b16 %v4403
  %v4513 = vunpack.c.l.b16 %v4404
  %v4514 = vunpack.c.h.b16 %v4404
  %v4515 = vunpack.c.l.b16 %v4405
  %v4516 = vunpack.c.l.b16 %v4406
  %v4517 = vunpack.c.h.b16 %v4406
  %v4518 = vunpack.c.l.b16 %v4407
  %v4519 = vunpack.c.h.b16 %v4407
  %v4520 = vunpack.c.l.b16 %v4408
  %v4521 = vpack.c.b16 %v4486, %v4481
  %v4522 = vpack.c.b16 %v4487, %v4482
  %v4523 = vpack.c.b16 %v4488, %v4483
  %v4524 = vpack.c.b16 %v4489, %v4484
  %v4525 = vpack.c.b16 %v4490, %v4485
  %v4526 = vpack.c.b16 %v4496, %v4491
  %v4527 = vpack.c.b16 %v4497, %v4492
  %v4528 = vpack.c.b16 %v4498, %v4493
  %v4529 = vpack.c.b16 %v4499, %v4494
  %v4530 = vpack.c.b16 %v4500, %v4495
  %v4531 = vpack.c.b16 %v4506, %v4501
  %v4532 = vpack.c.b16 %v4507, %v4502
  %v4533 = vpack.c.b16 %v4508, %v4503
  %v4534 = vpack.c.b16 %v4509, %v4504
  %v4535 = vpack.c.b16 %v4510, %v4505
  %v4536 = vpack.c.b16 %v4516, %v4511
  %v4537 = vpack.c.b16 %v4517, %v4512
  %v4538 = vpack.c.b16 %v4518, %v4513
  %v4539 = vpack.c.b16 %v4519, %v4514
  %v4540 = vpack.c.b16 %v4520, %v4515
  %v4558 = vsel %vm3430, %v4525, 0
  %v4561 = vsel %vm3430, %v4530, 0
  %v4564 = vsel %vm3430, %v4535, 0
  %v4567 = vsel %vm3430, %v4540, 0
  %4569 = vmatprep.subr.bf16.mxu0 0
  %4570 = vmatpush1.bf16.msra.mxu0 %v4237
  %4571 = vmatprep.subr.bf16.mxu0 0
  %4572 = vmatpush1.bf16.msra.mxu0 %v4238
  %4573 = vmatprep.subr.bf16.mxu0 0
  %4574 = vmatpush1.bf16.msra.mxu0 %v4239
  %4575 = vmatprep.subr.bf16.mxu0 0
  %4576 = vmatpush1.bf16.msra.mxu0 %v4240
  %4577 = vmatprep.subr.bf16.mxu0 0
  %4578 = vmatpush1.bf16.msra.mxu0 %v4257
  %4579 = vmatprep.subr.bf16.mxu0 0
  %4580 = vmatpush1.bf16.msra.mxu0 %v4258
  %4581 = vmatprep.subr.bf16.mxu0 0
  %4582 = vmatpush1.bf16.msra.mxu0 %v4259
  %4583 = vmatprep.subr.bf16.mxu0 0
  %4584 = vmatpush1.bf16.msra.mxu0 %v4260
  %4585 = vmatprep.subr.bf16.mxu0 0
  %4586 = vmatpush1.bf16.msra.mxu0 %v4277
  %4587 = vmatprep.subr.bf16.mxu0 0
  %4588 = vmatpush1.bf16.msra.mxu0 %v4278
  %4589 = vmatprep.subr.bf16.mxu0 0
  %4590 = vmatpush1.bf16.msra.mxu0 %v4279
  %4591 = vmatprep.subr.bf16.mxu0 0
  %4592 = vmatpush1.bf16.msra.mxu0 %v4280
  %4593 = vmatprep.subr.bf16.mxu0 0
  %4594 = vmatpush1.bf16.msra.mxu0 %v4297
  %4595 = vmatprep.subr.bf16.mxu0 0
  %4596 = vmatpush1.bf16.msra.mxu0 %v4298
  %4597 = vmatprep.subr.bf16.mxu0 0
  %4598 = vmatpush1.bf16.msra.mxu0 %v4299
  %4599 = vmatprep.subr.bf16.mxu0 0
  %4600 = vmatpush1.bf16.msra.mxu0 %v4300
  %4601 = vmatprep.mubr.bf16.mxu0 %v4522
  %4602 = vmatmul.mubr.bf16.gmra.mrb[0].mxu0 %v4521
  %v4603 = vpop.f32.mrb[0].mxu0
  %v4604 = vadd.f32 %v4420, %v4603
  %v4605 = vpop.f32.mrb[0].mxu0
  %v4606 = vpop.f32.mrb[0].mxu0
  %v4607 = vadd.f32 %v4425, %v4606
  %v4608 = vpop.f32.mrb[0].mxu0
  %4609 = vmatprep.mubr.bf16.mxu0 %v4527
  %4610 = vmatmul.mubr.bf16.gmra.mrb[0].mxu0 %v4526
  %v4611 = vpop.f32.mrb[0].mxu0
  %v4612 = vadd.f32 %v4430, %v4611
  %v4613 = vpop.f32.mrb[0].mxu0
  %v4614 = vpop.f32.mrb[0].mxu0
  %v4615 = vadd.f32 %v4435, %v4614
  %v4616 = vpop.f32.mrb[0].mxu0
  %4617 = vmatprep.mubr.bf16.mxu0 %v4532
  %4618 = vmatmul.mubr.bf16.gmra.mrb[0].mxu0 %v4531
  %v4619 = vpop.f32.mrb[0].mxu0
  %v4620 = vadd.f32 %v4440, %v4619
  %v4621 = vpop.f32.mrb[0].mxu0
  %v4622 = vpop.f32.mrb[0].mxu0
  %v4623 = vadd.f32 %v4445, %v4622
  %v4624 = vpop.f32.mrb[0].mxu0
  %4625 = vmatprep.mubr.bf16.mxu0 %v4537
  %4626 = vmatmul.mubr.bf16.gmra.mrb[0].mxu0 %v4536
  %v4627 = vpop.f32.mrb[0].mxu0
  %v4628 = vadd.f32 %v4450, %v4627
  %v4629 = vpop.f32.mrb[0].mxu0
  %v4630 = vpop.f32.mrb[0].mxu0
  %v4631 = vadd.f32 %v4455, %v4630
  %v4632 = vpop.f32.mrb[0].mxu0
  %4633 = vdwg.mxu0
  %4634 = vmatprep.subr.bf16.mxu0 0
  %4635 = vmatpush1.bf16.msra.mxu0 %v4301
  %4636 = vmatprep.subr.bf16.mxu0 0
  %4637 = vmatpush1.bf16.msra.mxu0 %v4302
  %4638 = vmatprep.subr.bf16.mxu0 0
  %4639 = vmatpush1.bf16.msra.mxu0 %v4303
  %4640 = vmatprep.subr.bf16.mxu0 0
  %4641 = vmatpush1.bf16.msra.mxu0 %v4304
  %4642 = vmatprep.subr.bf16.mxu0 0
  %4643 = vmatpush1.bf16.msra.mxu0 %v4321
  %4644 = vmatprep.subr.bf16.mxu0 0
  %4645 = vmatpush1.bf16.msra.mxu0 %v4322
  %4646 = vmatprep.subr.bf16.mxu0 0
  %4647 = vmatpush1.bf16.msra.mxu0 %v4323
  %4648 = vmatprep.subr.bf16.mxu0 0
  %4649 = vmatpush1.bf16.msra.mxu0 %v4324
  %4650 = vmatprep.subr.bf16.mxu0 0
  %4651 = vmatpush1.bf16.msra.mxu0 %v4341
  %4652 = vmatprep.subr.bf16.mxu0 0
  %4653 = vmatpush1.bf16.msra.mxu0 %v4342
  %4654 = vmatprep.subr.bf16.mxu0 0
  %4655 = vmatpush1.bf16.msra.mxu0 %v4343
  %4656 = vmatprep.subr.bf16.mxu0 0
  %4657 = vmatpush1.bf16.msra.mxu0 %v4344
  %4658 = vmatprep.subr.bf16.mxu0 0
  %4659 = vmatpush1.bf16.msra.mxu0 %v4361
  %4660 = vmatprep.subr.bf16.mxu0 0
  %4661 = vmatpush1.bf16.msra.mxu0 %v4362
  %4662 = vmatprep.subr.bf16.mxu0 0
  %4663 = vmatpush1.bf16.msra.mxu0 %v4363
  %4664 = vmatprep.subr.bf16.mxu0 0
  %4665 = vmatpush1.bf16.msra.mxu0 %v4364
  %4666 = vmatprep.mubr.bf16.mxu0 %v4524
  %4667 = vmatmul.mubr.bf16.gmra.mrb[0].mxu0 %v4523
  %v4668 = vpop.f32.mrb[0].mxu0
  %v4669 = vadd.f32 %v4604, %v4668
  %v4670 = vpop.f32.mrb[0].mxu0
  %v4671 = vpop.f32.mrb[0].mxu0
  %v4672 = vadd.f32 %v4607, %v4671
  %v4673 = vpop.f32.mrb[0].mxu0
  %4674 = vmatprep.mubr.bf16.mxu0 %v4529
  %4675 = vmatmul.mubr.bf16.gmra.mrb[0].mxu0 %v4528
  %v4676 = vpop.f32.mrb[0].mxu0
  %v4677 = vadd.f32 %v4612, %v4676
  %v4678 = vpop.f32.mrb[0].mxu0
  %v4679 = vpop.f32.mrb[0].mxu0
  %v4680 = vadd.f32 %v4615, %v4679
  %v4681 = vpop.f32.mrb[0].mxu0
  %4682 = vmatprep.mubr.bf16.mxu0 %v4534
  %4683 = vmatmul.mubr.bf16.gmra.mrb[0].mxu0 %v4533
  %v4684 = vpop.f32.mrb[0].mxu0
  %v4685 = vadd.f32 %v4620, %v4684
  %v4686 = vpop.f32.mrb[0].mxu0
  %v4687 = vpop.f32.mrb[0].mxu0
  %v4688 = vadd.f32 %v4623, %v4687
  %v4689 = vpop.f32.mrb[0].mxu0
  %4690 = vmatprep.mubr.bf16.mxu0 %v4539
  %4691 = vmatmul.mubr.bf16.gmra.mrb[0].mxu0 %v4538
  %v4692 = vpop.f32.mrb[0].mxu0
  %v4693 = vadd.f32 %v4628, %v4692
  %v4694 = vpop.f32.mrb[0].mxu0
  %v4695 = vpop.f32.mrb[0].mxu0
  %v4696 = vadd.f32 %v4631, %v4695
  %v4697 = vpop.f32.mrb[0].mxu0
  %4698 = vdwg.mxu0
  %4699 = vmatprep.subr.bf16.mxu0 0
  %4700 = vmatpush1.bf16.msra.mxu0 %v4381
  %4701 = vmatprep.subr.bf16.mxu0 0
  %4702 = vmatpush1.bf16.msra.mxu0 %v4382
  %4703 = vmatprep.subr.bf16.mxu0 0
  %4704 = vmatpush1.bf16.msra.mxu0 %v4383
  %4705 = vmatprep.subr.bf16.mxu0 0
  %4706 = vmatpush1.bf16.msra.mxu0 %v4384
  %4707 = vmatprep.subr.bf16.mxu0 0
  %4708 = vmatpush1.bf16.msra.mxu0 0
  %4709 = vmatprep.subr.bf16.mxu0 0
  %4710 = vmatpush1.bf16.msra.mxu0 0
  %4711 = vmatprep.subr.bf16.mxu0 0
  %4712 = vmatpush1.bf16.msra.mxu0 0
  %4713 = vmatprep.subr.bf16.mxu0 0
  %4714 = vmatpush1.bf16.msra.mxu0 0
  %4715 = vmatprep.subr.bf16.mxu0 0
  %4716 = vmatpush1.bf16.msra.mxu0 0
  %4717 = vmatprep.subr.bf16.mxu0 0
  %4718 = vmatpush1.bf16.msra.mxu0 0
  %4719 = vmatprep.subr.bf16.mxu0 0
  %4720 = vmatpush1.bf16.msra.mxu0 0
  %4721 = vmatprep.subr.bf16.mxu0 0
  %4722 = vmatpush1.bf16.msra.mxu0 0
  %4723 = vmatprep.subr.bf16.mxu0 0
  %4724 = vmatpush1.bf16.msra.mxu0 0
  %4725 = vmatprep.subr.bf16.mxu0 0
  %4726 = vmatpush1.bf16.msra.mxu0 0
  %4727 = vmatprep.subr.bf16.mxu0 0
  %4728 = vmatpush1.bf16.msra.mxu0 0
  %4729 = vmatprep.subr.bf16.mxu0 0
  %4730 = vmatpush1.bf16.msra.mxu0 0
  %4731 = vmatprep.mubr.bf16.mxu0 0
  %4732 = vmatmul.mubr.bf16.gmra.mrb[0].mxu0 %v4558
  %v4733 = vpop.f32.mrb[0].mxu0
  %v4734 = vadd.f32 %v4669, %v4733
  %v4735 = vpop.f32.mrb[0].mxu0
  %v4736 = vpop.f32.mrb[0].mxu0
  %v4737 = vadd.f32 %v4672, %v4736
  %v4738 = vpop.f32.mrb[0].mxu0
  %4739 = vmatprep.mubr.bf16.mxu0 0
  %4740 = vmatmul.mubr.bf16.gmra.mrb[0].mxu0 %v4561
  %v4741 = vpop.f32.mrb[0].mxu0
  %v4742 = vadd.f32 %v4677, %v4741
  %v4743 = vpop.f32.mrb[0].mxu0
  %v4744 = vpop.f32.mrb[0].mxu0
  %v4745 = vadd.f32 %v4680, %v4744
  %v4746 = vpop.f32.mrb[0].mxu0
  %4747 = vmatprep.mubr.bf16.mxu0 0
  %4748 = vmatmul.mubr.bf16.gmra.mrb[0].mxu0 %v4564
  %v4749 = vpop.f32.mrb[0].mxu0
  %v4750 = vadd.f32 %v4685, %v4749
  %v4751 = vpop.f32.mrb[0].mxu0
  %v4752 = vpop.f32.mrb[0].mxu0
  %v4753 = vadd.f32 %v4688, %v4752
  %v4754 = vpop.f32.mrb[0].mxu0
  %4755 = vmatprep.mubr.bf16.mxu0 0
  %4756 = vmatmul.mubr.bf16.gmra.mrb[0].mxu0 %v4567
  %v4757 = vpop.f32.mrb[0].mxu0
  %v4758 = vadd.f32 %v4693, %v4757
  %v4759 = vpop.f32.mrb[0].mxu0
  %v4760 = vpop.f32.mrb[0].mxu0
  %v4761 = vadd.f32 %v4696, %v4760
  %v4762 = vpop.f32.mrb[0].mxu0
  %4763 = vdwg.mxu0
  %v4764 = vmax.f32 %v4734, 0.0
  %v4765 = vmax.f32 %v4737, 0.0
  %v4766 = vmax.f32 %v4742, 0.0
  %v4767 = vmax.f32 %v4745, 0.0
  %v4768 = vmax.f32 %v4750, 0.0
  %v4769 = vmax.f32 %v4753, 0.0
  %v4770 = vmax.f32 %v4758, 0.0
  %v4771 = vmax.f32 %v4761, 0.0
  %v4772 = vpack.c.bf16 %v4765, %v4764
  %v4773 = vpack.c.bf16 %v4767, %v4766
  %v4774 = vpack.c.bf16 %v4769, %v4768
  %v4775 = vpack.c.bf16 %v4771, %v4770
  %4780 = vrot.lane.b32.xlu0 %v4772, 9
  %v4781 = vpop.permute.xlu0 %4780
  %4782 = vrot.lane.b32.xlu0 %v4773, 9
  %v4783 = vpop.permute.xlu0 %4782
  %4784 = vrot.lane.b32.xlu0 %v4774, 9
  %v4785 = vpop.permute.xlu0 %4784
  %4786 = vrot.lane.b32.xlu0 %v4775, 9
  %v4787 = vpop.permute.xlu0 %4786
  %v4796 = vsel %vm3037, %v4781, 0
  %v4797 = vsel %vm3037, %v4783, 0
  %v4798 = vsel %vm3037, %v4785, 0
  %v4799 = vsel %vm3037, %v4787, 0
  %4800 = vrot.lane.b32.xlu0 %v4772, 8
  %v4801 = vpop.permute.xlu0 %4800
  %4802 = vrot.lane.b32.xlu0 %v4773, 8
  %v4803 = vpop.permute.xlu0 %4802
  %4804 = vrot.lane.b32.xlu0 %v4774, 8
  %v4805 = vpop.permute.xlu0 %4804
  %4806 = vrot.lane.b32.xlu0 %v4775, 8
  %v4807 = vpop.permute.xlu0 %4806
  %v4816 = vsel %vm3066, %v4801, 0
  %v4817 = vsel %vm3066, %v4803, 0
  %v4818 = vsel %vm3066, %v4805, 0
  %v4819 = vsel %vm3066, %v4807, 0
  %4820 = vrot.lane.b32.xlu0 %v4772, 7
  %v4821 = vpop.permute.xlu0 %4820
  %4822 = vrot.lane.b32.xlu0 %v4773, 7
  %v4823 = vpop.permute.xlu0 %4822
  %4824 = vrot.lane.b32.xlu0 %v4774, 7
  %v4825 = vpop.permute.xlu0 %4824
  %4826 = vrot.lane.b32.xlu0 %v4775, 7
  %v4827 = vpop.permute.xlu0 %4826
  %v4836 = vsel %vm3095, %v4821, 0
  %v4837 = vsel %vm3095, %v4823, 0
  %v4838 = vsel %vm3095, %v4825, 0
  %v4839 = vsel %vm3095, %v4827, 0
  %4840 = vrot.lane.b32.xlu0 %v4772, 1
  %v4841 = vpop.permute.xlu0 %4840
  %4842 = vrot.lane.b32.xlu0 %v4773, 1
  %v4843 = vpop.permute.xlu0 %4842
  %4844 = vrot.lane.b32.xlu0 %v4774, 1
  %v4845 = vpop.permute.xlu0 %4844
  %4846 = vrot.lane.b32.xlu0 %v4775, 1
  %v4847 = vpop.permute.xlu0 %4846
  %v4856 = vsel %vm3124, %v4841, 0
  %v4857 = vsel %vm3124, %v4843, 0
  %v4858 = vsel %vm3124, %v4845, 0
  %v4859 = vsel %vm3124, %v4847, 0
  %v4860 = vsel %vm3137, %v4772, 0
  %v4861 = vsel %vm3137, %v4773, 0
  %v4862 = vsel %vm3137, %v4774, 0
  %v4863 = vsel %vm3137, %v4775, 0
  %4864 = vrot.lane.b32.xlu0 %v4772, 127
  %v4865 = vpop.permute.xlu0 %4864
  %4866 = vrot.lane.b32.xlu0 %v4773, 127
  %v4867 = vpop.permute.xlu0 %4866
  %4868 = vrot.lane.b32.xlu0 %v4774, 127
  %v4869 = vpop.permute.xlu0 %4868
  %4870 = vrot.lane.b32.xlu0 %v4775, 127
  %v4871 = vpop.permute.xlu0 %4870
  %v4880 = vsel %vm3166, %v4865, 0
  %v4881 = vsel %vm3166, %v4867, 0
  %v4882 = vsel %vm3166, %v4869, 0
  %v4883 = vsel %vm3166, %v4871, 0
  %4884 = vrot.lane.b32.xlu0 %v4772, 121
  %v4885 = vpop.permute.xlu0 %4884
  %4886 = vrot.lane.b32.xlu0 %v4773, 121
  %v4887 = vpop.permute.xlu0 %4886
  %4888 = vrot.lane.b32.xlu0 %v4774, 121
  %v4889 = vpop.permute.xlu0 %4888
  %4890 = vrot.lane.b32.xlu0 %v4775, 121
  %v4891 = vpop.permute.xlu0 %4890
  %v4900 = vsel %vm3195, %v4885, 0
  %v4901 = vsel %vm3195, %v4887, 0
  %v4902 = vsel %vm3195, %v4889, 0
  %v4903 = vsel %vm3195, %v4891, 0
  %4904 = vrot.lane.b32.xlu0 %v4772, 120
  %v4905 = vpop.permute.xlu0 %4904
  %4906 = vrot.lane.b32.xlu0 %v4773, 120
  %v4907 = vpop.permute.xlu0 %4906
  %4908 = vrot.lane.b32.xlu0 %v4774, 120
  %v4909 = vpop.permute.xlu0 %4908
  %4910 = vrot.lane.b32.xlu0 %v4775, 120
  %v4911 = vpop.permute.xlu0 %4910
  %v4920 = vsel %vm3224, %v4905, 0
  %v4921 = vsel %vm3224, %v4907, 0
  %v4922 = vsel %vm3224, %v4909, 0
  %v4923 = vsel %vm3224, %v4911, 0
  %4924 = vrot.lane.b32.xlu0 %v4772, 119
  %v4925 = vpop.permute.xlu0 %4924
  %4926 = vrot.lane.b32.xlu0 %v4773, 119
  %v4927 = vpop.permute.xlu0 %4926
  %4928 = vrot.lane.b32.xlu0 %v4774, 119
  %v4929 = vpop.permute.xlu0 %4928
  %4930 = vrot.lane.b32.xlu0 %v4775, 119
  %v4931 = vpop.permute.xlu0 %4930
  %v4940 = vsel %vm3253, %v4925, 0
  %v4941 = vsel %vm3253, %v4927, 0
  %v4942 = vsel %vm3253, %v4929, 0
  %v4943 = vsel %vm3253, %v4931, 0
  %v4944 = vld [vmem:[%s10] sm:$0xff]
  %v4945 = vld [vmem:[%s10 + $0x8] sm:$0xff]
  %v4946 = vld [vmem:[%s10 + $0x10] sm:$0xf]
  %v4947 = vld [vmem:[%s10 + $0x14] sm:$0xff]
  %v4948 = vld [vmem:[%s10 + $0x1c] sm:$0xff]
  %v4949 = vld [vmem:[%s10 + $0x24] sm:$0xf]
  %v4950 = vld [vmem:[%s10 + $0x28] sm:$0xff]
  %v4951 = vld [vmem:[%s10 + $0x30] sm:$0xff]
  %v4952 = vld [vmem:[%s10 + $0x38] sm:$0xf]
  %v4953 = vld [vmem:[%s10 + $0x3c] sm:$0xff]
  %v4954 = vld [vmem:[%s10 + $0x44] sm:$0xff]
  %v4955 = vld [vmem:[%s10 + $0x4c] sm:$0xf]
  %v4956 = vld [vmem:[%s10 + $0x50] sm:$0xff]
  %v4957 = vld [vmem:[%s10 + $0x58] sm:$0xff]
  %v4958 = vld [vmem:[%s10 + $0x60] sm:$0xf]
  %v4959 = vld [vmem:[%s10 + $0x64] sm:$0xff]
  %v4960 = vld [vmem:[%s10 + $0x6c] sm:$0xff]
  %v4961 = vld [vmem:[%s10 + $0x74] sm:$0xf]
  %v4962 = vld [vmem:[%s10 + $0x78] sm:$0xff]
  %v4963 = vld [vmem:[%s10 + $0x80] sm:$0xff]
  %v4964 = vld [vmem:[%s10 + $0x88] sm:$0xf]
  %v4965 = vld [vmem:[%s10 + $0x8c] sm:$0xff]
  %v4966 = vld [vmem:[%s10 + $0x94] sm:$0xff]
  %v4967 = vld [vmem:[%s10 + $0x9c] sm:$0xf]
  %v4968 = vld [vmem:[%s11] sm:$0xff]
  %v4969 = vld [vmem:[%s11 + $0x8] sm:$0xff]
  %v4970 = vld [vmem:[%s11 + $0x10] sm:$0xff]
  %v4971 = vld [vmem:[%s11 + $0x18] sm:$0xff]
  %v4972 = vld [vmem:[%s11 + $0x20] sm:$0xff]
  %v4973 = vld [vmem:[%s11 + $0x28] sm:$0xff]
  %v4974 = vld [vmem:[%s11 + $0x30] sm:$0xff]
  %v4975 = vld [vmem:[%s11 + $0x38] sm:$0xff]
  %4977 = vset.pattern.permute.xlu0 0
  %4978 = vperm.xlu0 %4977, %v4968
  %v4979 = vpop.permute.xlu0 %4978
  %4982 = vset.pattern.permute.xlu0 0
  %4983 = vperm.xlu0 %4982, %v4969
  %v4984 = vpop.permute.xlu0 %4983
  %4987 = vset.pattern.permute.xlu0 0
  %4988 = vperm.xlu0 %4987, %v4970
  %v4989 = vpop.permute.xlu0 %4988
  %4992 = vset.pattern.permute.xlu0 0
  %4993 = vperm.xlu0 %4992, %v4971
  %v4994 = vpop.permute.xlu0 %4993
  %4997 = vset.pattern.permute.xlu0 0
  %4998 = vperm.xlu0 %4997, %v4972
  %v4999 = vpop.permute.xlu0 %4998
  %5002 = vset.pattern.permute.xlu0 0
  %5003 = vperm.xlu0 %5002, %v4973
  %v5004 = vpop.permute.xlu0 %5003
  %5007 = vset.pattern.permute.xlu0 0
  %5008 = vperm.xlu0 %5007, %v4974
  %v5009 = vpop.permute.xlu0 %5008
  %5012 = vset.pattern.permute.xlu0 0
  %5013 = vperm.xlu0 %5012, %v4975
  %v5014 = vpop.permute.xlu0 %5013
  %v5040 = vunpack.c.l.b16 %v4944
  %v5041 = vunpack.c.h.b16 %v4944
  %v5042 = vunpack.c.l.b16 %v4945
  %v5043 = vunpack.c.h.b16 %v4945
  %v5044 = vunpack.c.l.b16 %v4946
  %v5045 = vunpack.c.l.b16 %v4947
  %v5046 = vunpack.c.h.b16 %v4947
  %v5047 = vunpack.c.l.b16 %v4948
  %v5048 = vunpack.c.h.b16 %v4948
  %v5049 = vunpack.c.l.b16 %v4949
  %v5050 = vunpack.c.l.b16 %v4950
  %v5051 = vunpack.c.h.b16 %v4950
  %v5052 = vunpack.c.l.b16 %v4951
  %v5053 = vunpack.c.h.b16 %v4951
  %v5054 = vunpack.c.l.b16 %v4952
  %v5055 = vunpack.c.l.b16 %v4953
  %v5056 = vunpack.c.h.b16 %v4953
  %v5057 = vunpack.c.l.b16 %v4954
  %v5058 = vunpack.c.h.b16 %v4954
  %v5059 = vunpack.c.l.b16 %v4955
  %v5060 = vunpack.c.l.b16 %v4956
  %v5061 = vunpack.c.h.b16 %v4956
  %v5062 = vunpack.c.l.b16 %v4957
  %v5063 = vunpack.c.h.b16 %v4957
  %v5064 = vunpack.c.l.b16 %v4958
  %v5065 = vunpack.c.l.b16 %v4959
  %v5066 = vunpack.c.h.b16 %v4959
  %v5067 = vunpack.c.l.b16 %v4960
  %v5068 = vunpack.c.h.b16 %v4960
  %v5069 = vunpack.c.l.b16 %v4961
  %v5070 = vunpack.c.l.b16 %v4962
  %v5071 = vunpack.c.h.b16 %v4962
  %v5072 = vunpack.c.l.b16 %v4963
  %v5073 = vunpack.c.h.b16 %v4963
  %v5074 = vunpack.c.l.b16 %v4964
  %v5075 = vunpack.c.l.b16 %v4965
  %v5076 = vunpack.c.h.b16 %v4965
  %v5077 = vunpack.c.l.b16 %v4966
  %v5078 = vunpack.c.h.b16 %v4966
  %v5079 = vunpack.c.l.b16 %v4967
  %v5080 = vpack.c.b16 %v5045, %v5040
  %v5081 = vpack.c.b16 %v5046, %v5041
  %v5082 = vpack.c.b16 %v5047, %v5042
  %v5083 = vpack.c.b16 %v5048, %v5043
  %v5084 = vpack.c.b16 %v5049, %v5044
  %v5085 = vpack.c.b16 %v5055, %v5050
  %v5086 = vpack.c.b16 %v5056, %v5051
  %v5087 = vpack.c.b16 %v5057, %v5052
  %v5088 = vpack.c.b16 %v5058, %v5053
  %v5089 = vpack.c.b16 %v5059, %v5054
  %v5090 = vpack.c.b16 %v5065, %v5060
  %v5091 = vpack.c.b16 %v5066, %v5061
  %v5092 = vpack.c.b16 %v5067, %v5062
  %v5093 = vpack.c.b16 %v5068, %v5063
  %v5094 = vpack.c.b16 %v5069, %v5064
  %v5095 = vpack.c.b16 %v5075, %v5070
  %v5096 = vpack.c.b16 %v5076, %v5071
  %v5097 = vpack.c.b16 %v5077, %v5072
  %v5098 = vpack.c.b16 %v5078, %v5073
  %v5099 = vpack.c.b16 %v5079, %v5074
  %v5117 = vsel %vm3430, %v5084, 0
  %v5120 = vsel %vm3430, %v5089, 0
  %v5123 = vsel %vm3430, %v5094, 0
  %v5126 = vsel %vm3430, %v5099, 0
  %5128 = vmatprep.subr.bf16.mxu0 0
  %5129 = vmatpush1.bf16.msra.mxu0 %v4796
  %5130 = vmatprep.subr.bf16.mxu0 0
  %5131 = vmatpush1.bf16.msra.mxu0 %v4797
  %5132 = vmatprep.subr.bf16.mxu0 0
  %5133 = vmatpush1.bf16.msra.mxu0 %v4798
  %5134 = vmatprep.subr.bf16.mxu0 0
  %5135 = vmatpush1.bf16.msra.mxu0 %v4799
  %5136 = vmatprep.subr.bf16.mxu0 0
  %5137 = vmatpush1.bf16.msra.mxu0 %v4816
  %5138 = vmatprep.subr.bf16.mxu0 0
  %5139 = vmatpush1.bf16.msra.mxu0 %v4817
  %5140 = vmatprep.subr.bf16.mxu0 0
  %5141 = vmatpush1.bf16.msra.mxu0 %v4818
  %5142 = vmatprep.subr.bf16.mxu0 0
  %5143 = vmatpush1.bf16.msra.mxu0 %v4819
  %5144 = vmatprep.subr.bf16.mxu0 0
  %5145 = vmatpush1.bf16.msra.mxu0 %v4836
  %5146 = vmatprep.subr.bf16.mxu0 0
  %5147 = vmatpush1.bf16.msra.mxu0 %v4837
  %5148 = vmatprep.subr.bf16.mxu0 0
  %5149 = vmatpush1.bf16.msra.mxu0 %v4838
  %5150 = vmatprep.subr.bf16.mxu0 0
  %5151 = vmatpush1.bf16.msra.mxu0 %v4839
  %5152 = vmatprep.subr.bf16.mxu0 0
  %5153 = vmatpush1.bf16.msra.mxu0 %v4856
  %5154 = vmatprep.subr.bf16.mxu0 0
  %5155 = vmatpush1.bf16.msra.mxu0 %v4857
  %5156 = vmatprep.subr.bf16.mxu0 0
  %5157 = vmatpush1.bf16.msra.mxu0 %v4858
  %5158 = vmatprep.subr.bf16.mxu0 0
  %5159 = vmatpush1.bf16.msra.mxu0 %v4859
  %5160 = vmatprep.mubr.bf16.mxu0 %v5081
  %5161 = vmatmul.mubr.bf16.gmra.mrb[0].mxu0 %v5080
  %v5162 = vpop.f32.mrb[0].mxu0
  %v5163 = vadd.f32 %v4979, %v5162
  %v5164 = vpop.f32.mrb[0].mxu0
  %v5165 = vpop.f32.mrb[0].mxu0
  %v5166 = vadd.f32 %v4984, %v5165
  %v5167 = vpop.f32.mrb[0].mxu0
  %5168 = vmatprep.mubr.bf16.mxu0 %v5086
  %5169 = vmatmul.mubr.bf16.gmra.mrb[0].mxu0 %v5085
  %v5170 = vpop.f32.mrb[0].mxu0
  %v5171 = vadd.f32 %v4989, %v5170
  %v5172 = vpop.f32.mrb[0].mxu0
  %v5173 = vpop.f32.mrb[0].mxu0
  %v5174 = vadd.f32 %v4994, %v5173
  %v5175 = vpop.f32.mrb[0].mxu0
  %5176 = vmatprep.mubr.bf16.mxu0 %v5091
  %5177 = vmatmul.mubr.bf16.gmra.mrb[0].mxu0 %v5090
  %v5178 = vpop.f32.mrb[0].mxu0
  %v5179 = vadd.f32 %v4999, %v5178
  %v5180 = vpop.f32.mrb[0].mxu0
  %v5181 = vpop.f32.mrb[0].mxu0
  %v5182 = vadd.f32 %v5004, %v5181
  %v5183 = vpop.f32.mrb[0].mxu0
  %5184 = vmatprep.mubr.bf16.mxu0 %v5096
  %5185 = vmatmul.mubr.bf16.gmra.mrb[0].mxu0 %v5095
  %v5186 = vpop.f32.mrb[0].mxu0
  %v5187 = vadd.f32 %v5009, %v5186
  %v5188 = vpop.f32.mrb[0].mxu0
  %v5189 = vpop.f32.mrb[0].mxu0
  %v5190 = vadd.f32 %v5014, %v5189
  %v5191 = vpop.f32.mrb[0].mxu0
  %5192 = vdwg.mxu0
  %5193 = vmatprep.subr.bf16.mxu0 0
  %5194 = vmatpush1.bf16.msra.mxu0 %v4860
  %5195 = vmatprep.subr.bf16.mxu0 0
  %5196 = vmatpush1.bf16.msra.mxu0 %v4861
  %5197 = vmatprep.subr.bf16.mxu0 0
  %5198 = vmatpush1.bf16.msra.mxu0 %v4862
  %5199 = vmatprep.subr.bf16.mxu0 0
  %5200 = vmatpush1.bf16.msra.mxu0 %v4863
  %5201 = vmatprep.subr.bf16.mxu0 0
  %5202 = vmatpush1.bf16.msra.mxu0 %v4880
  %5203 = vmatprep.subr.bf16.mxu0 0
  %5204 = vmatpush1.bf16.msra.mxu0 %v4881
  %5205 = vmatprep.subr.bf16.mxu0 0
  %5206 = vmatpush1.bf16.msra.mxu0 %v4882
  %5207 = vmatprep.subr.bf16.mxu0 0
  %5208 = vmatpush1.bf16.msra.mxu0 %v4883
  %5209 = vmatprep.subr.bf16.mxu0 0
  %5210 = vmatpush1.bf16.msra.mxu0 %v4900
  %5211 = vmatprep.subr.bf16.mxu0 0
  %5212 = vmatpush1.bf16.msra.mxu0 %v4901
  %5213 = vmatprep.subr.bf16.mxu0 0
  %5214 = vmatpush1.bf16.msra.mxu0 %v4902
  %5215 = vmatprep.subr.bf16.mxu0 0
  %5216 = vmatpush1.bf16.msra.mxu0 %v4903
  %5217 = vmatprep.subr.bf16.mxu0 0
  %5218 = vmatpush1.bf16.msra.mxu0 %v4920
  %5219 = vmatprep.subr.bf16.mxu0 0
  %5220 = vmatpush1.bf16.msra.mxu0 %v4921
  %5221 = vmatprep.subr.bf16.mxu0 0
  %5222 = vmatpush1.bf16.msra.mxu0 %v4922
  %5223 = vmatprep.subr.bf16.mxu0 0
  %5224 = vmatpush1.bf16.msra.mxu0 %v4923
  %5225 = vmatprep.mubr.bf16.mxu0 %v5083
  %5226 = vmatmul.mubr.bf16.gmra.mrb[0].mxu0 %v5082
  %v5227 = vpop.f32.mrb[0].mxu0
  %v5228 = vadd.f32 %v5163, %v5227
  %v5229 = vpop.f32.mrb[0].mxu0
  %v5230 = vpop.f32.mrb[0].mxu0
  %v5231 = vadd.f32 %v5166, %v5230
  %v5232 = vpop.f32.mrb[0].mxu0
  %5233 = vmatprep.mubr.bf16.mxu0 %v5088
  %5234 = vmatmul.mubr.bf16.gmra.mrb[0].mxu0 %v5087
  %v5235 = vpop.f32.mrb[0].mxu0
  %v5236 = vadd.f32 %v5171, %v5235
  %v5237 = vpop.f32.mrb[0].mxu0
  %v5238 = vpop.f32.mrb[0].mxu0
  %v5239 = vadd.f32 %v5174, %v5238
  %v5240 = vpop.f32.mrb[0].mxu0
  %5241 = vmatprep.mubr.bf16.mxu0 %v5093
  %5242 = vmatmul.mubr.bf16.gmra.mrb[0].mxu0 %v5092
  %v5243 = vpop.f32.mrb[0].mxu0
  %v5244 = vadd.f32 %v5179, %v5243
  %v5245 = vpop.f32.mrb[0].mxu0
  %v5246 = vpop.f32.mrb[0].mxu0
  %v5247 = vadd.f32 %v5182, %v5246
  %v5248 = vpop.f32.mrb[0].mxu0
  %5249 = vmatprep.mubr.bf16.mxu0 %v5098
  %5250 = vmatmul.mubr.bf16.gmra.mrb[0].mxu0 %v5097
  %v5251 = vpop.f32.mrb[0].mxu0
  %v5252 = vadd.f32 %v5187, %v5251
  %v5253 = vpop.f32.mrb[0].mxu0
  %v5254 = vpop.f32.mrb[0].mxu0
  %v5255 = vadd.f32 %v5190, %v5254
  %v5256 = vpop.f32.mrb[0].mxu0
  %5257 = vdwg.mxu0
  %5258 = vmatprep.subr.bf16.mxu0 0
  %5259 = vmatpush1.bf16.msra.mxu0 %v4940
  %5260 = vmatprep.subr.bf16.mxu0 0
  %5261 = vmatpush1.bf16.msra.mxu0 %v4941
  %5262 = vmatprep.subr.bf16.mxu0 0
  %5263 = vmatpush1.bf16.msra.mxu0 %v4942
  %5264 = vmatprep.subr.bf16.mxu0 0
  %5265 = vmatpush1.bf16.msra.mxu0 %v4943
  %5266 = vmatprep.subr.bf16.mxu0 0
  %5267 = vmatpush1.bf16.msra.mxu0 0
  %5268 = vmatprep.subr.bf16.mxu0 0
  %5269 = vmatpush1.bf16.msra.mxu0 0
  %5270 = vmatprep.subr.bf16.mxu0 0
  %5271 = vmatpush1.bf16.msra.mxu0 0
  %5272 = vmatprep.subr.bf16.mxu0 0
  %5273 = vmatpush1.bf16.msra.mxu0 0
  %5274 = vmatprep.subr.bf16.mxu0 0
  %5275 = vmatpush1.bf16.msra.mxu0 0
  %5276 = vmatprep.subr.bf16.mxu0 0
  %5277 = vmatpush1.bf16.msra.mxu0 0
  %5278 = vmatprep.subr.bf16.mxu0 0
  %5279 = vmatpush1.bf16.msra.mxu0 0
  %5280 = vmatprep.subr.bf16.mxu0 0
  %5281 = vmatpush1.bf16.msra.mxu0 0
  %5282 = vmatprep.subr.bf16.mxu0 0
  %5283 = vmatpush1.bf16.msra.mxu0 0
  %5284 = vmatprep.subr.bf16.mxu0 0
  %5285 = vmatpush1.bf16.msra.mxu0 0
  %5286 = vmatprep.subr.bf16.mxu0 0
  %5287 = vmatpush1.bf16.msra.mxu0 0
  %5288 = vmatprep.subr.bf16.mxu0 0
  %5289 = vmatpush1.bf16.msra.mxu0 0
  %5290 = vmatprep.mubr.bf16.mxu0 0
  %5291 = vmatmul.mubr.bf16.gmra.mrb[0].mxu0 %v5117
  %v5292 = vpop.f32.mrb[0].mxu0
  %v5293 = vadd.f32 %v5228, %v5292
  %v5294 = vpop.f32.mrb[0].mxu0
  %v5295 = vpop.f32.mrb[0].mxu0
  %v5296 = vadd.f32 %v5231, %v5295
  %v5297 = vpop.f32.mrb[0].mxu0
  %5298 = vmatprep.mubr.bf16.mxu0 0
  %5299 = vmatmul.mubr.bf16.gmra.mrb[0].mxu0 %v5120
  %v5300 = vpop.f32.mrb[0].mxu0
  %v5301 = vadd.f32 %v5236, %v5300
  %v5302 = vpop.f32.mrb[0].mxu0
  %v5303 = vpop.f32.mrb[0].mxu0
  %v5304 = vadd.f32 %v5239, %v5303
  %v5305 = vpop.f32.mrb[0].mxu0
  %5306 = vmatprep.mubr.bf16.mxu0 0
  %5307 = vmatmul.mubr.bf16.gmra.mrb[0].mxu0 %v5123
  %v5308 = vpop.f32.mrb[0].mxu0
  %v5309 = vadd.f32 %v5244, %v5308
  %v5310 = vpop.f32.mrb[0].mxu0
  %v5311 = vpop.f32.mrb[0].mxu0
  %v5312 = vadd.f32 %v5247, %v5311
  %v5313 = vpop.f32.mrb[0].mxu0
  %5314 = vmatprep.mubr.bf16.mxu0 0
  %5315 = vmatmul.mubr.bf16.gmra.mrb[0].mxu0 %v5126
  %v5316 = vpop.f32.mrb[0].mxu0
  %v5317 = vadd.f32 %v5252, %v5316
  %v5318 = vpop.f32.mrb[0].mxu0
  %v5319 = vpop.f32.mrb[0].mxu0
  %v5320 = vadd.f32 %v5255, %v5319
  %v5321 = vpop.f32.mrb[0].mxu0
  %5322 = vdwg.mxu0
  %v5323 = vadd.f32 %v5293, %v4205
  %v5324 = vadd.f32 %v5296, %v4206
  %v5325 = vadd.f32 %v5301, %v4207
  %v5326 = vadd.f32 %v5304, %v4208
  %v5327 = vadd.f32 %v5309, %v4209
  %v5328 = vadd.f32 %v5312, %v4210
  %v5329 = vadd.f32 %v5317, %v4211
  %v5330 = vadd.f32 %v5320, %v4212
  %v5331 = vmax.f32 %v5323, 0.0
  %v5332 = vmax.f32 %v5324, 0.0
  %v5333 = vmax.f32 %v5325, 0.0
  %v5334 = vmax.f32 %v5326, 0.0
  %v5335 = vmax.f32 %v5327, 0.0
  %v5336 = vmax.f32 %v5328, 0.0
  %v5337 = vmax.f32 %v5329, 0.0
  %v5338 = vmax.f32 %v5330, 0.0
  %5339 = vst [vmem:[%s12] sm:$0xff] %v5331
  %5340 = vst [vmem:[%s12 + $0x8] sm:$0xff] %v5332
  %5341 = vst [vmem:[%s12 + $0x10] sm:$0xff] %v5333
  %5342 = vst [vmem:[%s12 + $0x18] sm:$0xff] %v5334
  %5343 = vst [vmem:[%s12 + $0x20] sm:$0xff] %v5335
  %5344 = vst [vmem:[%s12 + $0x28] sm:$0xff] %v5336
  %5345 = vst [vmem:[%s12 + $0x30] sm:$0xff] %v5337
  %5346 = vst [vmem:[%s12 + $0x38] sm:$0xff] %v5338
  // Predicated region
  $region50: #{feature_generator_forward.1} parent=0 // pred_check
    _
  $region51: #{feature_generator_forward.1} parent=0 // pred_check_branch
    %5348 = sbr.rel (0) target = $region53
  $region52: #{feature_generator_forward.1} parent=0 // pred_region
    _
  $region53: #{feature_generator_forward.1} parent=0 // pred_fallthru
    _
  // Predicated region
  $region54: #{feature_generator_forward.1} parent=0 // pred_check
    _
  $region55: #{feature_generator_forward.1} parent=0 // pred_check_branch
    %5350 = sbr.rel (0) target = $region57
  $region56: #{feature_generator_forward.1} parent=0 // pred_region
    _
  $region57: #{feature_generator_forward.1} parent=0 // pred_fallthru
    _

</llo_original>
